<compile_context>
chip_gen: v6e
topology: v6e:2x2x1
jax: 0.10.0
libtpu: 0.0.40
codegen_flags: <defaults>
</compile_context>

<pallas_src>
import functools

import jax
import jax.numpy as jnp
from jax.experimental import pallas as pl
from jax.experimental.pallas import tpu as pltpu

PATCH = 4
RAW_P = PATCH * PATCH * 3      # 48  raw patch-vector length
PAD_P = 128                    # padded contraction dim (full MXU lanes)
FEAT_DIM = 768                 # swin_t feature dim per backbone
HIDDEN = 128                   # quality_regression middle_channels
OUT = 1                        # quality_regression out_channels
LN_EPS = 1e-5


# ----------------------------- Pallas kernels ------------------------------

def _backbone_kernel(patches_ref, w_ref, b_ref, g_ref, beta_ref,
                     out_ref, acc_ref):
    """Stand-in Swin-T feature extractor (patch-embed + LN + global avg pool).

    patches_ref: (B, TN, PP) bf16    w_ref: (PP, C) bf16
    b/g/beta:    (1, C) f32          out_ref: (B, C) f32    acc_ref: (B, C) f32
    """
    # TODO(synk): torchvision swin_t's 4 stages of shifted-window attention,
    # patch merging and pretrained weights are not reproduced; only the
    # patch-embed projection + final LayerNorm + global avg-pool hot path is
    # implemented here.
    k = pl.program_id(1)
    nk = pl.num_programs(1)

    @pl.when(k == 0)
    def _():
        acc_ref[...] = jnp.zeros_like(acc_ref)

    B, TN, PP = patches_ref.shape
    C = w_ref.shape[1]

    # One batched matmul per tile: (B*TN, 128) x (128, 768), f32 MXU accum.
    x = patches_ref[...].reshape(B * TN, PP)
    y = jnp.dot(x, w_ref[...], preferred_element_type=jnp.float32) + b_ref[...]

    # Fused one-pass LayerNorm statistics (f32).
    inv_c = 1.0 / C
    s1 = jnp.sum(y, axis=-1, keepdims=True)
    s2 = jnp.sum(y * y, axis=-1, keepdims=True)
    mu = s1 * inv_c
    var = s2 * inv_c - mu * mu
    y = (y - mu) * jax.lax.rsqrt(var + LN_EPS) * g_ref[...] + beta_ref[...]

    # Partial global-average-pool: accumulate per-image sums over this tile.
    acc_ref[...] += jnp.sum(y.reshape(B, TN, C), axis=1)

    @pl.when(k == nk - 1)
    def _():
        out_ref[...] = acc_ref[...] * (1.0 / (nk * TN))


def _quality_head_kernel(f_ref, w1_ref, b1_ref, w2t_ref, b2_ref, out_ref):
    """cat(fa, fd, fs) @ W1 + b1 -> @ W2 + b2, without materializing the cat.

    f_ref: (3, B, C) f32   w1_ref: (3, C, H) bf16
    b1: (1, H) f32   w2t: (1, H) f32   b2: (1, 1) f32   out: (B, 1) f32
    """
    f = f_ref[...].astype(jnp.bfloat16)
    w1 = w1_ref[...]
    h = (jnp.dot(f[0], w1[0], preferred_element_type=jnp.float32)
         + jnp.dot(f[1], w1[1], preferred_element_type=jnp.float32)
         + jnp.dot(f[2], w1[2], preferred_element_type=jnp.float32)
         + b1_ref[...])
    # Final (HIDDEN, 1) projection on the VPU (mul + lane reduce) instead of
    # an N=1 MXU matmul.
    out_ref[...] = jnp.sum(h * w2t_ref[...], axis=-1, keepdims=True) + b2_ref[...]


# ------------------------------ call wrappers -------------------------------

def _full_spec(shape):
    zeros = (0,) * len(shape)
    return pl.BlockSpec(shape, lambda *_: zeros)


def _choose_patch_tile(num_patches, max_tile=512):
    for t in (512, 256, 128, 64, 32, 16, 8):
        if t <= max_tile and num_patches % t == 0:
            return t
    return num_patches


def swin_backbones(patches3, params3):
    """patches3: (3, B, Np, PAD_P) bf16; params3: stacked (w3, b3, g3, beta3)."""
    w3, b3, g3, beta3 = params3
    _, B, Np, PP = patches3.shape
    C = w3.shape[-1]
    TN = _choose_patch_tile(Np)
    NT = Np // TN

    bytes_accessed = (patches3.size * 2 + w3.size * 2
                      + (b3.size + g3.size + beta3.size) * 4 + 3 * B * C * 4)
    cost = pl.CostEstimate(
        flops=3 * (2 * B * Np * PP * C + 12 * B * Np * C),
        transcendentals=3 * B * Np,
        bytes_accessed=bytes_accessed)

    block_bytes = (2 * (B * TN * PP * 2)     # patches, double buffered, bf16
                   + 2 * (PP * C * 2)        # w (bf16), double buffered
                   + 2 * 3 * C * 4           # b, g, beta
                   + 2 * B * C * 4           # output block
                   + B * C * 4)              # scratch accumulator
    vmem_limit = int(min(max(2 * block_bytes, 16 << 20), 64 << 20))

    return pl.pallas_call(
        _backbone_kernel,
        out_shape=jax.ShapeDtypeStruct((3, B, C), jnp.float32),
        grid=(3, NT),
        in_specs=[
            pl.BlockSpec((None, B, TN, PP), lambda s, k: (s, 0, k, 0)),
            pl.BlockSpec((None, PP, C), lambda s, k: (s, 0, 0)),
            pl.BlockSpec((None, 1, C), lambda s, k: (s, 0, 0)),
            pl.BlockSpec((None, 1, C), lambda s, k: (s, 0, 0)),
            pl.BlockSpec((None, 1, C), lambda s, k: (s, 0, 0)),
        ],
        out_specs=pl.BlockSpec((None, B, C), lambda s, k: (s, 0, 0)),
        scratch_shapes=[pltpu.VMEM((B, C), jnp.float32)],
        compiler_params=pltpu.CompilerParams(
            dimension_semantics=("parallel", "arbitrary"),
            vmem_limit_bytes=vmem_limit),
        cost_estimate=cost,
    )(patches3, w3, b3, g3, beta3)


def quality_head(feats3, params):
    w1_3, b1, w2t, b2 = params
    B = feats3.shape[1]
    cost = pl.CostEstimate(
        flops=2 * B * 3 * FEAT_DIM * HIDDEN + 4 * B * HIDDEN,
        transcendentals=0,
        bytes_accessed=(feats3.size * 4 + w1_3.size * 2
                        + (b1.size + w2t.size + b2.size) * 4 + B * OUT * 4))
    return pl.pallas_call(
        _quality_head_kernel,
        out_shape=jax.ShapeDtypeStruct((B, OUT), jnp.float32),
        grid=(1,),
        in_specs=[_full_spec(feats3.shape), _full_spec(w1_3.shape),
                  _full_spec(b1.shape), _full_spec(w2t.shape),
                  _full_spec(b2.shape)],
        out_specs=_full_spec((B, OUT)),
        compiler_params=pltpu.CompilerParams(
            dimension_semantics=("arbitrary",),
            vmem_limit_bytes=16 << 20),
        cost_estimate=cost,
    )(feats3, w1_3, b1, w2t, b2)


# ------------------------------- glue (JAX) ---------------------------------

def extract_patches(x_nchw, patch=PATCH, pad_to=PAD_P):
    """NCHW image -> (B, Np, pad_to) bf16 patch vectors (zero-padded 48->128)."""
    B, C, H, W = x_nchw.shape
    x = jnp.transpose(x_nchw, (0, 2, 3, 1))                       # NHWC
    x = x.reshape(B, H // patch, patch, W // patch, patch, C)
    x = jnp.transpose(x, (0, 1, 3, 2, 4, 5))
    x = x.reshape(B, (H // patch) * (W // patch), patch * patch * C)
    x = jnp.pad(x, ((0, 0), (0, 0), (0, pad_to - patch * patch * C)))
    return x.astype(jnp.bfloat16)


def _uniform(key, shape, fan_in):
    bound = 1.0 / (fan_in ** 0.5)
    return jax.random.uniform(key, shape, jnp.float32, -bound, bound)


def init_backbone_params(key):
    kw, kb = jax.random.split(key)
    w = _uniform(kw, (RAW_P, FEAT_DIM), RAW_P)
    w = jnp.pad(w, ((0, PAD_P - RAW_P), (0, 0)))                  # zero-padded K
    b = _uniform(kb, (1, FEAT_DIM), RAW_P)
    g = jnp.ones((1, FEAT_DIM), jnp.float32)
    beta = jnp.zeros((1, FEAT_DIM), jnp.float32)
    return w, b, g, beta


def stack_backbone_params(p_list):
    w3 = jnp.stack([p[0] for p in p_list]).astype(jnp.bfloat16)   # (3, PP, C)
    b3 = jnp.stack([p[1] for p in p_list])                        # (3, 1, C)
    g3 = jnp.stack([p[2] for p in p_list])
    beta3 = jnp.stack([p[3] for p in p_list])
    return w3, b3, g3, beta3


def init_head_params(key):
    k1, k2, k3, k4 = jax.random.split(key, 4)
    in_dim = 3 * FEAT_DIM
    w1 = _uniform(k1, (in_dim, HIDDEN), in_dim)
    b1 = _uniform(k2, (1, HIDDEN), in_dim)
    w2 = _uniform(k3, (HIDDEN, OUT), HIDDEN)
    b2 = _uniform(k4, (1, OUT), HIDDEN)
    # Repack: W1 as (3, 768, 128) bf16 slices (replaces the concat); W2 as a
    # (1, HIDDEN) row for the VPU lane-reduce (valid since OUT == 1).
    w1_3 = w1.reshape(3, FEAT_DIM, HIDDEN).astype(jnp.bfloat16)
    w2_t = w2.reshape(1, HIDDEN)
    return w1_3, b1, w2_t, b2


@functools.partial(jax.jit, static_argnums=())
def _forward(backbone_params, head_params, x_aesthetics, x_distortion,
             x_saliency):
    patches3 = jnp.stack([extract_patches(x_aesthetics),
                          extract_patches(x_distortion),
                          extract_patches(x_saliency)])           # (3, B, Np, PP)
    feats3 = swin_backbones(patches3, backbone_params)            # (3, B, C)
    return quality_head(feats3, head_params)                      # (B, 1)


class UIQAModelPallas:
    """Three backbones (aesthetics / distortion / saliency) + quality head."""

    def __init__(self, key):
        ka, kd, ks, kh = jax.random.split(key, 4)
        self.backbone_params = stack_backbone_params(
            [init_backbone_params(k) for k in (ka, kd, ks)])
        self.head_params = init_head_params(kh)

    def __call__(self, x_aesthetics, x_distortion, x_saliency):
        return _forward(self.backbone_params, self.head_params,
                        x_aesthetics, x_distortion, x_saliency)


# --------------------------------- main --------------------------------------

if __name__ == "__main__":
    key = jax.random.PRNGKey(0)
    kp, k1, k2, k3 = jax.random.split(key, 4)
    model = UIQAModelPallas(kp)

    B, C, H, W = 2, 3, 32, 32
    x_a = jax.random.normal(k1, (B, C, H, W), jnp.float32)
    x_d = jax.random.normal(k2, (B, C, H, W), jnp.float32)
    x_s = jax.random.normal(k3, (B, C, H, W), jnp.float32)

    out = model(x_a, x_d, x_s)
    out = jax.block_until_ready(out)
    assert out.shape == (B, 1) and out.dtype == jnp.float32
    print("KERNEL_OK")
</pallas_src>

<mosaic_0001>
module attributes {stable_mosaic.version = 11 : i64} {
  func.func @_backbone_kernel(%arg0: i32, %arg1: i32, %arg2: memref<1x2x64x128xbf16, #tpu.memory_space<vmem>>, %arg3: memref<1x128x768xbf16, #tpu.memory_space<vmem>>, %arg4: memref<1x1x768xf32, #tpu.memory_space<vmem>>, %arg5: memref<1x1x768xf32, #tpu.memory_space<vmem>>, %arg6: memref<1x1x768xf32, #tpu.memory_space<vmem>>, %arg7: memref<1x2x768xf32, #tpu.memory_space<vmem>>, %arg8: memref<2x768xf32, #tpu.memory_space<vmem>>) attributes {dimension_semantics = [#tpu.dimension_semantics<parallel>, #tpu.dimension_semantics<arbitrary>], iteration_bounds = array<i64: 3, 1>, scalar_prefetch = 0 : i64, scratch_operands = 1 : i64, tpu.core_type = #tpu.core_type<tc>, window_params = [{transform_indices = @transform_0, window_bounds = array<i64: 1, 2, 64, 128>}, {transform_indices = @transform_1, window_bounds = array<i64: 1, 128, 768>}, {transform_indices = @transform_2, window_bounds = array<i64: 1, 1, 768>}, {transform_indices = @transform_3, window_bounds = array<i64: 1, 1, 768>}, {transform_indices = @transform_4, window_bounds = array<i64: 1, 1, 768>}, {transform_indices = @transform_5, window_bounds = array<i64: 1, 2, 768>}]} {
    %c0_i32 = arith.constant 0 : i32
    %0 = arith.cmpi eq, %arg1, %c0_i32 : i32
    %1 = arith.extui %0 : i1 to i32
    %c0_i32_0 = arith.constant 0 : i32
    %2 = arith.cmpi ne, %1, %c0_i32_0 : i32
    scf.if %2 {
      %cst_28 = arith.constant 0.000000e+00 : f32
      %47 = vector.broadcast %cst_28 : f32 to vector<2x768xf32>
      %c0_29 = arith.constant 0 : index
      %c0_30 = arith.constant 0 : index
      %48 = vector.load %arg8[%c0_29, %c0_30] : memref<2x768xf32, #tpu.memory_space<vmem>>, vector<2x768xf32>
      tpu.vector_store %arg8[%c0_29, %c0_30], %47 {strides = array<i32>} : memref<2x768xf32, #tpu.memory_space<vmem>>, vector<2x768xf32>,
    } else {
    }
    %c0 = arith.constant 0 : index
    %c0_1 = arith.constant 0 : index
    %c0_2 = arith.constant 0 : index
    %c0_3 = arith.constant 0 : index
    %3 = vector.load %arg2[%c0, %c0_1, %c0_2, %c0_3] : memref<1x2x64x128xbf16, #tpu.memory_space<vmem>>, vector<1x2x64x128xbf16>
    %4 = vector.shape_cast %3 : vector<1x2x64x128xbf16> to vector<2x64x128xbf16>
    %5 = vector.shape_cast %4 : vector<2x64x128xbf16> to vector<128x128xbf16>
    %c0_4 = arith.constant 0 : index
    %c0_5 = arith.constant 0 : index
    %c0_6 = arith.constant 0 : index
    %6 = vector.load %arg3[%c0_4, %c0_5, %c0_6] : memref<1x128x768xbf16, #tpu.memory_space<vmem>>, vector<1x128x768xbf16>
    %7 = vector.shape_cast %6 : vector<1x128x768xbf16> to vector<128x768xbf16>
    %cst = arith.constant dense<0.000000e+00> : vector<128x768xf32>
    %8 = tpu.matmul %5, %7, %cst {dimension_numbers = #tpu.dot_dimension_numbers<[1], [0], [0], [1], [0, 0, 1, 1], [], []>} : vector<128x128xbf16>, vector<128x768xbf16>, vector<128x768xf32> -> vector<128x768xf32>
    %c0_7 = arith.constant 0 : index
    %c0_8 = arith.constant 0 : index
    %c0_9 = arith.constant 0 : index
    %9 = vector.load %arg4[%c0_7, %c0_8, %c0_9] : memref<1x1x768xf32, #tpu.memory_space<vmem>>, vector<1x1x768xf32>
    %10 = vector.shape_cast %9 : vector<1x1x768xf32> to vector<1x768xf32>
    %11 = vector.broadcast %10 : vector<1x768xf32> to vector<128x768xf32>
    %12 = arith.addf %8, %11 : vector<128x768xf32>
    %cst_10 = arith.constant dense<0.000000e+00> : vector<128xf32>
    %13 = vector.multi_reduction <add>, %12, %cst_10 [1] : vector<128x768xf32> to vector<128xf32>
    %14 = vector.shape_cast %13 : vector<128xf32> to vector<128x1xf32>
    %15 = arith.mulf %12, %12 : vector<128x768xf32>
    %cst_11 = arith.constant dense<0.000000e+00> : vector<128xf32>
    %16 = vector.multi_reduction <add>, %15, %cst_11 [1] : vector<128x768xf32> to vector<128xf32>
    %17 = vector.shape_cast %16 : vector<128xf32> to vector<128x1xf32>
    %cst_12 = arith.constant 0.00130208337 : f32
    %18 = vector.broadcast %cst_12 : f32 to vector<128x1xf32>
    %19 = arith.mulf %14, %18 : vector<128x1xf32>
    %cst_13 = arith.constant 0.00130208337 : f32
    %20 = vector.broadcast %cst_13 : f32 to vector<128x1xf32>
    %21 = arith.mulf %17, %20 : vector<128x1xf32>
    %22 = arith.mulf %19, %19 : vector<128x1xf32>
    %23 = arith.subf %21, %22 : vector<128x1xf32>
    %24 = vector.broadcast %19 : vector<128x1xf32> to vector<128x768xf32>
    %25 = arith.subf %12, %24 : vector<128x768xf32>
    %cst_14 = arith.constant 9.99999974E-6 : f32
    %26 = vector.broadcast %cst_14 : f32 to vector<128x1xf32>
    %27 = arith.addf %23, %26 : vector<128x1xf32>
    %28 = math.rsqrt %27 : vector<128x1xf32>
    %29 = vector.broadcast %28 : vector<128x1xf32> to vector<128x768xf32>
    %30 = arith.mulf %25, %29 : vector<128x768xf32>
    %c0_15 = arith.constant 0 : index
    %c0_16 = arith.constant 0 : index
    %c0_17 = arith.constant 0 : index
    %31 = vector.load %arg5[%c0_15, %c0_16, %c0_17] : memref<1x1x768xf32, #tpu.memory_space<vmem>>, vector<1x1x768xf32>
    %32 = vector.shape_cast %31 : vector<1x1x768xf32> to vector<1x768xf32>
    %33 = vector.broadcast %32 : vector<1x768xf32> to vector<128x768xf32>
    %34 = arith.mulf %30, %33 : vector<128x768xf32>
    %c0_18 = arith.constant 0 : index
    %c0_19 = arith.constant 0 : index
    %c0_20 = arith.constant 0 : index
    %35 = vector.load %arg6[%c0_18, %c0_19, %c0_20] : memref<1x1x768xf32, #tpu.memory_space<vmem>>, vector<1x1x768xf32>
    %36 = vector.shape_cast %35 : vector<1x1x768xf32> to vector<1x768xf32>
    %37 = vector.broadcast %36 : vector<1x768xf32> to vector<128x768xf32>
    %38 = arith.addf %34, %37 : vector<128x768xf32>
    %c0_21 = arith.constant 0 : index
    %c0_22 = arith.constant 0 : index
    %39 = vector.load %arg8[%c0_21, %c0_22] : memref<2x768xf32, #tpu.memory_space<vmem>>, vector<2x768xf32>
    %40 = vector.shape_cast %38 : vector<128x768xf32> to vector<2x64x768xf32>
    %cst_23 = arith.constant dense<0.000000e+00> : vector<2x768xf32>
    %41 = vector.multi_reduction <add>, %40, %cst_23 [1] : vector<2x64x768xf32> to vector<2x768xf32>
    %42 = arith.addf %39, %41 : vector<2x768xf32>
    %c0_24 = arith.constant 0 : index
    %c0_25 = arith.constant 0 : index
    %43 = vector.load %arg8[%c0_24, %c0_25] : memref<2x768xf32, #tpu.memory_space<vmem>>, vector<2x768xf32>
    tpu.vector_store %arg8[%c0_24, %c0_25], %42 {strides = array<i32>} : memref<2x768xf32, #tpu.memory_space<vmem>>, vector<2x768xf32>,
    %c0_i32_26 = arith.constant 0 : i32
    %44 = arith.cmpi eq, %arg1, %c0_i32_26 : i32
    %45 = arith.extui %44 : i1 to i32
    %c0_i32_27 = arith.constant 0 : i32
    %46 = arith.cmpi ne, %45, %c0_i32_27 : i32
    scf.if %46 {
      %c0_28 = arith.constant 0 : index
      %c0_29 = arith.constant 0 : index
      %47 = vector.load %arg8[%c0_28, %c0_29] : memref<2x768xf32, #tpu.memory_space<vmem>>, vector<2x768xf32>
      %cst_30 = arith.constant 1.562500e-02 : f32
      %48 = vector.broadcast %cst_30 : f32 to vector<2x768xf32>
      %49 = arith.mulf %47, %48 : vector<2x768xf32>
      %c0_31 = arith.constant 0 : index
      %c0_32 = arith.constant 0 : index
      %c0_33 = arith.constant 0 : index
      %50 = vector.load %arg7[%c0_31, %c0_32, %c0_33] : memref<1x2x768xf32, #tpu.memory_space<vmem>>, vector<1x2x768xf32>
      %51 = vector.shape_cast %50 : vector<1x2x768xf32> to vector<2x768xf32>
      %52 = vector.shape_cast %49 : vector<2x768xf32> to vector<1x2x768xf32>
      tpu.vector_store %arg7[%c0_31, %c0_32, %c0_33], %52 {strides = array<i32>} : memref<1x2x768xf32, #tpu.memory_space<vmem>>, vector<1x2x768xf32>,
    } else {
    }
    return
  }
  func.func @transform_0(%arg0: i32, %arg1: i32) -> (i32, i32, i32, i32) {
    %c0_i32 = arith.constant 0 : i32
    %c0_i32_0 = arith.constant 0 : i32
    %c0_i32_1 = arith.constant 0 : i32
    return %arg0, %c0_i32, %arg1, %c0_i32_0 : i32, i32, i32, i32
  }
  func.func @transform_1(%arg0: i32, %arg1: i32) -> (i32, i32, i32) {
    %c0_i32 = arith.constant 0 : i32
    %c0_i32_0 = arith.constant 0 : i32
    %c0_i32_1 = arith.constant 0 : i32
    return %arg0, %c0_i32, %c0_i32_0 : i32, i32, i32
  }
  func.func @transform_2(%arg0: i32, %arg1: i32) -> (i32, i32, i32) {
    %c0_i32 = arith.constant 0 : i32
    %c0_i32_0 = arith.constant 0 : i32
    %c0_i32_1 = arith.constant 0 : i32
    return %arg0, %c0_i32, %c0_i32_0 : i32, i32, i32
  }
  func.func @transform_3(%arg0: i32, %arg1: i32) -> (i32, i32, i32) {
    %c0_i32 = arith.constant 0 : i32
    %c0_i32_0 = arith.constant 0 : i32
    %c0_i32_1 = arith.constant 0 : i32
    return %arg0, %c0_i32, %c0_i32_0 : i32, i32, i32
  }
  func.func @transform_4(%arg0: i32, %arg1: i32) -> (i32, i32, i32) {
    %c0_i32 = arith.constant 0 : i32
    %c0_i32_0 = arith.constant 0 : i32
    %c0_i32_1 = arith.constant 0 : i32
    return %arg0, %c0_i32, %c0_i32_0 : i32, i32, i32
  }
  func.func @transform_5(%arg0: i32, %arg1: i32) -> (i32, i32, i32) {
    %c0_i32 = arith.constant 0 : i32
    %c0_i32_0 = arith.constant 0 : i32
    %c0_i32_1 = arith.constant 0 : i32
    return %arg0, %c0_i32, %c0_i32_0 : i32, i32, i32
  }
}

module attributes {stable_mosaic.version = 11 : i64} {
  func.func @_quality_head_kernel(%arg0: i32, %arg1: memref<3x2x768xf32, #tpu.memory_space<vmem>>, %arg2: memref<3x768x128xbf16, #tpu.memory_space<vmem>>, %arg3: memref<1x128xf32, #tpu.memory_space<vmem>>, %arg4: memref<1x128xf32, #tpu.memory_space<vmem>>, %arg5: memref<1x1xf32, #tpu.memory_space<vmem>>, %arg6: memref<2x1xf32, #tpu.memory_space<vmem>>) attributes {dimension_semantics = [#tpu.dimension_semantics<arbitrary>], iteration_bounds = array<i64: 1>, scalar_prefetch = 0 : i64, scratch_operands = 0 : i64, tpu.core_type = #tpu.core_type<tc>, window_params = [{pipeline_mode = #tpu.pipeline_mode<synchronous>, transform_indices = @transform_0, window_bounds = array<i64: 3, 2, 768>}, {pipeline_mode = #tpu.pipeline_mode<synchronous>, transform_indices = @transform_1, window_bounds = array<i64: 3, 768, 128>}, {pipeline_mode = #tpu.pipeline_mode<synchronous>, transform_indices = @transform_2, window_bounds = array<i64: 1, 128>}, {pipeline_mode = #tpu.pipeline_mode<synchronous>, transform_indices = @transform_3, window_bounds = array<i64: 1, 128>}, {pipeline_mode = #tpu.pipeline_mode<synchronous>, transform_indices = @transform_4, window_bounds = array<i64: 1, 1>}, {pipeline_mode = #tpu.pipeline_mode<synchronous>, transform_indices = @transform_5, window_bounds = array<i64: 2, 1>}]} {
    %c0 = arith.constant 0 : index
    %c0_0 = arith.constant 0 : index
    %c0_1 = arith.constant 0 : index
    %0 = vector.load %arg1[%c0, %c0_0, %c0_1] : memref<3x2x768xf32, #tpu.memory_space<vmem>>, vector<3x2x768xf32>
    %1 = arith.truncf %0 : vector<3x2x768xf32> to vector<3x2x768xbf16>
    %c0_2 = arith.constant 0 : index
    %c0_3 = arith.constant 0 : index
    %c0_4 = arith.constant 0 : index
    %2 = vector.load %arg2[%c0_2, %c0_3, %c0_4] : memref<3x768x128xbf16, #tpu.memory_space<vmem>>, vector<3x768x128xbf16>
    %3 = vector.extract_strided_slice %1 {offsets = [0, 0, 0], sizes = [1, 2, 768], strides = [1, 1, 1]} : vector<3x2x768xbf16> to vector<1x2x768xbf16>
    %4 = vector.shape_cast %3 : vector<1x2x768xbf16> to vector<2x768xbf16>
    %5 = vector.extract_strided_slice %2 {offsets = [0, 0, 0], sizes = [1, 768, 128], strides = [1, 1, 1]} : vector<3x768x128xbf16> to vector<1x768x128xbf16>
    %6 = vector.shape_cast %5 : vector<1x768x128xbf16> to vector<768x128xbf16>
    %cst = arith.constant dense<0.000000e+00> : vector<2x128xf32>
    %7 = tpu.matmul %4, %6, %cst {dimension_numbers = #tpu.dot_dimension_numbers<[1], [0], [0], [1], [0, 0, 1, 1], [], []>} : vector<2x768xbf16>, vector<768x128xbf16>, vector<2x128xf32> -> vector<2x128xf32>
    %8 = vector.extract_strided_slice %1 {offsets = [1, 0, 0], sizes = [1, 2, 768], strides = [1, 1, 1]} : vector<3x2x768xbf16> to vector<1x2x768xbf16>
    %9 = vector.shape_cast %8 : vector<1x2x768xbf16> to vector<2x768xbf16>
    %10 = vector.extract_strided_slice %2 {offsets = [1, 0, 0], sizes = [1, 768, 128], strides = [1, 1, 1]} : vector<3x768x128xbf16> to vector<1x768x128xbf16>
    %11 = vector.shape_cast %10 : vector<1x768x128xbf16> to vector<768x128xbf16>
    %cst_5 = arith.constant dense<0.000000e+00> : vector<2x128xf32>
    %12 = tpu.matmul %9, %11, %cst_5 {dimension_numbers = #tpu.dot_dimension_numbers<[1], [0], [0], [1], [0, 0, 1, 1], [], []>} : vector<2x768xbf16>, vector<768x128xbf16>, vector<2x128xf32> -> vector<2x128xf32>
    %13 = arith.addf %7, %12 : vector<2x128xf32>
    %14 = vector.extract_strided_slice %1 {offsets = [2, 0, 0], sizes = [1, 2, 768], strides = [1, 1, 1]} : vector<3x2x768xbf16> to vector<1x2x768xbf16>
    %15 = vector.shape_cast %14 : vector<1x2x768xbf16> to vector<2x768xbf16>
    %16 = vector.extract_strided_slice %2 {offsets = [2, 0, 0], sizes = [1, 768, 128], strides = [1, 1, 1]} : vector<3x768x128xbf16> to vector<1x768x128xbf16>
    %17 = vector.shape_cast %16 : vector<1x768x128xbf16> to vector<768x128xbf16>
    %cst_6 = arith.constant dense<0.000000e+00> : vector<2x128xf32>
    %18 = tpu.matmul %15, %17, %cst_6 {dimension_numbers = #tpu.dot_dimension_numbers<[1], [0], [0], [1], [0, 0, 1, 1], [], []>} : vector<2x768xbf16>, vector<768x128xbf16>, vector<2x128xf32> -> vector<2x128xf32>
    %19 = arith.addf %13, %18 : vector<2x128xf32>
    %c0_7 = arith.constant 0 : index
    %c0_8 = arith.constant 0 : index
    %20 = vector.load %arg3[%c0_7, %c0_8] : memref<1x128xf32, #tpu.memory_space<vmem>>, vector<1x128xf32>
    %21 = vector.broadcast %20 : vector<1x128xf32> to vector<2x128xf32>
    %22 = arith.addf %19, %21 : vector<2x128xf32>
    %c0_9 = arith.constant 0 : index
    %c0_10 = arith.constant 0 : index
    %23 = vector.load %arg4[%c0_9, %c0_10] : memref<1x128xf32, #tpu.memory_space<vmem>>, vector<1x128xf32>
    %24 = vector.broadcast %23 : vector<1x128xf32> to vector<2x128xf32>
    %25 = arith.mulf %22, %24 : vector<2x128xf32>
    %cst_11 = arith.constant dense<0.000000e+00> : vector<2xf32>
    %26 = vector.multi_reduction <add>, %25, %cst_11 [1] : vector<2x128xf32> to vector<2xf32>
    %27 = vector.shape_cast %26 : vector<2xf32> to vector<2x1xf32>
    %c0_12 = arith.constant 0 : index
    %c0_13 = arith.constant 0 : index
    %28 = vector.load %arg5[%c0_12, %c0_13] : memref<1x1xf32, #tpu.memory_space<vmem>>, vector<1x1xf32>
    %29 = vector.broadcast %28 : vector<1x1xf32> to vector<2x1xf32>
    %30 = arith.addf %27, %29 : vector<2x1xf32>
    %c0_14 = arith.constant 0 : index
    %c0_15 = arith.constant 0 : index
    %31 = vector.load %arg6[%c0_14, %c0_15] : memref<2x1xf32, #tpu.memory_space<vmem>>, vector<2x1xf32>
    tpu.vector_store %arg6[%c0_14, %c0_15], %30 {strides = array<i32>} : memref<2x1xf32, #tpu.memory_space<vmem>>, vector<2x1xf32>,
    return
  }
  func.func @transform_0(%arg0: i32) -> (i32, i32, i32) {
    %c0_i32 = arith.constant 0 : i32
    %c0_i32_0 = arith.constant 0 : i32
    %c0_i32_1 = arith.constant 0 : i32
    %c0_i32_2 = arith.constant 0 : i32
    return %c0_i32, %c0_i32_0, %c0_i32_1 : i32, i32, i32
  }
  func.func @transform_1(%arg0: i32) -> (i32, i32, i32) {
    %c0_i32 = arith.constant 0 : i32
    %c0_i32_0 = arith.constant 0 : i32
    %c0_i32_1 = arith.constant 0 : i32
    %c0_i32_2 = arith.constant 0 : i32
    return %c0_i32, %c0_i32_0, %c0_i32_1 : i32, i32, i32
  }
  func.func @transform_2(%arg0: i32) -> (i32, i32) {
    %c0_i32 = arith.constant 0 : i32
    %c0_i32_0 = arith.constant 0 : i32
    %c0_i32_1 = arith.constant 0 : i32
    return %c0_i32, %c0_i32_0 : i32, i32
  }
  func.func @transform_3(%arg0: i32) -> (i32, i32) {
    %c0_i32 = arith.constant 0 : i32
    %c0_i32_0 = arith.constant 0 : i32
    %c0_i32_1 = arith.constant 0 : i32
    return %c0_i32, %c0_i32_0 : i32, i32
  }
  func.func @transform_4(%arg0: i32) -> (i32, i32) {
    %c0_i32 = arith.constant 0 : i32
    %c0_i32_0 = arith.constant 0 : i32
    %c0_i32_1 = arith.constant 0 : i32
    return %c0_i32, %c0_i32_0 : i32, i32
  }
  func.func @transform_5(%arg0: i32) -> (i32, i32) {
    %c0_i32 = arith.constant 0 : i32
    %c0_i32_0 = arith.constant 0 : i32
    %c0_i32_1 = arith.constant 0 : i32
    return %c0_i32, %c0_i32_0 : i32, i32
  }
}

</mosaic_0001>

<llo_original>
// kernel: _forward.2
$region0: #{_forward.2}
  #allocation0 [shape = 'u32[]', space=smem, size = 0x4, offset = 0x4, fixed_abs, tag = 'smem constant byte address 0x4 - core index']
  #allocation1 [shape = 'u32[144,128]{1,0:T(1,128)}', space=vmem, size = 0x12000, scoped, tag = 'internal scratch']
  #allocation2 [shape = 'f32[2,768]{1,0:T(2,128)}', space=vmem, size = 0x1800, scoped, tag = 'scratch operand']
  %s0 = inlined_call_operand.vmem [shape: bf16[3,2,64,128], index: 0, kind: input, shape index: {}]
  %s1 = inlined_call_operand.vmem [shape: bf16[3,128,768], index: 1, kind: input, shape index: {}]
  %s2 = inlined_call_operand.vmem [shape: f32[3,1,768], index: 2, kind: input, shape index: {}]
  %s3 = inlined_call_operand.vmem [shape: f32[3,1,768], index: 3, kind: input, shape index: {}]
  %s4 = inlined_call_operand.vmem [shape: f32[3,1,768], index: 4, kind: input, shape index: {}]
  %s5 = inlined_call_operand.vmem [shape: f32[3,2,768], index: 5, kind: output, shape index: {}]
  %s6 = sld [smem:[#allocation0]]
  $region61: #{_forward.2} parent=0
    _
  %s8 = ssub.s32 1, %s6
  %s9 = scalar_select 0, %s8, %s6
  loop: start=0, step=1, limit=5
  $region2: #{_forward.2} parent=0 // loop_pre_header
    _
  $region3: #{_forward.2} parent=0 // loop_header
    %s11 = sphi 0, %s15
    %p12 = scmp.ge.s32.totalorder %s11, 5
    %s18 = sphi 0, %s30
    %s19 = sphi 0, %s26
    %s20 = sphi 0, %s18
    %s21 = sphi 0, %s19
    %s22 = sphi 0, %s20
    %s23 = sphi 0, %s21
    %s35 = sphi 0, %s37
    %s38 = sphi 0, %s35
    %s39 = sphi 0, %s38
    %s55 = sphi 0, %s39
    %s61 = sphi 0, %s63
    %s64 = sphi 0, %s61
    %s65 = sphi 0, %s64
    %s81 = sphi 0, %s65
    %s87 = sphi 0, %s89
    %s90 = sphi 0, %s87
    %s91 = sphi 0, %s90
    %s107 = sphi 0, %s91
    %s113 = sphi 0, %s115
    %s116 = sphi 0, %s113
    %s117 = sphi 0, %s116
    %s133 = sphi 0, %s117
    %s139 = sphi 0, %s141
    %s142 = sphi 0, %s139
    %s143 = sphi 0, %s142
    %s159 = sphi 0, %s143
    %s165 = sphi 0, %s167
    %s168 = sphi 0, %s165
    %s169 = sphi 0, %s168
    %s185 = sphi 0, %s169
  $region4: #{_forward.2} parent=0 // loop_header_branch
    %14 = sbr.rel (%p12) target = $region8
  $region5: #{_forward.2} parent=0 // loop_body
    %s16 = ssub.s32 %s11, 1
    %s17 = ssub.s32 %s11, 2
    %s24 = sadd.s32 1, %s19
    %p25 = scmp.ge.s32.totalorder %s24, 1
    %s26 = scalar_select %p25, 0, %s24
    %s27 = sadd.s32 1, %s18
    %s28 = scalar_select %p25, %s27, %s18
    %p29 = scmp.ge.s32.totalorder %s28, 3
    %s30 = scalar_select %p29, 0, %s28
    %s31 = ssub.s32 %s18, %s30
    %s32 = ssub.s32 %s19, %s26
    %s33 = sor.u32 %s31, %s32
    %p34 = scmp.eq.s32.totalorder %s33, 0
    %s36 = sadd.s32 %s35, 1
    %s37 = scalar_select %p34, %s35, %s36
    %p40 = pneg %p34
    %p41 = scmp.eq.s32.totalorder %s11, 2
    %p42 = por %p40, %p41
    %p43 = scmp.ne.s32.totalorder %s35, %s38
    %p44 = scmp.eq.s32.totalorder %s11, 0
    %p45 = por %p43, %p44
    %p46 = scmp.ne.s32.totalorder %s35, %s38
    %p47 = scmp.eq.s32.totalorder %s16, 2
    %p48 = por %p46, %p47
    %p49 = scmp.ne.s32.totalorder %s38, %s39
    %p50 = scmp.eq.s32.totalorder %s16, 0
    %p51 = por %p49, %p50
    %p52 = scmp.ne.s32.totalorder %s38, %s39
    %p53 = scmp.eq.s32.totalorder %s17, 2
    %p54 = por %p52, %p53
    %p56 = scmp.ne.s32.totalorder %s39, %s55
    %p57 = scmp.eq.s32.totalorder %s17, 0
    %p58 = por %p56, %p57
    %s59 = ssub.s32 %s18, %s30
    %p60 = scmp.eq.s32.totalorder %s59, 0
    %s62 = sadd.s32 %s61, 1
    %s63 = scalar_select %p60, %s61, %s62
    %p66 = pneg %p60
    %p67 = scmp.eq.s32.totalorder %s11, 2
    %p68 = por %p66, %p67
    %p69 = scmp.ne.s32.totalorder %s61, %s64
    %p70 = scmp.eq.s32.totalorder %s11, 0
    %p71 = por %p69, %p70
    %p72 = scmp.ne.s32.totalorder %s61, %s64
    %p73 = scmp.eq.s32.totalorder %s16, 2
    %p74 = por %p72, %p73
    %p75 = scmp.ne.s32.totalorder %s64, %s65
    %p76 = scmp.eq.s32.totalorder %s16, 0
    %p77 = por %p75, %p76
    %p78 = scmp.ne.s32.totalorder %s64, %s65
    %p79 = scmp.eq.s32.totalorder %s17, 2
    %p80 = por %p78, %p79
    %p82 = scmp.ne.s32.totalorder %s65, %s81
    %p83 = scmp.eq.s32.totalorder %s17, 0
    %p84 = por %p82, %p83
    %s85 = ssub.s32 %s18, %s30
    %p86 = scmp.eq.s32.totalorder %s85, 0
    %s88 = sadd.s32 %s87, 1
    %s89 = scalar_select %p86, %s87, %s88
    %p92 = pneg %p86
    %p93 = scmp.eq.s32.totalorder %s11, 2
    %p94 = por %p92, %p93
    %p95 = scmp.ne.s32.totalorder %s87, %s90
    %p96 = scmp.eq.s32.totalorder %s11, 0
    %p97 = por %p95, %p96
    %p98 = scmp.ne.s32.totalorder %s87, %s90
    %p99 = scmp.eq.s32.totalorder %s16, 2
    %p100 = por %p98, %p99
    %p101 = scmp.ne.s32.totalorder %s90, %s91
    %p102 = scmp.eq.s32.totalorder %s16, 0
    %p103 = por %p101, %p102
    %p104 = scmp.ne.s32.totalorder %s90, %s91
    %p105 = scmp.eq.s32.totalorder %s17, 2
    %p106 = por %p104, %p105
    %p108 = scmp.ne.s32.totalorder %s91, %s107
    %p109 = scmp.eq.s32.totalorder %s17, 0
    %p110 = por %p108, %p109
    %s111 = ssub.s32 %s18, %s30
    %p112 = scmp.eq.s32.totalorder %s111, 0
    %s114 = sadd.s32 %s113, 1
    %s115 = scalar_select %p112, %s113, %s114
    %p118 = pneg %p112
    %p119 = scmp.eq.s32.totalorder %s11, 2
    %p120 = por %p118, %p119
    %p121 = scmp.ne.s32.totalorder %s113, %s116
    %p122 = scmp.eq.s32.totalorder %s11, 0
    %p123 = por %p121, %p122
    %p124 = scmp.ne.s32.totalorder %s113, %s116
    %p125 = scmp.eq.s32.totalorder %s16, 2
    %p126 = por %p124, %p125
    %p127 = scmp.ne.s32.totalorder %s116, %s117
    %p128 = scmp.eq.s32.totalorder %s16, 0
    %p129 = por %p127, %p128
    %p130 = scmp.ne.s32.totalorder %s116, %s117
    %p131 = scmp.eq.s32.totalorder %s17, 2
    %p132 = por %p130, %p131
    %p134 = scmp.ne.s32.totalorder %s117, %s133
    %p135 = scmp.eq.s32.totalorder %s17, 0
    %p136 = por %p134, %p135
    %s137 = ssub.s32 %s18, %s30
    %p138 = scmp.eq.s32.totalorder %s137, 0
    %s140 = sadd.s32 %s139, 1
    %s141 = scalar_select %p138, %s139, %s140
    %p144 = pneg %p138
    %p145 = scmp.eq.s32.totalorder %s11, 2
    %p146 = por %p144, %p145
    %p147 = scmp.ne.s32.totalorder %s139, %s142
    %p148 = scmp.eq.s32.totalorder %s11, 0
    %p149 = por %p147, %p148
    %p150 = scmp.ne.s32.totalorder %s139, %s142
    %p151 = scmp.eq.s32.totalorder %s16, 2
    %p152 = por %p150, %p151
    %p153 = scmp.ne.s32.totalorder %s142, %s143
    %p154 = scmp.eq.s32.totalorder %s16, 0
    %p155 = por %p153, %p154
    %p156 = scmp.ne.s32.totalorder %s142, %s143
    %p157 = scmp.eq.s32.totalorder %s17, 2
    %p158 = por %p156, %p157
    %p160 = scmp.ne.s32.totalorder %s143, %s159
    %p161 = scmp.eq.s32.totalorder %s17, 0
    %p162 = por %p160, %p161
    %s163 = ssub.s32 %s18, %s30
    %p164 = scmp.eq.s32.totalorder %s163, 0
    %s166 = sadd.s32 %s165, 1
    %s167 = scalar_select %p164, %s165, %s166
    %p170 = pneg %p164
    %p171 = scmp.eq.s32.totalorder %s11, 2
    %p172 = por %p170, %p171
    %p173 = scmp.ne.s32.totalorder %s165, %s168
    %p174 = scmp.eq.s32.totalorder %s11, 0
    %p175 = por %p173, %p174
    %p176 = scmp.ne.s32.totalorder %s165, %s168
    %p177 = scmp.eq.s32.totalorder %s16, 2
    %p178 = por %p176, %p177
    %p179 = scmp.ne.s32.totalorder %s168, %s169
    %p180 = scmp.eq.s32.totalorder %s16, 0
    %p181 = por %p179, %p180
    %p182 = scmp.ne.s32.totalorder %s168, %s169
    %p183 = scmp.eq.s32.totalorder %s17, 2
    %p184 = por %p182, %p183
    %p186 = scmp.ne.s32.totalorder %s169, %s185
    %p187 = scmp.eq.s32.totalorder %s17, 0
    %p188 = por %p186, %p187
    %p189 = scmp.le.s32.totalorder 1, %s11
    %p190 = scmp.lt.s32.totalorder %s11, 4
    %p191 = pnand %p189, %p190
    %p192 = pneg %p191
    // Predicated region
    $region9: #{_forward.2} parent=5 // pred_check
      _
    $region10: #{_forward.2} parent=5 // pred_check_branch
      %194 = sbr.rel (%p191) target = $region12
    $region11: #{_forward.2} parent=5 // pred_region
      %s195 = ssub.s32 %s11, 1
    $region12: #{_forward.2} parent=5 // pred_fallthru
      _
    %p196 = scmp.lt.s32.totalorder %s11, 3
    // Predicated region
    $region13: #{_forward.2} parent=5 // pred_check
      %p197 = pneg %p196
    $region14: #{_forward.2} parent=5 // pred_check_branch
      %199 = sbr.rel (%p197) target = $region16
    $region15: #{_forward.2} parent=5 // pred_region
      // Predicated region
      $region17: #{_forward.2} parent=15 // pred_check
        %p200 = pneg %p45
      $region18: #{_forward.2} parent=15 // pred_check_branch
        %202 = sbr.rel (%p200) target = $region20
      $region19: #{_forward.2} parent=15 // pred_region
        %s203 = smul.u32 8, %s19
        %p204 = scmp.lt.s32.totalorder %s18, 2
        %s205 = scalar_select %p204, %s18, 2
        %p206 = scmp.lt.s32.totalorder %s203, 7
        %s207 = scalar_select %p206, %s203, 7
        %s208 = smul.addr %s205, 16
        %s209 = sadd.s32 %s207, %s208
        %s210 = smul.addr %s209, 4
        %s211 = scalar_lea.vmem %s0, %s210
        %s212 = smul.u32 8, %s19
      $region20: #{_forward.2} parent=15 // pred_fallthru
        _
      // Predicated region
      $region21: #{_forward.2} parent=15 // pred_check
        %p213 = pneg %p71
      $region22: #{_forward.2} parent=15 // pred_check_branch
        %215 = sbr.rel (%p213) target = $region24
      $region23: #{_forward.2} parent=15 // pred_region
        %p216 = scmp.lt.s32.totalorder %s18, 2
        %s217 = scalar_select %p216, %s18, 2
        %s218 = smul.addr %s217, 96
        %s219 = smul.addr %s218, 4
        %s220 = scalar_lea.vmem %s1, %s219
      $region24: #{_forward.2} parent=15 // pred_fallthru
        _
      // Predicated region
      $region25: #{_forward.2} parent=15 // pred_check
        %p221 = pneg %p97
      $region26: #{_forward.2} parent=15 // pred_check_branch
        %223 = sbr.rel (%p221) target = $region28
      $region27: #{_forward.2} parent=15 // pred_region
        %p224 = scmp.lt.s32.totalorder %s18, 2
        %s225 = scalar_select %p224, %s18, 2
        %s226 = smul.addr %s225, 6
        %s227 = scalar_lea.vmem %s2, %s226
      $region28: #{_forward.2} parent=15 // pred_fallthru
        _
      // Predicated region
      $region29: #{_forward.2} parent=15 // pred_check
        %p228 = pneg %p123
      $region30: #{_forward.2} parent=15 // pred_check_branch
        %230 = sbr.rel (%p228) target = $region32
      $region31: #{_forward.2} parent=15 // pred_region
        %p231 = scmp.lt.s32.totalorder %s18, 2
        %s232 = scalar_select %p231, %s18, 2
        %s233 = smul.addr %s232, 6
        %s234 = scalar_lea.vmem %s3, %s233
      $region32: #{_forward.2} parent=15 // pred_fallthru
        _
      // Predicated region
      $region33: #{_forward.2} parent=15 // pred_check
        %p235 = pneg %p149
      $region34: #{_forward.2} parent=15 // pred_check_branch
        %237 = sbr.rel (%p235) target = $region36
      $region35: #{_forward.2} parent=15 // pred_region
        %p238 = scmp.lt.s32.totalorder %s18, 2
        %s239 = scalar_select %p238, %s18, 2
        %s240 = smul.addr %s239, 6
        %s241 = scalar_lea.vmem %s4, %s240
      $region36: #{_forward.2} parent=15 // pred_fallthru
        _
    $region16: #{_forward.2} parent=5 // pred_fallthru
      _
    %p242 = scmp.le.s32.totalorder 1, %s11
    %p243 = scmp.lt.s32.totalorder %s11, 4
    %p244 = pnand %p242, %p243
    %p245 = pneg %p244
    // Predicated region
    $region37: #{_forward.2} parent=5 // pred_check
      _
    $region38: #{_forward.2} parent=5 // pred_check_branch
      %247 = sbr.rel (%p244) target = $region40
    $region39: #{_forward.2} parent=5 // pred_region
      %s248 = ssub.s32 %s11, 1
      %s249 = smul.u32 8, %s21
      %p250 = scmp.lt.s32.totalorder %s20, 2
      %s251 = scalar_select %p250, %s20, 2
      %p252 = scmp.lt.s32.totalorder %s249, 7
      %s253 = scalar_select %p252, %s249, 7
      %s254 = smul.addr %s251, 16
      %s255 = sadd.s32 %s253, %s254
      %s256 = smul.addr %s255, 4
      %s257 = scalar_lea.vmem %s0, %s256
      %p258 = pneg %p51
      %p259 = pneg %p48
      %p260 = scmp.lt.s32.totalorder %s20, 2
      %s261 = scalar_select %p260, %s20, 2
      %s262 = smul.addr %s261, 96
      %s263 = smul.addr %s262, 4
      %s264 = scalar_lea.vmem %s1, %s263
      %p265 = pneg %p77
      %p266 = pneg %p74
      %p267 = scmp.lt.s32.totalorder %s20, 2
      %s268 = scalar_select %p267, %s20, 2
      %s269 = smul.addr %s268, 6
      %s270 = scalar_lea.vmem %s2, %s269
      %p271 = pneg %p103
      %p272 = pneg %p100
      %p273 = scmp.lt.s32.totalorder %s20, 2
      %s274 = scalar_select %p273, %s20, 2
      %s275 = smul.addr %s274, 6
      %s276 = scalar_lea.vmem %s3, %s275
      %p277 = pneg %p129
      %p278 = pneg %p126
      %p279 = scmp.lt.s32.totalorder %s20, 2
      %s280 = scalar_select %p279, %s20, 2
      %s281 = smul.addr %s280, 6
      %s282 = scalar_lea.vmem %s4, %s281
      %p283 = pneg %p155
      %p284 = pneg %p152
      %p285 = pneg %p181
      %p286 = pneg %p178
      %p287 = scmp.lt.s32.totalorder %s20, 2
      %s288 = scalar_select %p287, %s20, 2
      %s289 = smul.addr %s288, 6
      %s290 = smul.addr %s289, 2
      %s291 = scalar_lea.vmem %s5, %s290
      %s292 = smul.u32 8, %s21
      %p293 = scmp.lt.s32.totalorder %s20, 2
      %s294 = scalar_select %p293, %s20, 2
      %p295 = scmp.lt.s32.totalorder %s292, 7
      %s296 = scalar_select %p295, %s292, 7
      %s297 = smul.addr %s294, 16
      %s298 = sadd.s32 %s296, %s297
      %s299 = smul.addr %s298, 4
      %s300 = scalar_lea.vmem %s0, %s299
      %s301 = smul.u32 8, %s21
      %p302 = scmp.lt.s32.totalorder %s20, 2
      %s303 = scalar_select %p302, %s20, 2
      %s304 = smul.addr %s303, 96
      %s305 = smul.addr %s304, 4
      %s306 = scalar_lea.vmem %s1, %s305
      %p307 = scmp.lt.s32.totalorder %s20, 2
      %s308 = scalar_select %p307, %s20, 2
      %s309 = smul.addr %s308, 6
      %s310 = scalar_lea.vmem %s2, %s309
      %p311 = scmp.lt.s32.totalorder %s20, 2
      %s312 = scalar_select %p311, %s20, 2
      %s313 = smul.addr %s312, 6
      %s314 = scalar_lea.vmem %s3, %s313
      %p315 = scmp.lt.s32.totalorder %s20, 2
      %s316 = scalar_select %p315, %s20, 2
      %s317 = smul.addr %s316, 6
      %s318 = scalar_lea.vmem %s4, %s317
      %p319 = scmp.lt.s32.totalorder %s20, 2
      %s320 = scalar_select %p319, %s20, 2
      %s321 = smul.addr %s320, 6
      %s322 = smul.addr %s321, 2
      %s323 = scalar_lea.vmem %s5, %s322
      %p325 = scmp.eq.s32.totalorder %s21, 0
      // Predicated region
      $region41: #{_forward.2} parent=39 // pred_check
        %p326 = pneg %p325
      $region42: #{_forward.2} parent=39 // pred_check_branch
        %328 = sbr.rel (%p326) target = $region44
      $region43: #{_forward.2} parent=39 // pred_region
        %329 = vst [vmem:[#allocation2] sm:$0xff] 0.0
        %330 = vst [vmem:[#allocation2 + $0x8] sm:$0xf] 0.0
      $region44: #{_forward.2} parent=39 // pred_fallthru
        _
      %v331 = vld [vmem:[%s300] sm:$0xf]
      %v332 = vld [vmem:[%s300 + $0x4] sm:$0xf]
      %v333 = vld [vmem:[%s300 + $0x8] sm:$0xf]
      %v334 = vld [vmem:[%s300 + $0xc] sm:$0xf]
      %v335 = vld [vmem:[%s300 + $0x10] sm:$0xf]
      %v336 = vld [vmem:[%s300 + $0x14] sm:$0xf]
      %v337 = vld [vmem:[%s300 + $0x18] sm:$0xf]
      %v338 = vld [vmem:[%s300 + $0x1c] sm:$0xf]
      %v339 = vld [vmem:[%s300 + $0x20] sm:$0xf]
      %v340 = vld [vmem:[%s300 + $0x24] sm:$0xf]
      %v341 = vld [vmem:[%s300 + $0x28] sm:$0xf]
      %v342 = vld [vmem:[%s300 + $0x2c] sm:$0xf]
      %v343 = vld [vmem:[%s300 + $0x30] sm:$0xf]
      %v344 = vld [vmem:[%s300 + $0x34] sm:$0xf]
      %v345 = vld [vmem:[%s300 + $0x38] sm:$0xf]
      %v346 = vld [vmem:[%s300 + $0x3c] sm:$0xf]
      %v347 = vld [vmem:[%s306] sm:$0xff]
      %v348 = vld [vmem:[%s306 + $0x8] sm:$0xff]
      %v349 = vld [vmem:[%s306 + $0x10] sm:$0xff]
      %v350 = vld [vmem:[%s306 + $0x18] sm:$0xff]
      %v351 = vld [vmem:[%s306 + $0x20] sm:$0xff]
      %v352 = vld [vmem:[%s306 + $0x28] sm:$0xff]
      %v353 = vld [vmem:[%s306 + $0x30] sm:$0xff]
      %v354 = vld [vmem:[%s306 + $0x38] sm:$0xff]
      %v355 = vld [vmem:[%s306 + $0x40] sm:$0xff]
      %v356 = vld [vmem:[%s306 + $0x48] sm:$0xff]
      %v357 = vld [vmem:[%s306 + $0x50] sm:$0xff]
      %v358 = vld [vmem:[%s306 + $0x58] sm:$0xff]
      %v359 = vld [vmem:[%s306 + $0x60] sm:$0xff]
      %v360 = vld [vmem:[%s306 + $0x68] sm:$0xff]
      %v361 = vld [vmem:[%s306 + $0x70] sm:$0xff]
      %v362 = vld [vmem:[%s306 + $0x78] sm:$0xff]
      %v363 = vld [vmem:[%s306 + $0x80] sm:$0xff]
      %v364 = vld [vmem:[%s306 + $0x88] sm:$0xff]
      %v365 = vld [vmem:[%s306 + $0x90] sm:$0xff]
      %v366 = vld [vmem:[%s306 + $0x98] sm:$0xff]
      %v367 = vld [vmem:[%s306 + $0xa0] sm:$0xff]
      %v368 = vld [vmem:[%s306 + $0xa8] sm:$0xff]
      %v369 = vld [vmem:[%s306 + $0xb0] sm:$0xff]
      %v370 = vld [vmem:[%s306 + $0xb8] sm:$0xff]
      %v371 = vld [vmem:[%s306 + $0xc0] sm:$0xff]
      %v372 = vld [vmem:[%s306 + $0xc8] sm:$0xff]
      %v373 = vld [vmem:[%s306 + $0xd0] sm:$0xff]
      %v374 = vld [vmem:[%s306 + $0xd8] sm:$0xff]
      %v375 = vld [vmem:[%s306 + $0xe0] sm:$0xff]
      %v376 = vld [vmem:[%s306 + $0xe8] sm:$0xff]
      %v377 = vld [vmem:[%s306 + $0xf0] sm:$0xff]
      %v378 = vld [vmem:[%s306 + $0xf8] sm:$0xff]
      %v379 = vld [vmem:[%s306 + $0x100] sm:$0xff]
      %v380 = vld [vmem:[%s306 + $0x108] sm:$0xff]
      %v381 = vld [vmem:[%s306 + $0x110] sm:$0xff]
      %v382 = vld [vmem:[%s306 + $0x118] sm:$0xff]
      %v383 = vld [vmem:[%s306 + $0x120] sm:$0xff]
      %v384 = vld [vmem:[%s306 + $0x128] sm:$0xff]
      %v385 = vld [vmem:[%s306 + $0x130] sm:$0xff]
      %v386 = vld [vmem:[%s306 + $0x138] sm:$0xff]
      %v387 = vld [vmem:[%s306 + $0x140] sm:$0xff]
      %v388 = vld [vmem:[%s306 + $0x148] sm:$0xff]
      %v389 = vld [vmem:[%s306 + $0x150] sm:$0xff]
      %v390 = vld [vmem:[%s306 + $0x158] sm:$0xff]
      %v391 = vld [vmem:[%s306 + $0x160] sm:$0xff]
      %v392 = vld [vmem:[%s306 + $0x168] sm:$0xff]
      %v393 = vld [vmem:[%s306 + $0x170] sm:$0xff]
      %v394 = vld [vmem:[%s306 + $0x178] sm:$0xff]
      %v395 = vld [vmem:[%s310] sm:$0x3f]
      %v397 = vlaneseq
      %v398 = vshrl.u32 %v397, 7
      %v399 = vsub.s32 0, %v398
      %v400 = vrot.slane %v395, %v399
      %v401 = vlaneseq
      %v402 = vshrl.u32 %v401, 7
      %v403 = vsub.s32 1, %v402
      %v404 = vrot.slane %v395, %v403
      %v405 = vlaneseq
      %v406 = vshrl.u32 %v405, 7
      %v407 = vsub.s32 2, %v406
      %v408 = vrot.slane %v395, %v407
      %v409 = vlaneseq
      %v410 = vshrl.u32 %v409, 7
      %v411 = vsub.s32 3, %v410
      %v412 = vrot.slane %v395, %v411
      %v413 = vlaneseq
      %v414 = vshrl.u32 %v413, 7
      %v415 = vsub.s32 4, %v414
      %v416 = vrot.slane %v395, %v415
      %v417 = vlaneseq
      %v418 = vshrl.u32 %v417, 7
      %v419 = vsub.s32 5, %v418
      %v420 = vrot.slane %v395, %v419
      %v443 = vunpack.c.l.b16 %v331
      %v444 = vunpack.c.l.b16 %v332
      %v445 = vunpack.c.l.b16 %v333
      %v446 = vunpack.c.l.b16 %v334
      %v447 = vunpack.c.l.b16 %v335
      %v448 = vunpack.c.l.b16 %v336
      %v449 = vunpack.c.l.b16 %v337
      %v450 = vunpack.c.l.b16 %v338
      %v451 = vunpack.c.l.b16 %v339
      %v452 = vunpack.c.l.b16 %v340
      %v453 = vunpack.c.l.b16 %v341
      %v454 = vunpack.c.l.b16 %v342
      %v455 = vunpack.c.l.b16 %v343
      %v456 = vunpack.c.l.b16 %v344
      %v457 = vunpack.c.l.b16 %v345
      %v458 = vunpack.c.l.b16 %v346
      %v459 = vpack.c.b16 %v444, %v443
      %v460 = vpack.c.b16 %v446, %v445
      %v461 = vpack.c.b16 %v448, %v447
      %v462 = vpack.c.b16 %v450, %v449
      %v463 = vpack.c.b16 %v452, %v451
      %v464 = vpack.c.b16 %v454, %v453
      %v465 = vpack.c.b16 %v456, %v455
      %v466 = vpack.c.b16 %v458, %v457
      %v523 = vunpack.c.l.b16 %v347
      %v524 = vunpack.c.h.b16 %v347
      %v525 = vunpack.c.l.b16 %v348
      %v526 = vunpack.c.h.b16 %v348
      %v527 = vunpack.c.l.b16 %v349
      %v528 = vunpack.c.h.b16 %v349
      %v529 = vunpack.c.l.b16 %v350
      %v530 = vunpack.c.h.b16 %v350
      %v531 = vunpack.c.l.b16 %v351
      %v532 = vunpack.c.h.b16 %v351
      %v533 = vunpack.c.l.b16 %v352
      %v534 = vunpack.c.h.b16 %v352
      %v535 = vunpack.c.l.b16 %v353
      %v536 = vunpack.c.h.b16 %v353
      %v537 = vunpack.c.l.b16 %v354
      %v538 = vunpack.c.h.b16 %v354
      %v539 = vunpack.c.l.b16 %v355
      %v540 = vunpack.c.h.b16 %v355
      %v541 = vunpack.c.l.b16 %v356
      %v542 = vunpack.c.h.b16 %v356
      %v543 = vunpack.c.l.b16 %v357
      %v544 = vunpack.c.h.b16 %v357
      %v545 = vunpack.c.l.b16 %v358
      %v546 = vunpack.c.h.b16 %v358
      %v547 = vunpack.c.l.b16 %v359
      %v548 = vunpack.c.h.b16 %v359
      %v549 = vunpack.c.l.b16 %v360
      %v550 = vunpack.c.h.b16 %v360
      %v551 = vunpack.c.l.b16 %v361
      %v552 = vunpack.c.h.b16 %v361
      %v553 = vunpack.c.l.b16 %v362
      %v554 = vunpack.c.h.b16 %v362
      %v555 = vunpack.c.l.b16 %v363
      %v556 = vunpack.c.h.b16 %v363
      %v557 = vunpack.c.l.b16 %v364
      %v558 = vunpack.c.h.b16 %v364
      %v559 = vunpack.c.l.b16 %v365
      %v560 = vunpack.c.h.b16 %v365
      %v561 = vunpack.c.l.b16 %v366
      %v562 = vunpack.c.h.b16 %v366
      %v563 = vunpack.c.l.b16 %v367
      %v564 = vunpack.c.h.b16 %v367
      %v565 = vunpack.c.l.b16 %v368
      %v566 = vunpack.c.h.b16 %v368
      %v567 = vunpack.c.l.b16 %v369
      %v568 = vunpack.c.h.b16 %v369
      %v569 = vunpack.c.l.b16 %v370
      %v570 = vunpack.c.h.b16 %v370
      %v571 = vunpack.c.l.b16 %v371
      %v572 = vunpack.c.h.b16 %v371
      %v573 = vunpack.c.l.b16 %v372
      %v574 = vunpack.c.h.b16 %v372
      %v575 = vunpack.c.l.b16 %v373
      %v576 = vunpack.c.h.b16 %v373
      %v577 = vunpack.c.l.b16 %v374
      %v578 = vunpack.c.h.b16 %v374
      %v579 = vunpack.c.l.b16 %v375
      %v580 = vunpack.c.h.b16 %v375
      %v581 = vunpack.c.l.b16 %v376
      %v582 = vunpack.c.h.b16 %v376
      %v583 = vunpack.c.l.b16 %v377
      %v584 = vunpack.c.h.b16 %v377
      %v585 = vunpack.c.l.b16 %v378
      %v586 = vunpack.c.h.b16 %v378
      %v587 = vunpack.c.l.b16 %v379
      %v588 = vunpack.c.h.b16 %v379
      %v589 = vunpack.c.l.b16 %v380
      %v590 = vunpack.c.h.b16 %v380
      %v591 = vunpack.c.l.b16 %v381
      %v592 = vunpack.c.h.b16 %v381
      %v593 = vunpack.c.l.b16 %v382
      %v594 = vunpack.c.h.b16 %v382
      %v595 = vunpack.c.l.b16 %v383
      %v596 = vunpack.c.h.b16 %v383
      %v597 = vunpack.c.l.b16 %v384
      %v598 = vunpack.c.h.b16 %v384
      %v599 = vunpack.c.l.b16 %v385
      %v600 = vunpack.c.h.b16 %v385
      %v601 = vunpack.c.l.b16 %v386
      %v602 = vunpack.c.h.b16 %v386
      %v603 = vunpack.c.l.b16 %v387
      %v604 = vunpack.c.h.b16 %v387
      %v605 = vunpack.c.l.b16 %v388
      %v606 = vunpack.c.h.b16 %v388
      %v607 = vunpack.c.l.b16 %v389
      %v608 = vunpack.c.h.b16 %v389
      %v609 = vunpack.c.l.b16 %v390
      %v610 = vunpack.c.h.b16 %v390
      %v611 = vunpack.c.l.b16 %v391
      %v612 = vunpack.c.h.b16 %v391
      %v613 = vunpack.c.l.b16 %v392
      %v614 = vunpack.c.h.b16 %v392
      %v615 = vunpack.c.l.b16 %v393
      %v616 = vunpack.c.h.b16 %v393
      %v617 = vunpack.c.l.b16 %v394
      %v618 = vunpack.c.h.b16 %v394
      %v619 = vpack.c.b16 %v529, %v523
      %v620 = vpack.c.b16 %v530, %v524
      %v621 = vpack.c.b16 %v531, %v525
      %v622 = vpack.c.b16 %v532, %v526
      %v623 = vpack.c.b16 %v533, %v527
      %v624 = vpack.c.b16 %v534, %v528
      %v625 = vpack.c.b16 %v541, %v535
      %v626 = vpack.c.b16 %v542, %v536
      %v627 = vpack.c.b16 %v543, %v537
      %v628 = vpack.c.b16 %v544, %v538
      %v629 = vpack.c.b16 %v545, %v539
      %v630 = vpack.c.b16 %v546, %v540
      %v631 = vpack.c.b16 %v553, %v547
      %v632 = vpack.c.b16 %v554, %v548
      %v633 = vpack.c.b16 %v555, %v549
      %v634 = vpack.c.b16 %v556, %v550
      %v635 = vpack.c.b16 %v557, %v551
      %v636 = vpack.c.b16 %v558, %v552
      %v637 = vpack.c.b16 %v565, %v559
      %v638 = vpack.c.b16 %v566, %v560
      %v639 = vpack.c.b16 %v567, %v561
      %v640 = vpack.c.b16 %v568, %v562
      %v641 = vpack.c.b16 %v569, %v563
      %v642 = vpack.c.b16 %v570, %v564
      %v643 = vpack.c.b16 %v577, %v571
      %v644 = vpack.c.b16 %v578, %v572
      %v645 = vpack.c.b16 %v579, %v573
      %v646 = vpack.c.b16 %v580, %v574
      %v647 = vpack.c.b16 %v581, %v575
      %v648 = vpack.c.b16 %v582, %v576
      %v649 = vpack.c.b16 %v589, %v583
      %v650 = vpack.c.b16 %v590, %v584
      %v651 = vpack.c.b16 %v591, %v585
      %v652 = vpack.c.b16 %v592, %v586
      %v653 = vpack.c.b16 %v593, %v587
      %v654 = vpack.c.b16 %v594, %v588
      %v655 = vpack.c.b16 %v601, %v595
      %v656 = vpack.c.b16 %v602, %v596
      %v657 = vpack.c.b16 %v603, %v597
      %v658 = vpack.c.b16 %v604, %v598
      %v659 = vpack.c.b16 %v605, %v599
      %v660 = vpack.c.b16 %v606, %v600
      %v661 = vpack.c.b16 %v613, %v607
      %v662 = vpack.c.b16 %v614, %v608
      %v663 = vpack.c.b16 %v615, %v609
      %v664 = vpack.c.b16 %v616, %v610
      %v665 = vpack.c.b16 %v617, %v611
      %v666 = vpack.c.b16 %v618, %v612
      %715 = vmatprep.subr.bf16.mxu0 %v662
      %716 = vmatpush1.bf16.msra.mxu0 %v661
      %717 = vmatprep.subr.bf16.mxu0 %v656
      %718 = vmatpush1.bf16.msra.mxu0 %v655
      %719 = vmatprep.subr.bf16.mxu0 %v650
      %720 = vmatpush1.bf16.msra.mxu0 %v649
      %721 = vmatprep.subr.bf16.mxu0 %v644
      %722 = vmatpush1.bf16.msra.mxu0 %v643
      %723 = vmatprep.subr.bf16.mxu0 %v638
      %724 = vmatpush1.bf16.msra.mxu0 %v637
      %725 = vmatprep.subr.bf16.mxu0 %v632
      %726 = vmatpush1.bf16.msra.mxu0 %v631
      %727 = vmatprep.subr.bf16.mxu0 %v626
      %728 = vmatpush1.bf16.msra.mxu0 %v625
      %729 = vmatprep.subr.bf16.mxu0 %v620
      %730 = vmatpush1.bf16.msra.mxu0 %v619
      %731 = vmatprep.subr.bf16.mxu0 0
      %732 = vmatpush2.bf16.msra.mxu0 0
      %733 = vmatprep.subr.bf16.mxu0 0
      %734 = vmatpush2.bf16.msra.mxu0 0
      %735 = vmatprep.subr.bf16.mxu0 0
      %736 = vmatpush2.bf16.msra.mxu0 0
      %737 = vmatprep.subr.bf16.mxu0 0
      %738 = vmatpush2.bf16.msra.mxu0 0
      %739 = vmatprep.subr.bf16.mxu0 0
      %740 = vmatpush2.bf16.msra.mxu0 0
      %741 = vmatprep.subr.bf16.mxu0 0
      %742 = vmatpush2.bf16.msra.mxu0 0
      %743 = vmatprep.subr.bf16.mxu0 0
      %744 = vmatpush2.bf16.msra.mxu0 0
      %745 = vmatprep.subr.bf16.mxu0 0
      %746 = vmatpush2.bf16.msra.mxu0 0
      %747 = vmatprep.mubr.bf16.mxu0 0
      %748 = vmatmul.mubr.bf16.gmra.mxu0 %v459
      %v749 = vpop.f32.mrf.mxu0
      %v750 = vadd.f32 %v400, %v749
      %v751 = vpop.f32.mrf.mxu0
      %v752 = vadd.f32 %v404, %v751
      %v753 = vpop.f32.mrf.mxu0
      %v754 = vadd.f32 %v400, %v753
      %v755 = vpop.f32.mrf.mxu0
      %v756 = vadd.f32 %v404, %v755
      %757 = vmatprep.mubr.bf16.mxu0 0
      %758 = vmatmul.mubr.bf16.gmra.mxu0 %v460
      %v759 = vpop.f32.mrf.mxu0
      %v760 = vadd.f32 %v400, %v759
      %v761 = vpop.f32.mrf.mxu0
      %v762 = vadd.f32 %v404, %v761
      %v763 = vpop.f32.mrf.mxu0
      %v764 = vadd.f32 %v400, %v763
      %v765 = vpop.f32.mrf.mxu0
      %v766 = vadd.f32 %v404, %v765
      %767 = vmatprep.mubr.bf16.mxu0 0
      %768 = vmatmul.mubr.bf16.gmra.mxu0 %v461
      %v769 = vpop.f32.mrf.mxu0
      %v770 = vadd.f32 %v400, %v769
      %v771 = vpop.f32.mrf.mxu0
      %v772 = vadd.f32 %v404, %v771
      %v773 = vpop.f32.mrf.mxu0
      %v774 = vadd.f32 %v400, %v773
      %v775 = vpop.f32.mrf.mxu0
      %v776 = vadd.f32 %v404, %v775
      %777 = vmatprep.mubr.bf16.mxu0 0
      %778 = vmatmul.mubr.bf16.gmra.mxu0 %v462
      %v779 = vpop.f32.mrf.mxu0
      %v780 = vadd.f32 %v400, %v779
      %v781 = vpop.f32.mrf.mxu0
      %v782 = vadd.f32 %v404, %v781
      %v783 = vpop.f32.mrf.mxu0
      %v784 = vadd.f32 %v400, %v783
      %v785 = vpop.f32.mrf.mxu0
      %v786 = vadd.f32 %v404, %v785
      %787 = vmatprep.mubr.bf16.mxu0 0
      %788 = vmatmul.mubr.bf16.gmra.mxu0 %v463
      %v789 = vpop.f32.mrf.mxu0
      %v790 = vadd.f32 %v400, %v789
      %v791 = vpop.f32.mrf.mxu0
      %v792 = vadd.f32 %v404, %v791
      %v793 = vpop.f32.mrf.mxu0
      %v794 = vadd.f32 %v400, %v793
      %v795 = vpop.f32.mrf.mxu0
      %v796 = vadd.f32 %v404, %v795
      %797 = vmatprep.mubr.bf16.mxu0 0
      %798 = vmatmul.mubr.bf16.gmra.mxu0 %v464
      %v799 = vpop.f32.mrf.mxu0
      %v800 = vadd.f32 %v400, %v799
      %v801 = vpop.f32.mrf.mxu0
      %v802 = vadd.f32 %v404, %v801
      %v803 = vpop.f32.mrf.mxu0
      %v804 = vadd.f32 %v400, %v803
      %v805 = vpop.f32.mrf.mxu0
      %v806 = vadd.f32 %v404, %v805
      %807 = vmatprep.mubr.bf16.mxu0 0
      %808 = vmatmul.mubr.bf16.gmra.mxu0 %v465
      %v809 = vpop.f32.mrf.mxu0
      %v810 = vadd.f32 %v400, %v809
      %v811 = vpop.f32.mrf.mxu0
      %v812 = vadd.f32 %v404, %v811
      %v813 = vpop.f32.mrf.mxu0
      %v814 = vadd.f32 %v400, %v813
      %v815 = vpop.f32.mrf.mxu0
      %v816 = vadd.f32 %v404, %v815
      %817 = vmatprep.mubr.bf16.mxu0 0
      %818 = vmatmul.mubr.bf16.gmra.mxu0 %v466
      %v819 = vpop.f32.mrf.mxu0
      %v820 = vadd.f32 %v400, %v819
      %v821 = vpop.f32.mrf.mxu0
      %v822 = vadd.f32 %v404, %v821
      %v823 = vpop.f32.mrf.mxu0
      %v824 = vadd.f32 %v400, %v823
      %v825 = vpop.f32.mrf.mxu0
      %v826 = vadd.f32 %v404, %v825
      %827 = vdwg.mxu0
      %828 = vmatprep.subr.bf16.mxu0 %v664
      %829 = vmatpush1.bf16.msra.mxu0 %v663
      %830 = vmatprep.subr.bf16.mxu0 %v658
      %831 = vmatpush1.bf16.msra.mxu0 %v657
      %832 = vmatprep.subr.bf16.mxu0 %v652
      %833 = vmatpush1.bf16.msra.mxu0 %v651
      %834 = vmatprep.subr.bf16.mxu0 %v646
      %835 = vmatpush1.bf16.msra.mxu0 %v645
      %836 = vmatprep.subr.bf16.mxu0 %v640
      %837 = vmatpush1.bf16.msra.mxu0 %v639
      %838 = vmatprep.subr.bf16.mxu0 %v634
      %839 = vmatpush1.bf16.msra.mxu0 %v633
      %840 = vmatprep.subr.bf16.mxu0 %v628
      %841 = vmatpush1.bf16.msra.mxu0 %v627
      %842 = vmatprep.subr.bf16.mxu0 %v622
      %843 = vmatpush1.bf16.msra.mxu0 %v621
      %844 = vmatprep.subr.bf16.mxu0 0
      %845 = vmatpush2.bf16.msra.mxu0 0
      %846 = vmatprep.subr.bf16.mxu0 0
      %847 = vmatpush2.bf16.msra.mxu0 0
      %848 = vmatprep.subr.bf16.mxu0 0
      %849 = vmatpush2.bf16.msra.mxu0 0
      %850 = vmatprep.subr.bf16.mxu0 0
      %851 = vmatpush2.bf16.msra.mxu0 0
      %852 = vmatprep.subr.bf16.mxu0 0
      %853 = vmatpush2.bf16.msra.mxu0 0
      %854 = vmatprep.subr.bf16.mxu0 0
      %855 = vmatpush2.bf16.msra.mxu0 0
      %856 = vmatprep.subr.bf16.mxu0 0
      %857 = vmatpush2.bf16.msra.mxu0 0
      %858 = vmatprep.subr.bf16.mxu0 0
      %859 = vmatpush2.bf16.msra.mxu0 0
      %860 = vmatprep.mubr.bf16.mxu0 0
      %861 = vmatmul.mubr.bf16.gmra.mxu0 %v459
      %v862 = vpop.f32.mrf.mxu0
      %v863 = vadd.f32 %v408, %v862
      %v864 = vpop.f32.mrf.mxu0
      %v865 = vadd.f32 %v412, %v864
      %v866 = vpop.f32.mrf.mxu0
      %v867 = vadd.f32 %v408, %v866
      %v868 = vpop.f32.mrf.mxu0
      %v869 = vadd.f32 %v412, %v868
      %870 = vmatprep.mubr.bf16.mxu0 0
      %871 = vmatmul.mubr.bf16.gmra.mxu0 %v460
      %v872 = vpop.f32.mrf.mxu0
      %v873 = vadd.f32 %v408, %v872
      %v874 = vpop.f32.mrf.mxu0
      %v875 = vadd.f32 %v412, %v874
      %v876 = vpop.f32.mrf.mxu0
      %v877 = vadd.f32 %v408, %v876
      %v878 = vpop.f32.mrf.mxu0
      %v879 = vadd.f32 %v412, %v878
      %880 = vmatprep.mubr.bf16.mxu0 0
      %881 = vmatmul.mubr.bf16.gmra.mxu0 %v461
      %v882 = vpop.f32.mrf.mxu0
      %v883 = vadd.f32 %v408, %v882
      %v884 = vpop.f32.mrf.mxu0
      %v885 = vadd.f32 %v412, %v884
      %v886 = vpop.f32.mrf.mxu0
      %v887 = vadd.f32 %v408, %v886
      %v888 = vpop.f32.mrf.mxu0
      %v889 = vadd.f32 %v412, %v888
      %890 = vmatprep.mubr.bf16.mxu0 0
      %891 = vmatmul.mubr.bf16.gmra.mxu0 %v462
      %v892 = vpop.f32.mrf.mxu0
      %v893 = vadd.f32 %v408, %v892
      %v894 = vpop.f32.mrf.mxu0
      %v895 = vadd.f32 %v412, %v894
      %v896 = vpop.f32.mrf.mxu0
      %v897 = vadd.f32 %v408, %v896
      %v898 = vpop.f32.mrf.mxu0
      %v899 = vadd.f32 %v412, %v898
      %900 = vmatprep.mubr.bf16.mxu0 0
      %901 = vmatmul.mubr.bf16.gmra.mxu0 %v463
      %v902 = vpop.f32.mrf.mxu0
      %v903 = vadd.f32 %v408, %v902
      %v904 = vpop.f32.mrf.mxu0
      %v905 = vadd.f32 %v412, %v904
      %v906 = vpop.f32.mrf.mxu0
      %v907 = vadd.f32 %v408, %v906
      %v908 = vpop.f32.mrf.mxu0
      %v909 = vadd.f32 %v412, %v908
      %910 = vmatprep.mubr.bf16.mxu0 0
      %911 = vmatmul.mubr.bf16.gmra.mxu0 %v464
      %v912 = vpop.f32.mrf.mxu0
      %v913 = vadd.f32 %v408, %v912
      %v914 = vpop.f32.mrf.mxu0
      %v915 = vadd.f32 %v412, %v914
      %v916 = vpop.f32.mrf.mxu0
      %v917 = vadd.f32 %v408, %v916
      %v918 = vpop.f32.mrf.mxu0
      %v919 = vadd.f32 %v412, %v918
      %920 = vmatprep.mubr.bf16.mxu0 0
      %921 = vmatmul.mubr.bf16.gmra.mxu0 %v465
      %v922 = vpop.f32.mrf.mxu0
      %v923 = vadd.f32 %v408, %v922
      %v924 = vpop.f32.mrf.mxu0
      %v925 = vadd.f32 %v412, %v924
      %v926 = vpop.f32.mrf.mxu0
      %v927 = vadd.f32 %v408, %v926
      %v928 = vpop.f32.mrf.mxu0
      %v929 = vadd.f32 %v412, %v928
      %930 = vmatprep.mubr.bf16.mxu0 0
      %931 = vmatmul.mubr.bf16.gmra.mxu0 %v466
      %v932 = vpop.f32.mrf.mxu0
      %v933 = vadd.f32 %v408, %v932
      %v934 = vpop.f32.mrf.mxu0
      %v935 = vadd.f32 %v412, %v934
      %v936 = vpop.f32.mrf.mxu0
      %v937 = vadd.f32 %v408, %v936
      %v938 = vpop.f32.mrf.mxu0
      %v939 = vadd.f32 %v412, %v938
      %940 = vdwg.mxu0
      %941 = vmatprep.subr.bf16.mxu0 %v666
      %942 = vmatpush1.bf16.msra.mxu0 %v665
      %943 = vmatprep.subr.bf16.mxu0 %v660
      %944 = vmatpush1.bf16.msra.mxu0 %v659
      %945 = vmatprep.subr.bf16.mxu0 %v654
      %946 = vmatpush1.bf16.msra.mxu0 %v653
      %947 = vmatprep.subr.bf16.mxu0 %v648
      %948 = vmatpush1.bf16.msra.mxu0 %v647
      %949 = vmatprep.subr.bf16.mxu0 %v642
      %950 = vmatpush1.bf16.msra.mxu0 %v641
      %951 = vmatprep.subr.bf16.mxu0 %v636
      %952 = vmatpush1.bf16.msra.mxu0 %v635
      %953 = vmatprep.subr.bf16.mxu0 %v630
      %954 = vmatpush1.bf16.msra.mxu0 %v629
      %955 = vmatprep.subr.bf16.mxu0 %v624
      %956 = vmatpush1.bf16.msra.mxu0 %v623
      %957 = vmatprep.subr.bf16.mxu0 0
      %958 = vmatpush2.bf16.msra.mxu0 0
      %959 = vmatprep.subr.bf16.mxu0 0
      %960 = vmatpush2.bf16.msra.mxu0 0
      %961 = vmatprep.subr.bf16.mxu0 0
      %962 = vmatpush2.bf16.msra.mxu0 0
      %963 = vmatprep.subr.bf16.mxu0 0
      %964 = vmatpush2.bf16.msra.mxu0 0
      %965 = vmatprep.subr.bf16.mxu0 0
      %966 = vmatpush2.bf16.msra.mxu0 0
      %967 = vmatprep.subr.bf16.mxu0 0
      %968 = vmatpush2.bf16.msra.mxu0 0
      %969 = vmatprep.subr.bf16.mxu0 0
      %970 = vmatpush2.bf16.msra.mxu0 0
      %971 = vmatprep.subr.bf16.mxu0 0
      %972 = vmatpush2.bf16.msra.mxu0 0
      %973 = vmatprep.mubr.bf16.mxu0 0
      %974 = vmatmul.mubr.bf16.gmra.mxu0 %v459
      %v975 = vpop.f32.mrf.mxu0
      %v976 = vadd.f32 %v416, %v975
      %v977 = vpop.f32.mrf.mxu0
      %v978 = vadd.f32 %v420, %v977
      %v979 = vpop.f32.mrf.mxu0
      %v980 = vadd.f32 %v416, %v979
      %v981 = vpop.f32.mrf.mxu0
      %v982 = vadd.f32 %v420, %v981
      %983 = vmatprep.mubr.bf16.mxu0 0
      %984 = vmatmul.mubr.bf16.gmra.mxu0 %v460
      %v985 = vpop.f32.mrf.mxu0
      %v986 = vadd.f32 %v416, %v985
      %v987 = vpop.f32.mrf.mxu0
      %v988 = vadd.f32 %v420, %v987
      %v989 = vpop.f32.mrf.mxu0
      %v990 = vadd.f32 %v416, %v989
      %v991 = vpop.f32.mrf.mxu0
      %v992 = vadd.f32 %v420, %v991
      %993 = vmatprep.mubr.bf16.mxu0 0
      %994 = vmatmul.mubr.bf16.gmra.mxu0 %v461
      %v995 = vpop.f32.mrf.mxu0
      %v996 = vadd.f32 %v416, %v995
      %v997 = vpop.f32.mrf.mxu0
      %v998 = vadd.f32 %v420, %v997
      %v999 = vpop.f32.mrf.mxu0
      %v1000 = vadd.f32 %v416, %v999
      %v1001 = vpop.f32.mrf.mxu0
      %v1002 = vadd.f32 %v420, %v1001
      %1003 = vmatprep.mubr.bf16.mxu0 0
      %1004 = vmatmul.mubr.bf16.gmra.mxu0 %v462
      %v1005 = vpop.f32.mrf.mxu0
      %v1006 = vadd.f32 %v416, %v1005
      %v1007 = vpop.f32.mrf.mxu0
      %v1008 = vadd.f32 %v420, %v1007
      %v1009 = vpop.f32.mrf.mxu0
      %v1010 = vadd.f32 %v416, %v1009
      %v1011 = vpop.f32.mrf.mxu0
      %v1012 = vadd.f32 %v420, %v1011
      %1013 = vmatprep.mubr.bf16.mxu0 0
      %1014 = vmatmul.mubr.bf16.gmra.mxu0 %v463
      %v1015 = vpop.f32.mrf.mxu0
      %v1016 = vadd.f32 %v416, %v1015
      %v1017 = vpop.f32.mrf.mxu0
      %v1018 = vadd.f32 %v420, %v1017
      %v1019 = vpop.f32.mrf.mxu0
      %v1020 = vadd.f32 %v416, %v1019
      %v1021 = vpop.f32.mrf.mxu0
      %v1022 = vadd.f32 %v420, %v1021
      %1023 = vmatprep.mubr.bf16.mxu0 0
      %1024 = vmatmul.mubr.bf16.gmra.mxu0 %v464
      %v1025 = vpop.f32.mrf.mxu0
      %v1026 = vadd.f32 %v416, %v1025
      %v1027 = vpop.f32.mrf.mxu0
      %v1028 = vadd.f32 %v420, %v1027
      %v1029 = vpop.f32.mrf.mxu0
      %v1030 = vadd.f32 %v416, %v1029
      %v1031 = vpop.f32.mrf.mxu0
      %v1032 = vadd.f32 %v420, %v1031
      %1033 = vmatprep.mubr.bf16.mxu0 0
      %1034 = vmatmul.mubr.bf16.gmra.mxu0 %v465
      %v1035 = vpop.f32.mrf.mxu0
      %v1036 = vadd.f32 %v416, %v1035
      %v1037 = vpop.f32.mrf.mxu0
      %v1038 = vadd.f32 %v420, %v1037
      %v1039 = vpop.f32.mrf.mxu0
      %v1040 = vadd.f32 %v416, %v1039
      %v1041 = vpop.f32.mrf.mxu0
      %v1042 = vadd.f32 %v420, %v1041
      %1043 = vmatprep.mubr.bf16.mxu0 0
      %1044 = vmatmul.mubr.bf16.gmra.mxu0 %v466
      %v1045 = vpop.f32.mrf.mxu0
      %v1046 = vadd.f32 %v416, %v1045
      %v1047 = vpop.f32.mrf.mxu0
      %v1048 = vadd.f32 %v420, %v1047
      %v1049 = vpop.f32.mrf.mxu0
      %v1050 = vadd.f32 %v416, %v1049
      %v1051 = vpop.f32.mrf.mxu0
      %v1052 = vadd.f32 %v420, %v1051
      %1053 = vdwg.mxu0
      %v1054 = vadd.f32 %v750, %v752
      %v1055 = vadd.f32 %v1054, %v863
      %v1056 = vadd.f32 %v1055, %v865
      %v1057 = vadd.f32 %v1056, %v976
      %v1058 = vadd.f32 %v1057, %v978
      %1059 = vadd.xlane.f32.xlu0 %v1058
      %v1060 = vpop.xlane.xlu0 %1059
      %v1061 = vadd.f32 %v754, %v756
      %v1062 = vadd.f32 %v1061, %v867
      %v1063 = vadd.f32 %v1062, %v869
      %v1064 = vadd.f32 %v1063, %v980
      %v1065 = vadd.f32 %v1064, %v982
      %1066 = vadd.xlane.f32.xlu0 %v1065
      %v1067 = vpop.xlane.xlu0 %1066
      %v1068 = vadd.f32 %v760, %v762
      %v1069 = vadd.f32 %v1068, %v873
      %v1070 = vadd.f32 %v1069, %v875
      %v1071 = vadd.f32 %v1070, %v986
      %v1072 = vadd.f32 %v1071, %v988
      %1073 = vadd.xlane.f32.xlu0 %v1072
      %v1074 = vpop.xlane.xlu0 %1073
      %v1075 = vadd.f32 %v764, %v766
      %v1076 = vadd.f32 %v1075, %v877
      %v1077 = vadd.f32 %v1076, %v879
      %v1078 = vadd.f32 %v1077, %v990
      %v1079 = vadd.f32 %v1078, %v992
      %1080 = vadd.xlane.f32.xlu0 %v1079
      %v1081 = vpop.xlane.xlu0 %1080
      %v1082 = vadd.f32 %v770, %v772
      %v1083 = vadd.f32 %v1082, %v883
      %v1084 = vadd.f32 %v1083, %v885
      %v1085 = vadd.f32 %v1084, %v996
      %v1086 = vadd.f32 %v1085, %v998
      %1087 = vadd.xlane.f32.xlu0 %v1086
      %v1088 = vpop.xlane.xlu0 %1087
      %v1089 = vadd.f32 %v774, %v776
      %v1090 = vadd.f32 %v1089, %v887
      %v1091 = vadd.f32 %v1090, %v889
      %v1092 = vadd.f32 %v1091, %v1000
      %v1093 = vadd.f32 %v1092, %v1002
      %1094 = vadd.xlane.f32.xlu0 %v1093
      %v1095 = vpop.xlane.xlu0 %1094
      %v1096 = vadd.f32 %v780, %v782
      %v1097 = vadd.f32 %v1096, %v893
      %v1098 = vadd.f32 %v1097, %v895
      %v1099 = vadd.f32 %v1098, %v1006
      %v1100 = vadd.f32 %v1099, %v1008
      %1101 = vadd.xlane.f32.xlu0 %v1100
      %v1102 = vpop.xlane.xlu0 %1101
      %v1103 = vadd.f32 %v784, %v786
      %v1104 = vadd.f32 %v1103, %v897
      %v1105 = vadd.f32 %v1104, %v899
      %v1106 = vadd.f32 %v1105, %v1010
      %v1107 = vadd.f32 %v1106, %v1012
      %1108 = vadd.xlane.f32.xlu0 %v1107
      %v1109 = vpop.xlane.xlu0 %1108
      %v1110 = vadd.f32 %v790, %v792
      %v1111 = vadd.f32 %v1110, %v903
      %v1112 = vadd.f32 %v1111, %v905
      %v1113 = vadd.f32 %v1112, %v1016
      %v1114 = vadd.f32 %v1113, %v1018
      %1115 = vadd.xlane.f32.xlu0 %v1114
      %v1116 = vpop.xlane.xlu0 %1115
      %v1117 = vadd.f32 %v794, %v796
      %v1118 = vadd.f32 %v1117, %v907
      %v1119 = vadd.f32 %v1118, %v909
      %v1120 = vadd.f32 %v1119, %v1020
      %v1121 = vadd.f32 %v1120, %v1022
      %1122 = vadd.xlane.f32.xlu0 %v1121
      %v1123 = vpop.xlane.xlu0 %1122
      %v1124 = vadd.f32 %v800, %v802
      %v1125 = vadd.f32 %v1124, %v913
      %v1126 = vadd.f32 %v1125, %v915
      %v1127 = vadd.f32 %v1126, %v1026
      %v1128 = vadd.f32 %v1127, %v1028
      %1129 = vadd.xlane.f32.xlu0 %v1128
      %v1130 = vpop.xlane.xlu0 %1129
      %v1131 = vadd.f32 %v804, %v806
      %v1132 = vadd.f32 %v1131, %v917
      %v1133 = vadd.f32 %v1132, %v919
      %v1134 = vadd.f32 %v1133, %v1030
      %v1135 = vadd.f32 %v1134, %v1032
      %1136 = vadd.xlane.f32.xlu0 %v1135
      %v1137 = vpop.xlane.xlu0 %1136
      %v1138 = vadd.f32 %v810, %v812
      %v1139 = vadd.f32 %v1138, %v923
      %v1140 = vadd.f32 %v1139, %v925
      %v1141 = vadd.f32 %v1140, %v1036
      %v1142 = vadd.f32 %v1141, %v1038
      %1143 = vadd.xlane.f32.xlu0 %v1142
      %v1144 = vpop.xlane.xlu0 %1143
      %v1145 = vadd.f32 %v814, %v816
      %v1146 = vadd.f32 %v1145, %v927
      %v1147 = vadd.f32 %v1146, %v929
      %v1148 = vadd.f32 %v1147, %v1040
      %v1149 = vadd.f32 %v1148, %v1042
      %1150 = vadd.xlane.f32.xlu0 %v1149
      %v1151 = vpop.xlane.xlu0 %1150
      %v1152 = vadd.f32 %v820, %v822
      %v1153 = vadd.f32 %v1152, %v933
      %v1154 = vadd.f32 %v1153, %v935
      %v1155 = vadd.f32 %v1154, %v1046
      %v1156 = vadd.f32 %v1155, %v1048
      %1157 = vadd.xlane.f32.xlu0 %v1156
      %v1158 = vpop.xlane.xlu0 %1157
      %v1159 = vadd.f32 %v824, %v826
      %v1160 = vadd.f32 %v1159, %v937
      %v1161 = vadd.f32 %v1160, %v939
      %v1162 = vadd.f32 %v1161, %v1050
      %v1163 = vadd.f32 %v1162, %v1052
      %1164 = vadd.xlane.f32.xlu0 %v1163
      %v1165 = vpop.xlane.xlu0 %1164
      %v1166 = vmul.f32 %v750, %v750
      %v1167 = vmul.f32 %v752, %v752
      %v1168 = vmul.f32 %v863, %v863
      %v1169 = vmul.f32 %v865, %v865
      %v1170 = vmul.f32 %v976, %v976
      %v1171 = vmul.f32 %v978, %v978
      %v1172 = vmul.f32 %v754, %v754
      %v1173 = vmul.f32 %v756, %v756
      %v1174 = vmul.f32 %v867, %v867
      %v1175 = vmul.f32 %v869, %v869
      %v1176 = vmul.f32 %v980, %v980
      %v1177 = vmul.f32 %v982, %v982
      %v1178 = vmul.f32 %v760, %v760
      %v1179 = vmul.f32 %v762, %v762
      %v1180 = vmul.f32 %v873, %v873
      %v1181 = vmul.f32 %v875, %v875
      %v1182 = vmul.f32 %v986, %v986
      %v1183 = vmul.f32 %v988, %v988
      %v1184 = vmul.f32 %v764, %v764
      %v1185 = vmul.f32 %v766, %v766
      %v1186 = vmul.f32 %v877, %v877
      %v1187 = vmul.f32 %v879, %v879
      %v1188 = vmul.f32 %v990, %v990
      %v1189 = vmul.f32 %v992, %v992
      %v1190 = vmul.f32 %v770, %v770
      %v1191 = vmul.f32 %v772, %v772
      %v1192 = vmul.f32 %v883, %v883
      %v1193 = vmul.f32 %v885, %v885
      %v1194 = vmul.f32 %v996, %v996
      %v1195 = vmul.f32 %v998, %v998
      %v1196 = vmul.f32 %v774, %v774
      %v1197 = vmul.f32 %v776, %v776
      %v1198 = vmul.f32 %v887, %v887
      %v1199 = vmul.f32 %v889, %v889
      %v1200 = vmul.f32 %v1000, %v1000
      %v1201 = vmul.f32 %v1002, %v1002
      %v1202 = vmul.f32 %v780, %v780
      %v1203 = vmul.f32 %v782, %v782
      %v1204 = vmul.f32 %v893, %v893
      %v1205 = vmul.f32 %v895, %v895
      %v1206 = vmul.f32 %v1006, %v1006
      %v1207 = vmul.f32 %v1008, %v1008
      %v1208 = vmul.f32 %v784, %v784
      %v1209 = vmul.f32 %v786, %v786
      %v1210 = vmul.f32 %v897, %v897
      %v1211 = vmul.f32 %v899, %v899
      %v1212 = vmul.f32 %v1010, %v1010
      %v1213 = vmul.f32 %v1012, %v1012
      %v1214 = vmul.f32 %v790, %v790
      %v1215 = vmul.f32 %v792, %v792
      %v1216 = vmul.f32 %v903, %v903
      %v1217 = vmul.f32 %v905, %v905
      %v1218 = vmul.f32 %v1016, %v1016
      %v1219 = vmul.f32 %v1018, %v1018
      %v1220 = vmul.f32 %v794, %v794
      %v1221 = vmul.f32 %v796, %v796
      %v1222 = vmul.f32 %v907, %v907
      %v1223 = vmul.f32 %v909, %v909
      %v1224 = vmul.f32 %v1020, %v1020
      %v1225 = vmul.f32 %v1022, %v1022
      %v1226 = vmul.f32 %v800, %v800
      %v1227 = vmul.f32 %v802, %v802
      %v1228 = vmul.f32 %v913, %v913
      %v1229 = vmul.f32 %v915, %v915
      %v1230 = vmul.f32 %v1026, %v1026
      %v1231 = vmul.f32 %v1028, %v1028
      %v1232 = vmul.f32 %v804, %v804
      %v1233 = vmul.f32 %v806, %v806
      %v1234 = vmul.f32 %v917, %v917
      %v1235 = vmul.f32 %v919, %v919
      %v1236 = vmul.f32 %v1030, %v1030
      %v1237 = vmul.f32 %v1032, %v1032
      %v1238 = vmul.f32 %v810, %v810
      %v1239 = vmul.f32 %v812, %v812
      %v1240 = vmul.f32 %v923, %v923
      %v1241 = vmul.f32 %v925, %v925
      %v1242 = vmul.f32 %v1036, %v1036
      %v1243 = vmul.f32 %v1038, %v1038
      %v1244 = vmul.f32 %v814, %v814
      %v1245 = vmul.f32 %v816, %v816
      %v1246 = vmul.f32 %v927, %v927
      %v1247 = vmul.f32 %v929, %v929
      %v1248 = vmul.f32 %v1040, %v1040
      %v1249 = vmul.f32 %v1042, %v1042
      %v1250 = vmul.f32 %v820, %v820
      %v1251 = vmul.f32 %v822, %v822
      %v1252 = vmul.f32 %v933, %v933
      %v1253 = vmul.f32 %v935, %v935
      %v1254 = vmul.f32 %v1046, %v1046
      %v1255 = vmul.f32 %v1048, %v1048
      %v1256 = vmul.f32 %v824, %v824
      %v1257 = vmul.f32 %v826, %v826
      %v1258 = vmul.f32 %v937, %v937
      %v1259 = vmul.f32 %v939, %v939
      %v1260 = vmul.f32 %v1050, %v1050
      %v1261 = vmul.f32 %v1052, %v1052
      %v1262 = vadd.f32 %v1166, %v1167
      %v1263 = vadd.f32 %v1262, %v1168
      %v1264 = vadd.f32 %v1263, %v1169
      %v1265 = vadd.f32 %v1264, %v1170
      %v1266 = vadd.f32 %v1265, %v1171
      %1267 = vadd.xlane.f32.xlu0 %v1266
      %v1268 = vpop.xlane.xlu0 %1267
      %v1269 = vadd.f32 %v1172, %v1173
      %v1270 = vadd.f32 %v1269, %v1174
      %v1271 = vadd.f32 %v1270, %v1175
      %v1272 = vadd.f32 %v1271, %v1176
      %v1273 = vadd.f32 %v1272, %v1177
      %1274 = vadd.xlane.f32.xlu0 %v1273
      %v1275 = vpop.xlane.xlu0 %1274
      %v1276 = vadd.f32 %v1178, %v1179
      %v1277 = vadd.f32 %v1276, %v1180
      %v1278 = vadd.f32 %v1277, %v1181
      %v1279 = vadd.f32 %v1278, %v1182
      %v1280 = vadd.f32 %v1279, %v1183
      %1281 = vadd.xlane.f32.xlu0 %v1280
      %v1282 = vpop.xlane.xlu0 %1281
      %v1283 = vadd.f32 %v1184, %v1185
      %v1284 = vadd.f32 %v1283, %v1186
      %v1285 = vadd.f32 %v1284, %v1187
      %v1286 = vadd.f32 %v1285, %v1188
      %v1287 = vadd.f32 %v1286, %v1189
      %1288 = vadd.xlane.f32.xlu0 %v1287
      %v1289 = vpop.xlane.xlu0 %1288
      %v1290 = vadd.f32 %v1190, %v1191
      %v1291 = vadd.f32 %v1290, %v1192
      %v1292 = vadd.f32 %v1291, %v1193
      %v1293 = vadd.f32 %v1292, %v1194
      %v1294 = vadd.f32 %v1293, %v1195
      %1295 = vadd.xlane.f32.xlu0 %v1294
      %v1296 = vpop.xlane.xlu0 %1295
      %v1297 = vadd.f32 %v1196, %v1197
      %v1298 = vadd.f32 %v1297, %v1198
      %v1299 = vadd.f32 %v1298, %v1199
      %v1300 = vadd.f32 %v1299, %v1200
      %v1301 = vadd.f32 %v1300, %v1201
      %1302 = vadd.xlane.f32.xlu0 %v1301
      %v1303 = vpop.xlane.xlu0 %1302
      %v1304 = vadd.f32 %v1202, %v1203
      %v1305 = vadd.f32 %v1304, %v1204
      %v1306 = vadd.f32 %v1305, %v1205
      %v1307 = vadd.f32 %v1306, %v1206
      %v1308 = vadd.f32 %v1307, %v1207
      %1309 = vadd.xlane.f32.xlu0 %v1308
      %v1310 = vpop.xlane.xlu0 %1309
      %v1311 = vadd.f32 %v1208, %v1209
      %v1312 = vadd.f32 %v1311, %v1210
      %v1313 = vadd.f32 %v1312, %v1211
      %v1314 = vadd.f32 %v1313, %v1212
      %v1315 = vadd.f32 %v1314, %v1213
      %1316 = vadd.xlane.f32.xlu0 %v1315
      %v1317 = vpop.xlane.xlu0 %1316
      %v1318 = vadd.f32 %v1214, %v1215
      %v1319 = vadd.f32 %v1318, %v1216
      %v1320 = vadd.f32 %v1319, %v1217
      %v1321 = vadd.f32 %v1320, %v1218
      %v1322 = vadd.f32 %v1321, %v1219
      %1323 = vadd.xlane.f32.xlu0 %v1322
      %v1324 = vpop.xlane.xlu0 %1323
      %v1325 = vadd.f32 %v1220, %v1221
      %v1326 = vadd.f32 %v1325, %v1222
      %v1327 = vadd.f32 %v1326, %v1223
      %v1328 = vadd.f32 %v1327, %v1224
      %v1329 = vadd.f32 %v1328, %v1225
      %1330 = vadd.xlane.f32.xlu0 %v1329
      %v1331 = vpop.xlane.xlu0 %1330
      %v1332 = vadd.f32 %v1226, %v1227
      %v1333 = vadd.f32 %v1332, %v1228
      %v1334 = vadd.f32 %v1333, %v1229
      %v1335 = vadd.f32 %v1334, %v1230
      %v1336 = vadd.f32 %v1335, %v1231
      %1337 = vadd.xlane.f32.xlu0 %v1336
      %v1338 = vpop.xlane.xlu0 %1337
      %v1339 = vadd.f32 %v1232, %v1233
      %v1340 = vadd.f32 %v1339, %v1234
      %v1341 = vadd.f32 %v1340, %v1235
      %v1342 = vadd.f32 %v1341, %v1236
      %v1343 = vadd.f32 %v1342, %v1237
      %1344 = vadd.xlane.f32.xlu0 %v1343
      %v1345 = vpop.xlane.xlu0 %1344
      %v1346 = vadd.f32 %v1238, %v1239
      %v1347 = vadd.f32 %v1346, %v1240
      %v1348 = vadd.f32 %v1347, %v1241
      %v1349 = vadd.f32 %v1348, %v1242
      %v1350 = vadd.f32 %v1349, %v1243
      %1351 = vadd.xlane.f32.xlu0 %v1350
      %v1352 = vpop.xlane.xlu0 %1351
      %v1353 = vadd.f32 %v1244, %v1245
      %v1354 = vadd.f32 %v1353, %v1246
      %v1355 = vadd.f32 %v1354, %v1247
      %v1356 = vadd.f32 %v1355, %v1248
      %v1357 = vadd.f32 %v1356, %v1249
      %1358 = vadd.xlane.f32.xlu0 %v1357
      %v1359 = vpop.xlane.xlu0 %1358
      %v1360 = vadd.f32 %v1250, %v1251
      %v1361 = vadd.f32 %v1360, %v1252
      %v1362 = vadd.f32 %v1361, %v1253
      %v1363 = vadd.f32 %v1362, %v1254
      %v1364 = vadd.f32 %v1363, %v1255
      %1365 = vadd.xlane.f32.xlu0 %v1364
      %v1366 = vpop.xlane.xlu0 %1365
      %v1367 = vadd.f32 %v1256, %v1257
      %v1368 = vadd.f32 %v1367, %v1258
      %v1369 = vadd.f32 %v1368, %v1259
      %v1370 = vadd.f32 %v1369, %v1260
      %v1371 = vadd.f32 %v1370, %v1261
      %1372 = vadd.xlane.f32.xlu0 %v1371
      %v1373 = vpop.xlane.xlu0 %1372
      %v1374 = vmul.f32 %v1060, 0.0013020834
      %v1375 = vmul.f32 %v1067, 0.0013020834
      %v1376 = vmul.f32 %v1074, 0.0013020834
      %v1377 = vmul.f32 %v1081, 0.0013020834
      %v1378 = vmul.f32 %v1088, 0.0013020834
      %v1379 = vmul.f32 %v1095, 0.0013020834
      %v1380 = vmul.f32 %v1102, 0.0013020834
      %v1381 = vmul.f32 %v1109, 0.0013020834
      %v1382 = vmul.f32 %v1116, 0.0013020834
      %v1383 = vmul.f32 %v1123, 0.0013020834
      %v1384 = vmul.f32 %v1130, 0.0013020834
      %v1385 = vmul.f32 %v1137, 0.0013020834
      %v1386 = vmul.f32 %v1144, 0.0013020834
      %v1387 = vmul.f32 %v1151, 0.0013020834
      %v1388 = vmul.f32 %v1158, 0.0013020834
      %v1389 = vmul.f32 %v1165, 0.0013020834
      %v1390 = vmul.f32 %v1268, 0.0013020834
      %v1391 = vmul.f32 %v1275, 0.0013020834
      %v1392 = vmul.f32 %v1282, 0.0013020834
      %v1393 = vmul.f32 %v1289, 0.0013020834
      %v1394 = vmul.f32 %v1296, 0.0013020834
      %v1395 = vmul.f32 %v1303, 0.0013020834
      %v1396 = vmul.f32 %v1310, 0.0013020834
      %v1397 = vmul.f32 %v1317, 0.0013020834
      %v1398 = vmul.f32 %v1324, 0.0013020834
      %v1399 = vmul.f32 %v1331, 0.0013020834
      %v1400 = vmul.f32 %v1338, 0.0013020834
      %v1401 = vmul.f32 %v1345, 0.0013020834
      %v1402 = vmul.f32 %v1352, 0.0013020834
      %v1403 = vmul.f32 %v1359, 0.0013020834
      %v1404 = vmul.f32 %v1366, 0.0013020834
      %v1405 = vmul.f32 %v1373, 0.0013020834
      %v1406 = vmul.f32 %v1374, %v1374
      %v1407 = vmul.f32 %v1375, %v1375
      %v1408 = vmul.f32 %v1376, %v1376
      %v1409 = vmul.f32 %v1377, %v1377
      %v1410 = vmul.f32 %v1378, %v1378
      %v1411 = vmul.f32 %v1379, %v1379
      %v1412 = vmul.f32 %v1380, %v1380
      %v1413 = vmul.f32 %v1381, %v1381
      %v1414 = vmul.f32 %v1382, %v1382
      %v1415 = vmul.f32 %v1383, %v1383
      %v1416 = vmul.f32 %v1384, %v1384
      %v1417 = vmul.f32 %v1385, %v1385
      %v1418 = vmul.f32 %v1386, %v1386
      %v1419 = vmul.f32 %v1387, %v1387
      %v1420 = vmul.f32 %v1388, %v1388
      %v1421 = vmul.f32 %v1389, %v1389
      %v1422 = vsub.f32 %v1390, %v1406
      %v1423 = vsub.f32 %v1391, %v1407
      %v1424 = vsub.f32 %v1392, %v1408
      %v1425 = vsub.f32 %v1393, %v1409
      %v1426 = vsub.f32 %v1394, %v1410
      %v1427 = vsub.f32 %v1395, %v1411
      %v1428 = vsub.f32 %v1396, %v1412
      %v1429 = vsub.f32 %v1397, %v1413
      %v1430 = vsub.f32 %v1398, %v1414
      %v1431 = vsub.f32 %v1399, %v1415
      %v1432 = vsub.f32 %v1400, %v1416
      %v1433 = vsub.f32 %v1401, %v1417
      %v1434 = vsub.f32 %v1402, %v1418
      %v1435 = vsub.f32 %v1403, %v1419
      %v1436 = vsub.f32 %v1404, %v1420
      %v1437 = vsub.f32 %v1405, %v1421
      %v1438 = vsub.f32 %v750, %v1374
      %v1439 = vsub.f32 %v752, %v1374
      %v1440 = vsub.f32 %v863, %v1374
      %v1441 = vsub.f32 %v865, %v1374
      %v1442 = vsub.f32 %v976, %v1374
      %v1443 = vsub.f32 %v978, %v1374
      %v1444 = vsub.f32 %v754, %v1375
      %v1445 = vsub.f32 %v756, %v1375
      %v1446 = vsub.f32 %v867, %v1375
      %v1447 = vsub.f32 %v869, %v1375
      %v1448 = vsub.f32 %v980, %v1375
      %v1449 = vsub.f32 %v982, %v1375
      %v1450 = vsub.f32 %v760, %v1376
      %v1451 = vsub.f32 %v762, %v1376
      %v1452 = vsub.f32 %v873, %v1376
      %v1453 = vsub.f32 %v875, %v1376
      %v1454 = vsub.f32 %v986, %v1376
      %v1455 = vsub.f32 %v988, %v1376
      %v1456 = vsub.f32 %v764, %v1377
      %v1457 = vsub.f32 %v766, %v1377
      %v1458 = vsub.f32 %v877, %v1377
      %v1459 = vsub.f32 %v879, %v1377
      %v1460 = vsub.f32 %v990, %v1377
      %v1461 = vsub.f32 %v992, %v1377
      %v1462 = vsub.f32 %v770, %v1378
      %v1463 = vsub.f32 %v772, %v1378
      %v1464 = vsub.f32 %v883, %v1378
      %v1465 = vsub.f32 %v885, %v1378
      %v1466 = vsub.f32 %v996, %v1378
      %v1467 = vsub.f32 %v998, %v1378
      %v1468 = vsub.f32 %v774, %v1379
      %v1469 = vsub.f32 %v776, %v1379
      %v1470 = vsub.f32 %v887, %v1379
      %v1471 = vsub.f32 %v889, %v1379
      %v1472 = vsub.f32 %v1000, %v1379
      %v1473 = vsub.f32 %v1002, %v1379
      %v1474 = vsub.f32 %v780, %v1380
      %v1475 = vsub.f32 %v782, %v1380
      %v1476 = vsub.f32 %v893, %v1380
      %v1477 = vsub.f32 %v895, %v1380
      %v1478 = vsub.f32 %v1006, %v1380
      %v1479 = vsub.f32 %v1008, %v1380
      %v1480 = vsub.f32 %v784, %v1381
      %v1481 = vsub.f32 %v786, %v1381
      %v1482 = vsub.f32 %v897, %v1381
      %v1483 = vsub.f32 %v899, %v1381
      %v1484 = vsub.f32 %v1010, %v1381
      %v1485 = vsub.f32 %v1012, %v1381
      %v1486 = vsub.f32 %v790, %v1382
      %v1487 = vsub.f32 %v792, %v1382
      %v1488 = vsub.f32 %v903, %v1382
      %v1489 = vsub.f32 %v905, %v1382
      %v1490 = vsub.f32 %v1016, %v1382
      %v1491 = vsub.f32 %v1018, %v1382
      %v1492 = vsub.f32 %v794, %v1383
      %v1493 = vsub.f32 %v796, %v1383
      %v1494 = vsub.f32 %v907, %v1383
      %v1495 = vsub.f32 %v909, %v1383
      %v1496 = vsub.f32 %v1020, %v1383
      %v1497 = vsub.f32 %v1022, %v1383
      %v1498 = vsub.f32 %v800, %v1384
      %v1499 = vsub.f32 %v802, %v1384
      %v1500 = vsub.f32 %v913, %v1384
      %v1501 = vsub.f32 %v915, %v1384
      %v1502 = vsub.f32 %v1026, %v1384
      %v1503 = vsub.f32 %v1028, %v1384
      %v1504 = vsub.f32 %v804, %v1385
      %v1505 = vsub.f32 %v806, %v1385
      %v1506 = vsub.f32 %v917, %v1385
      %v1507 = vsub.f32 %v919, %v1385
      %v1508 = vsub.f32 %v1030, %v1385
      %v1509 = vsub.f32 %v1032, %v1385
      %v1510 = vsub.f32 %v810, %v1386
      %v1511 = vsub.f32 %v812, %v1386
      %v1512 = vsub.f32 %v923, %v1386
      %v1513 = vsub.f32 %v925, %v1386
      %v1514 = vsub.f32 %v1036, %v1386
      %v1515 = vsub.f32 %v1038, %v1386
      %v1516 = vsub.f32 %v814, %v1387
      %v1517 = vsub.f32 %v816, %v1387
      %v1518 = vsub.f32 %v927, %v1387
      %v1519 = vsub.f32 %v929, %v1387
      %v1520 = vsub.f32 %v1040, %v1387
      %v1521 = vsub.f32 %v1042, %v1387
      %v1522 = vsub.f32 %v820, %v1388
      %v1523 = vsub.f32 %v822, %v1388
      %v1524 = vsub.f32 %v933, %v1388
      %v1525 = vsub.f32 %v935, %v1388
      %v1526 = vsub.f32 %v1046, %v1388
      %v1527 = vsub.f32 %v1048, %v1388
      %v1528 = vsub.f32 %v824, %v1389
      %v1529 = vsub.f32 %v826, %v1389
      %v1530 = vsub.f32 %v937, %v1389
      %v1531 = vsub.f32 %v939, %v1389
      %v1532 = vsub.f32 %v1050, %v1389
      %v1533 = vsub.f32 %v1052, %v1389
      %v1534 = vadd.f32 %v1422, 1e-05
      %v1535 = vadd.f32 %v1423, 1e-05
      %v1536 = vadd.f32 %v1424, 1e-05
      %v1537 = vadd.f32 %v1425, 1e-05
      %v1538 = vadd.f32 %v1426, 1e-05
      %v1539 = vadd.f32 %v1427, 1e-05
      %v1540 = vadd.f32 %v1428, 1e-05
      %v1541 = vadd.f32 %v1429, 1e-05
      %v1542 = vadd.f32 %v1430, 1e-05
      %v1543 = vadd.f32 %v1431, 1e-05
      %v1544 = vadd.f32 %v1432, 1e-05
      %v1545 = vadd.f32 %v1433, 1e-05
      %v1546 = vadd.f32 %v1434, 1e-05
      %v1547 = vadd.f32 %v1435, 1e-05
      %v1548 = vadd.f32 %v1436, 1e-05
      %v1549 = vadd.f32 %v1437, 1e-05
      %v1550 = vrsqrt.pop %v1534
      %v1551 = vrsqrt.pop %v1535
      %v1552 = vrsqrt.pop %v1536
      %v1553 = vrsqrt.pop %v1537
      %v1554 = vrsqrt.pop %v1538
      %v1555 = vrsqrt.pop %v1539
      %v1556 = vrsqrt.pop %v1540
      %v1557 = vrsqrt.pop %v1541
      %v1558 = vrsqrt.pop %v1542
      %v1559 = vrsqrt.pop %v1543
      %v1560 = vrsqrt.pop %v1544
      %v1561 = vrsqrt.pop %v1545
      %v1562 = vrsqrt.pop %v1546
      %v1563 = vrsqrt.pop %v1547
      %v1564 = vrsqrt.pop %v1548
      %v1565 = vrsqrt.pop %v1549
      %v1566 = vmul.f32 %v1438, %v1550
      %v1567 = vmul.f32 %v1439, %v1550
      %v1568 = vmul.f32 %v1440, %v1550
      %v1569 = vmul.f32 %v1441, %v1550
      %v1570 = vmul.f32 %v1442, %v1550
      %v1571 = vmul.f32 %v1443, %v1550
      %v1572 = vmul.f32 %v1444, %v1551
      %v1573 = vmul.f32 %v1445, %v1551
      %v1574 = vmul.f32 %v1446, %v1551
      %v1575 = vmul.f32 %v1447, %v1551
      %v1576 = vmul.f32 %v1448, %v1551
      %v1577 = vmul.f32 %v1449, %v1551
      %v1578 = vmul.f32 %v1450, %v1552
      %v1579 = vmul.f32 %v1451, %v1552
      %v1580 = vmul.f32 %v1452, %v1552
      %v1581 = vmul.f32 %v1453, %v1552
      %v1582 = vmul.f32 %v1454, %v1552
      %v1583 = vmul.f32 %v1455, %v1552
      %v1584 = vmul.f32 %v1456, %v1553
      %v1585 = vmul.f32 %v1457, %v1553
      %v1586 = vmul.f32 %v1458, %v1553
      %v1587 = vmul.f32 %v1459, %v1553
      %v1588 = vmul.f32 %v1460, %v1553
      %v1589 = vmul.f32 %v1461, %v1553
      %v1590 = vmul.f32 %v1462, %v1554
      %v1591 = vmul.f32 %v1463, %v1554
      %v1592 = vmul.f32 %v1464, %v1554
      %v1593 = vmul.f32 %v1465, %v1554
      %v1594 = vmul.f32 %v1466, %v1554
      %v1595 = vmul.f32 %v1467, %v1554
      %v1596 = vmul.f32 %v1468, %v1555
      %v1597 = vmul.f32 %v1469, %v1555
      %v1598 = vmul.f32 %v1470, %v1555
      %v1599 = vmul.f32 %v1471, %v1555
      %v1600 = vmul.f32 %v1472, %v1555
      %v1601 = vmul.f32 %v1473, %v1555
      %v1602 = vmul.f32 %v1474, %v1556
      %v1603 = vmul.f32 %v1475, %v1556
      %v1604 = vmul.f32 %v1476, %v1556
      %v1605 = vmul.f32 %v1477, %v1556
      %v1606 = vmul.f32 %v1478, %v1556
      %v1607 = vmul.f32 %v1479, %v1556
      %v1608 = vmul.f32 %v1480, %v1557
      %v1609 = vmul.f32 %v1481, %v1557
      %v1610 = vmul.f32 %v1482, %v1557
      %v1611 = vmul.f32 %v1483, %v1557
      %v1612 = vmul.f32 %v1484, %v1557
      %v1613 = vmul.f32 %v1485, %v1557
      %v1614 = vmul.f32 %v1486, %v1558
      %v1615 = vmul.f32 %v1487, %v1558
      %v1616 = vmul.f32 %v1488, %v1558
      %v1617 = vmul.f32 %v1489, %v1558
      %v1618 = vmul.f32 %v1490, %v1558
      %v1619 = vmul.f32 %v1491, %v1558
      %v1620 = vmul.f32 %v1492, %v1559
      %v1621 = vmul.f32 %v1493, %v1559
      %v1622 = vmul.f32 %v1494, %v1559
      %v1623 = vmul.f32 %v1495, %v1559
      %v1624 = vmul.f32 %v1496, %v1559
      %v1625 = vmul.f32 %v1497, %v1559
      %v1626 = vmul.f32 %v1498, %v1560
      %v1627 = vmul.f32 %v1499, %v1560
      %v1628 = vmul.f32 %v1500, %v1560
      %v1629 = vmul.f32 %v1501, %v1560
      %v1630 = vmul.f32 %v1502, %v1560
      %v1631 = vmul.f32 %v1503, %v1560
      %v1632 = vmul.f32 %v1504, %v1561
      %v1633 = vmul.f32 %v1505, %v1561
      %v1634 = vmul.f32 %v1506, %v1561
      %v1635 = vmul.f32 %v1507, %v1561
      %v1636 = vmul.f32 %v1508, %v1561
      %v1637 = vmul.f32 %v1509, %v1561
      %v1638 = vmul.f32 %v1510, %v1562
      %v1639 = vmul.f32 %v1511, %v1562
      %v1640 = vmul.f32 %v1512, %v1562
      %v1641 = vmul.f32 %v1513, %v1562
      %v1642 = vmul.f32 %v1514, %v1562
      %v1643 = vmul.f32 %v1515, %v1562
      %v1644 = vmul.f32 %v1516, %v1563
      %v1645 = vmul.f32 %v1517, %v1563
      %v1646 = vmul.f32 %v1518, %v1563
      %v1647 = vmul.f32 %v1519, %v1563
      %v1648 = vmul.f32 %v1520, %v1563
      %v1649 = vmul.f32 %v1521, %v1563
      %v1650 = vmul.f32 %v1522, %v1564
      %v1651 = vmul.f32 %v1523, %v1564
      %v1652 = vmul.f32 %v1524, %v1564
      %v1653 = vmul.f32 %v1525, %v1564
      %v1654 = vmul.f32 %v1526, %v1564
      %v1655 = vmul.f32 %v1527, %v1564
      %v1656 = vmul.f32 %v1528, %v1565
      %v1657 = vmul.f32 %v1529, %v1565
      %v1658 = vmul.f32 %v1530, %v1565
      %v1659 = vmul.f32 %v1531, %v1565
      %v1660 = vmul.f32 %v1532, %v1565
      %v1661 = vmul.f32 %v1533, %v1565
      %v1662 = vld [vmem:[%s314] sm:$0x3f]
      %v1664 = vlaneseq
      %v1665 = vshrl.u32 %v1664, 7
      %v1666 = vsub.s32 0, %v1665
      %v1667 = vrot.slane %v1662, %v1666
      %v1668 = vlaneseq
      %v1669 = vshrl.u32 %v1668, 7
      %v1670 = vsub.s32 1, %v1669
      %v1671 = vrot.slane %v1662, %v1670
      %v1672 = vlaneseq
      %v1673 = vshrl.u32 %v1672, 7
      %v1674 = vsub.s32 2, %v1673
      %v1675 = vrot.slane %v1662, %v1674
      %v1676 = vlaneseq
      %v1677 = vshrl.u32 %v1676, 7
      %v1678 = vsub.s32 3, %v1677
      %v1679 = vrot.slane %v1662, %v1678
      %v1680 = vlaneseq
      %v1681 = vshrl.u32 %v1680, 7
      %v1682 = vsub.s32 4, %v1681
      %v1683 = vrot.slane %v1662, %v1682
      %v1684 = vlaneseq
      %v1685 = vshrl.u32 %v1684, 7
      %v1686 = vsub.s32 5, %v1685
      %v1687 = vrot.slane %v1662, %v1686
      %v1694 = vmul.f32 %v1566, %v1667
      %v1695 = vmul.f32 %v1567, %v1671
      %v1696 = vmul.f32 %v1568, %v1675
      %v1697 = vmul.f32 %v1569, %v1679
      %v1698 = vmul.f32 %v1570, %v1683
      %v1699 = vmul.f32 %v1571, %v1687
      %v1700 = vmul.f32 %v1572, %v1667
      %v1701 = vmul.f32 %v1573, %v1671
      %v1702 = vmul.f32 %v1574, %v1675
      %v1703 = vmul.f32 %v1575, %v1679
      %v1704 = vmul.f32 %v1576, %v1683
      %v1705 = vmul.f32 %v1577, %v1687
      %v1706 = vmul.f32 %v1578, %v1667
      %v1707 = vmul.f32 %v1579, %v1671
      %v1708 = vmul.f32 %v1580, %v1675
      %v1709 = vmul.f32 %v1581, %v1679
      %v1710 = vmul.f32 %v1582, %v1683
      %v1711 = vmul.f32 %v1583, %v1687
      %v1712 = vmul.f32 %v1584, %v1667
      %v1713 = vmul.f32 %v1585, %v1671
      %v1714 = vmul.f32 %v1586, %v1675
      %v1715 = vmul.f32 %v1587, %v1679
      %v1716 = vmul.f32 %v1588, %v1683
      %v1717 = vmul.f32 %v1589, %v1687
      %v1718 = vmul.f32 %v1590, %v1667
      %v1719 = vmul.f32 %v1591, %v1671
      %v1720 = vmul.f32 %v1592, %v1675
      %v1721 = vmul.f32 %v1593, %v1679
      %v1722 = vmul.f32 %v1594, %v1683
      %v1723 = vmul.f32 %v1595, %v1687
      %v1724 = vmul.f32 %v1596, %v1667
      %v1725 = vmul.f32 %v1597, %v1671
      %v1726 = vmul.f32 %v1598, %v1675
      %v1727 = vmul.f32 %v1599, %v1679
      %v1728 = vmul.f32 %v1600, %v1683
      %v1729 = vmul.f32 %v1601, %v1687
      %v1730 = vmul.f32 %v1602, %v1667
      %v1731 = vmul.f32 %v1603, %v1671
      %v1732 = vmul.f32 %v1604, %v1675
      %v1733 = vmul.f32 %v1605, %v1679
      %v1734 = vmul.f32 %v1606, %v1683
      %v1735 = vmul.f32 %v1607, %v1687
      %v1736 = vmul.f32 %v1608, %v1667
      %v1737 = vmul.f32 %v1609, %v1671
      %v1738 = vmul.f32 %v1610, %v1675
      %v1739 = vmul.f32 %v1611, %v1679
      %v1740 = vmul.f32 %v1612, %v1683
      %v1741 = vmul.f32 %v1613, %v1687
      %v1742 = vmul.f32 %v1614, %v1667
      %v1743 = vmul.f32 %v1615, %v1671
      %v1744 = vmul.f32 %v1616, %v1675
      %v1745 = vmul.f32 %v1617, %v1679
      %v1746 = vmul.f32 %v1618, %v1683
      %v1747 = vmul.f32 %v1619, %v1687
      %v1748 = vmul.f32 %v1620, %v1667
      %v1749 = vmul.f32 %v1621, %v1671
      %v1750 = vmul.f32 %v1622, %v1675
      %v1751 = vmul.f32 %v1623, %v1679
      %v1752 = vmul.f32 %v1624, %v1683
      %v1753 = vmul.f32 %v1625, %v1687
      %v1754 = vmul.f32 %v1626, %v1667
      %v1755 = vmul.f32 %v1627, %v1671
      %v1756 = vmul.f32 %v1628, %v1675
      %v1757 = vmul.f32 %v1629, %v1679
      %v1758 = vmul.f32 %v1630, %v1683
      %v1759 = vmul.f32 %v1631, %v1687
      %v1760 = vmul.f32 %v1632, %v1667
      %v1761 = vmul.f32 %v1633, %v1671
      %v1762 = vmul.f32 %v1634, %v1675
      %v1763 = vmul.f32 %v1635, %v1679
      %v1764 = vmul.f32 %v1636, %v1683
      %v1765 = vmul.f32 %v1637, %v1687
      %v1766 = vmul.f32 %v1638, %v1667
      %v1767 = vmul.f32 %v1639, %v1671
      %v1768 = vmul.f32 %v1640, %v1675
      %v1769 = vmul.f32 %v1641, %v1679
      %v1770 = vmul.f32 %v1642, %v1683
      %v1771 = vmul.f32 %v1643, %v1687
      %v1772 = vmul.f32 %v1644, %v1667
      %v1773 = vmul.f32 %v1645, %v1671
      %v1774 = vmul.f32 %v1646, %v1675
      %v1775 = vmul.f32 %v1647, %v1679
      %v1776 = vmul.f32 %v1648, %v1683
      %v1777 = vmul.f32 %v1649, %v1687
      %v1778 = vmul.f32 %v1650, %v1667
      %v1779 = vmul.f32 %v1651, %v1671
      %v1780 = vmul.f32 %v1652, %v1675
      %v1781 = vmul.f32 %v1653, %v1679
      %v1782 = vmul.f32 %v1654, %v1683
      %v1783 = vmul.f32 %v1655, %v1687
      %v1784 = vmul.f32 %v1656, %v1667
      %v1785 = vmul.f32 %v1657, %v1671
      %v1786 = vmul.f32 %v1658, %v1675
      %v1787 = vmul.f32 %v1659, %v1679
      %v1788 = vmul.f32 %v1660, %v1683
      %v1789 = vmul.f32 %v1661, %v1687
      %v1790 = vld [vmem:[%s318] sm:$0x3f]
      %v1792 = vlaneseq
      %v1793 = vshrl.u32 %v1792, 7
      %v1794 = vsub.s32 0, %v1793
      %v1795 = vrot.slane %v1790, %v1794
      %v1796 = vlaneseq
      %v1797 = vshrl.u32 %v1796, 7
      %v1798 = vsub.s32 1, %v1797
      %v1799 = vrot.slane %v1790, %v1798
      %v1800 = vlaneseq
      %v1801 = vshrl.u32 %v1800, 7
      %v1802 = vsub.s32 2, %v1801
      %v1803 = vrot.slane %v1790, %v1802
      %v1804 = vlaneseq
      %v1805 = vshrl.u32 %v1804, 7
      %v1806 = vsub.s32 3, %v1805
      %v1807 = vrot.slane %v1790, %v1806
      %v1808 = vlaneseq
      %v1809 = vshrl.u32 %v1808, 7
      %v1810 = vsub.s32 4, %v1809
      %v1811 = vrot.slane %v1790, %v1810
      %v1812 = vlaneseq
      %v1813 = vshrl.u32 %v1812, 7
      %v1814 = vsub.s32 5, %v1813
      %v1815 = vrot.slane %v1790, %v1814
      %v1822 = vadd.f32 %v1694, %v1795
      %v1823 = vadd.f32 %v1695, %v1799
      %v1824 = vadd.f32 %v1696, %v1803
      %v1825 = vadd.f32 %v1697, %v1807
      %v1826 = vadd.f32 %v1698, %v1811
      %v1827 = vadd.f32 %v1699, %v1815
      %v1828 = vadd.f32 %v1700, %v1795
      %v1829 = vadd.f32 %v1701, %v1799
      %v1830 = vadd.f32 %v1702, %v1803
      %v1831 = vadd.f32 %v1703, %v1807
      %v1832 = vadd.f32 %v1704, %v1811
      %v1833 = vadd.f32 %v1705, %v1815
      %v1834 = vadd.f32 %v1706, %v1795
      %v1835 = vadd.f32 %v1707, %v1799
      %v1836 = vadd.f32 %v1708, %v1803
      %v1837 = vadd.f32 %v1709, %v1807
      %v1838 = vadd.f32 %v1710, %v1811
      %v1839 = vadd.f32 %v1711, %v1815
      %v1840 = vadd.f32 %v1712, %v1795
      %v1841 = vadd.f32 %v1713, %v1799
      %v1842 = vadd.f32 %v1714, %v1803
      %v1843 = vadd.f32 %v1715, %v1807
      %v1844 = vadd.f32 %v1716, %v1811
      %v1845 = vadd.f32 %v1717, %v1815
      %v1846 = vadd.f32 %v1718, %v1795
      %v1847 = vadd.f32 %v1719, %v1799
      %v1848 = vadd.f32 %v1720, %v1803
      %v1849 = vadd.f32 %v1721, %v1807
      %v1850 = vadd.f32 %v1722, %v1811
      %v1851 = vadd.f32 %v1723, %v1815
      %v1852 = vadd.f32 %v1724, %v1795
      %v1853 = vadd.f32 %v1725, %v1799
      %v1854 = vadd.f32 %v1726, %v1803
      %v1855 = vadd.f32 %v1727, %v1807
      %v1856 = vadd.f32 %v1728, %v1811
      %v1857 = vadd.f32 %v1729, %v1815
      %v1858 = vadd.f32 %v1730, %v1795
      %v1859 = vadd.f32 %v1731, %v1799
      %v1860 = vadd.f32 %v1732, %v1803
      %v1861 = vadd.f32 %v1733, %v1807
      %v1862 = vadd.f32 %v1734, %v1811
      %v1863 = vadd.f32 %v1735, %v1815
      %v1864 = vadd.f32 %v1736, %v1795
      %v1865 = vadd.f32 %v1737, %v1799
      %v1866 = vadd.f32 %v1738, %v1803
      %v1867 = vadd.f32 %v1739, %v1807
      %v1868 = vadd.f32 %v1740, %v1811
      %v1869 = vadd.f32 %v1741, %v1815
      %v1870 = vadd.f32 %v1742, %v1795
      %v1871 = vadd.f32 %v1743, %v1799
      %v1872 = vadd.f32 %v1744, %v1803
      %v1873 = vadd.f32 %v1745, %v1807
      %v1874 = vadd.f32 %v1746, %v1811
      %v1875 = vadd.f32 %v1747, %v1815
      %v1876 = vadd.f32 %v1748, %v1795
      %v1877 = vadd.f32 %v1749, %v1799
      %v1878 = vadd.f32 %v1750, %v1803
      %v1879 = vadd.f32 %v1751, %v1807
      %v1880 = vadd.f32 %v1752, %v1811
      %v1881 = vadd.f32 %v1753, %v1815
      %v1882 = vadd.f32 %v1754, %v1795
      %v1883 = vadd.f32 %v1755, %v1799
      %v1884 = vadd.f32 %v1756, %v1803
      %v1885 = vadd.f32 %v1757, %v1807
      %v1886 = vadd.f32 %v1758, %v1811
      %v1887 = vadd.f32 %v1759, %v1815
      %v1888 = vadd.f32 %v1760, %v1795
      %v1889 = vadd.f32 %v1761, %v1799
      %v1890 = vadd.f32 %v1762, %v1803
      %v1891 = vadd.f32 %v1763, %v1807
      %v1892 = vadd.f32 %v1764, %v1811
      %v1893 = vadd.f32 %v1765, %v1815
      %v1894 = vadd.f32 %v1766, %v1795
      %v1895 = vadd.f32 %v1767, %v1799
      %v1896 = vadd.f32 %v1768, %v1803
      %v1897 = vadd.f32 %v1769, %v1807
      %v1898 = vadd.f32 %v1770, %v1811
      %v1899 = vadd.f32 %v1771, %v1815
      %v1900 = vadd.f32 %v1772, %v1795
      %v1901 = vadd.f32 %v1773, %v1799
      %v1902 = vadd.f32 %v1774, %v1803
      %v1903 = vadd.f32 %v1775, %v1807
      %v1904 = vadd.f32 %v1776, %v1811
      %v1905 = vadd.f32 %v1777, %v1815
      %v1906 = vadd.f32 %v1778, %v1795
      %v1907 = vadd.f32 %v1779, %v1799
      %v1908 = vadd.f32 %v1780, %v1803
      %v1909 = vadd.f32 %v1781, %v1807
      %v1910 = vadd.f32 %v1782, %v1811
      %v1911 = vadd.f32 %v1783, %v1815
      %v1912 = vadd.f32 %v1784, %v1795
      %v1913 = vadd.f32 %v1785, %v1799
      %v1914 = vadd.f32 %v1786, %v1803
      %v1915 = vadd.f32 %v1787, %v1807
      %v1916 = vadd.f32 %v1788, %v1811
      %v1917 = vadd.f32 %v1789, %v1815
      %v1918 = vld [vmem:[#allocation2] sm:$0xff]
      %v1919 = vld [vmem:[#allocation2 + $0x8] sm:$0xf]
      %v1920 = vadd.f32 %v1822, %v1828
      %v1921 = vadd.f32 %v1920, %v1834
      %v1922 = vadd.f32 %v1921, %v1840
      %v1923 = vadd.f32 %v1922, %v1846
      %v1924 = vadd.f32 %v1923, %v1852
      %v1925 = vadd.f32 %v1924, %v1858
      %v1926 = vadd.f32 %v1925, %v1864
      %v1927 = vrot.slane %v1926, 4
      %v1928 = vadd.f32 %v1926, %v1927
      %v1929 = vrot.slane %v1928, 2
      %v1930 = vadd.f32 %v1928, %v1929
      %v1931 = vrot.slane %v1930, 1
      %v1932 = vadd.f32 %v1930, %v1931
      %v1933 = vadd.f32 %v1823, %v1829
      %v1934 = vadd.f32 %v1933, %v1835
      %v1935 = vadd.f32 %v1934, %v1841
      %v1936 = vadd.f32 %v1935, %v1847
      %v1937 = vadd.f32 %v1936, %v1853
      %v1938 = vadd.f32 %v1937, %v1859
      %v1939 = vadd.f32 %v1938, %v1865
      %v1940 = vrot.slane %v1939, 4
      %v1941 = vadd.f32 %v1939, %v1940
      %v1942 = vrot.slane %v1941, 2
      %v1943 = vadd.f32 %v1941, %v1942
      %v1944 = vrot.slane %v1943, 1
      %v1945 = vadd.f32 %v1943, %v1944
      %v1946 = vadd.f32 %v1824, %v1830
      %v1947 = vadd.f32 %v1946, %v1836
      %v1948 = vadd.f32 %v1947, %v1842
      %v1949 = vadd.f32 %v1948, %v1848
      %v1950 = vadd.f32 %v1949, %v1854
      %v1951 = vadd.f32 %v1950, %v1860
      %v1952 = vadd.f32 %v1951, %v1866
      %v1953 = vrot.slane %v1952, 4
      %v1954 = vadd.f32 %v1952, %v1953
      %v1955 = vrot.slane %v1954, 2
      %v1956 = vadd.f32 %v1954, %v1955
      %v1957 = vrot.slane %v1956, 1
      %v1958 = vadd.f32 %v1956, %v1957
      %v1959 = vadd.f32 %v1825, %v1831
      %v1960 = vadd.f32 %v1959, %v1837
      %v1961 = vadd.f32 %v1960, %v1843
      %v1962 = vadd.f32 %v1961, %v1849
      %v1963 = vadd.f32 %v1962, %v1855
      %v1964 = vadd.f32 %v1963, %v1861
      %v1965 = vadd.f32 %v1964, %v1867
      %v1966 = vrot.slane %v1965, 4
      %v1967 = vadd.f32 %v1965, %v1966
      %v1968 = vrot.slane %v1967, 2
      %v1969 = vadd.f32 %v1967, %v1968
      %v1970 = vrot.slane %v1969, 1
      %v1971 = vadd.f32 %v1969, %v1970
      %v1972 = vadd.f32 %v1826, %v1832
      %v1973 = vadd.f32 %v1972, %v1838
      %v1974 = vadd.f32 %v1973, %v1844
      %v1975 = vadd.f32 %v1974, %v1850
      %v1976 = vadd.f32 %v1975, %v1856
      %v1977 = vadd.f32 %v1976, %v1862
      %v1978 = vadd.f32 %v1977, %v1868
      %v1979 = vrot.slane %v1978, 4
      %v1980 = vadd.f32 %v1978, %v1979
      %v1981 = vrot.slane %v1980, 2
      %v1982 = vadd.f32 %v1980, %v1981
      %v1983 = vrot.slane %v1982, 1
      %v1984 = vadd.f32 %v1982, %v1983
      %v1985 = vadd.f32 %v1827, %v1833
      %v1986 = vadd.f32 %v1985, %v1839
      %v1987 = vadd.f32 %v1986, %v1845
      %v1988 = vadd.f32 %v1987, %v1851
      %v1989 = vadd.f32 %v1988, %v1857
      %v1990 = vadd.f32 %v1989, %v1863
      %v1991 = vadd.f32 %v1990, %v1869
      %v1992 = vrot.slane %v1991, 4
      %v1993 = vadd.f32 %v1991, %v1992
      %v1994 = vrot.slane %v1993, 2
      %v1995 = vadd.f32 %v1993, %v1994
      %v1996 = vrot.slane %v1995, 1
      %v1997 = vadd.f32 %v1995, %v1996
      %v1998 = vadd.f32 %v1870, %v1876
      %v1999 = vadd.f32 %v1998, %v1882
      %v2000 = vadd.f32 %v1999, %v1888
      %v2001 = vadd.f32 %v2000, %v1894
      %v2002 = vadd.f32 %v2001, %v1900
      %v2003 = vadd.f32 %v2002, %v1906
      %v2004 = vadd.f32 %v2003, %v1912
      %v2005 = vrot.slane %v2004, 4
      %v2006 = vadd.f32 %v2004, %v2005
      %v2007 = vrot.slane %v2006, 2
      %v2008 = vadd.f32 %v2006, %v2007
      %v2009 = vrot.slane %v2008, 1
      %v2010 = vadd.f32 %v2008, %v2009
      %v2011 = vadd.f32 %v1871, %v1877
      %v2012 = vadd.f32 %v2011, %v1883
      %v2013 = vadd.f32 %v2012, %v1889
      %v2014 = vadd.f32 %v2013, %v1895
      %v2015 = vadd.f32 %v2014, %v1901
      %v2016 = vadd.f32 %v2015, %v1907
      %v2017 = vadd.f32 %v2016, %v1913
      %v2018 = vrot.slane %v2017, 4
      %v2019 = vadd.f32 %v2017, %v2018
      %v2020 = vrot.slane %v2019, 2
      %v2021 = vadd.f32 %v2019, %v2020
      %v2022 = vrot.slane %v2021, 1
      %v2023 = vadd.f32 %v2021, %v2022
      %v2024 = vadd.f32 %v1872, %v1878
      %v2025 = vadd.f32 %v2024, %v1884
      %v2026 = vadd.f32 %v2025, %v1890
      %v2027 = vadd.f32 %v2026, %v1896
      %v2028 = vadd.f32 %v2027, %v1902
      %v2029 = vadd.f32 %v2028, %v1908
      %v2030 = vadd.f32 %v2029, %v1914
      %v2031 = vrot.slane %v2030, 4
      %v2032 = vadd.f32 %v2030, %v2031
      %v2033 = vrot.slane %v2032, 2
      %v2034 = vadd.f32 %v2032, %v2033
      %v2035 = vrot.slane %v2034, 1
      %v2036 = vadd.f32 %v2034, %v2035
      %v2037 = vadd.f32 %v1873, %v1879
      %v2038 = vadd.f32 %v2037, %v1885
      %v2039 = vadd.f32 %v2038, %v1891
      %v2040 = vadd.f32 %v2039, %v1897
      %v2041 = vadd.f32 %v2040, %v1903
      %v2042 = vadd.f32 %v2041, %v1909
      %v2043 = vadd.f32 %v2042, %v1915
      %v2044 = vrot.slane %v2043, 4
      %v2045 = vadd.f32 %v2043, %v2044
      %v2046 = vrot.slane %v2045, 2
      %v2047 = vadd.f32 %v2045, %v2046
      %v2048 = vrot.slane %v2047, 1
      %v2049 = vadd.f32 %v2047, %v2048
      %v2050 = vadd.f32 %v1874, %v1880
      %v2051 = vadd.f32 %v2050, %v1886
      %v2052 = vadd.f32 %v2051, %v1892
      %v2053 = vadd.f32 %v2052, %v1898
      %v2054 = vadd.f32 %v2053, %v1904
      %v2055 = vadd.f32 %v2054, %v1910
      %v2056 = vadd.f32 %v2055, %v1916
      %v2057 = vrot.slane %v2056, 4
      %v2058 = vadd.f32 %v2056, %v2057
      %v2059 = vrot.slane %v2058, 2
      %v2060 = vadd.f32 %v2058, %v2059
      %v2061 = vrot.slane %v2060, 1
      %v2062 = vadd.f32 %v2060, %v2061
      %v2063 = vadd.f32 %v1875, %v1881
      %v2064 = vadd.f32 %v2063, %v1887
      %v2065 = vadd.f32 %v2064, %v1893
      %v2066 = vadd.f32 %v2065, %v1899
      %v2067 = vadd.f32 %v2066, %v1905
      %v2068 = vadd.f32 %v2067, %v1911
      %v2069 = vadd.f32 %v2068, %v1917
      %v2070 = vrot.slane %v2069, 4
      %v2071 = vadd.f32 %v2069, %v2070
      %v2072 = vrot.slane %v2071, 2
      %v2073 = vadd.f32 %v2071, %v2072
      %v2074 = vrot.slane %v2073, 1
      %v2075 = vadd.f32 %v2073, %v2074
      %v2088 = vcombine.low %v1932, %v1945
      %v2089 = vcombine.low %v1958, %v1971
      %v2091 = vunpack.c.l.s4 1983009808
      %v2092 = vunpack.c.0.s8 %v2091
      %v2093 = vlaneseq
      %v2094 = vshrl.u32 %v2093, 7
      %v2095 = vsub.s32 %v2092, %v2094
      %v2096 = vrot.slane %v2088, %v2095
      %v2098 = vunpack.c.l.s4 1983009808
      %v2099 = vunpack.c.0.s8 %v2098
      %v2100 = vlaneseq
      %v2101 = vshrl.u32 %v2100, 7
      %v2102 = vsub.s32 %v2099, %v2101
      %v2103 = vrot.slane %v2089, %v2102
      %v2104 = vcombine.low %v2096, %v2103
      %v2105 = vcombine.low %v1984, %v1997
      %v2107 = vunpack.c.l.s4 1983009808
      %v2108 = vunpack.c.0.s8 %v2107
      %v2109 = vlaneseq
      %v2110 = vshrl.u32 %v2109, 7
      %v2111 = vsub.s32 %v2108, %v2110
      %v2112 = vrot.slane %v2105, %v2111
      %v2113 = vcombine.low %v2010, %v2023
      %v2114 = vcombine.low %v2036, %v2049
      %v2116 = vunpack.c.l.s4 1983009808
      %v2117 = vunpack.c.0.s8 %v2116
      %v2118 = vlaneseq
      %v2119 = vshrl.u32 %v2118, 7
      %v2120 = vsub.s32 %v2117, %v2119
      %v2121 = vrot.slane %v2113, %v2120
      %v2123 = vunpack.c.l.s4 1983009808
      %v2124 = vunpack.c.0.s8 %v2123
      %v2125 = vlaneseq
      %v2126 = vshrl.u32 %v2125, 7
      %v2127 = vsub.s32 %v2124, %v2126
      %v2128 = vrot.slane %v2114, %v2127
      %v2129 = vcombine.low %v2121, %v2128
      %v2130 = vcombine.low %v2062, %v2075
      %v2132 = vunpack.c.l.s4 1983009808
      %v2133 = vunpack.c.0.s8 %v2132
      %v2134 = vlaneseq
      %v2135 = vshrl.u32 %v2134, 7
      %v2136 = vsub.s32 %v2133, %v2135
      %v2137 = vrot.slane %v2130, %v2136
      %vm2138 = vcmask 1044484
      %v2139 = vsel %vm2138, %v2104, %v2104
      %vm2140 = vcmask 1046534
      %v2141 = vsel %vm2140, %v2104, %v2139
      %v2142 = vrot.slane %v2129, 7
      %vm2143 = vcmask 1041409
      %v2144 = vsel %vm2143, %v2142, %v2141
      %vm2145 = vcmask 1043459
      %v2146 = vsel %vm2145, %v2142, %v2144
      %vm2147 = vcmask 1045509
      %v2148 = vsel %vm2147, %v2142, %v2146
      %vm2149 = vcmask 1047559
      %v2150 = vsel %vm2149, %v2142, %v2148
      %v2151 = vsel %vm2138, %v2112, %v2112
      %v2152 = vsel %vm2140, %v2112, %v2151
      %v2153 = vrot.slane %v2137, 7
      %v2154 = vsel %vm2143, %v2153, %v2152
      %v2155 = vsel %vm2145, %v2153, %v2154
      %v2156 = vsel %vm2147, %v2153, %v2155
      %v2157 = vsel %vm2149, %v2153, %v2156
      %v2160 = vadd.f32 %v1918, %v2150
      %v2161 = vadd.f32 %v1919, %v2157
      %2162 = vst [vmem:[#allocation2] sm:$0xff] %v2160
      %2163 = vst [vmem:[#allocation2 + $0x8] sm:$0xf] %v2161
      // Predicated region
      $region45: #{_forward.2} parent=39 // pred_check
        %p2164 = pneg %p325
      $region46: #{_forward.2} parent=39 // pred_check_branch
        %2166 = sbr.rel (%p2164) target = $region48
      $region47: #{_forward.2} parent=39 // pred_region
        %v2167 = vld [vmem:[#allocation2] sm:$0xff]
        %v2168 = vld [vmem:[#allocation2 + $0x8] sm:$0xf]
        %v2169 = vmul.f32 %v2167, 0.015625
        %v2170 = vmul.f32 %v2168, 0.015625
        %2171 = vst [vmem:[%s323] sm:$0xff] %v2169
        %2172 = vst [vmem:[%s323 + $0x8] sm:$0xf] %v2170
      $region48: #{_forward.2} parent=39 // pred_fallthru
        _
      %p2173 = scmp.lt.s32.totalorder %s20, 2
      %s2174 = scalar_select %p2173, %s20, 2
      %s2175 = smul.addr %s2174, 6
      %s2176 = smul.addr %s2175, 2
      %s2177 = scalar_lea.vmem %s5, %s2176
      // Predicated region
      $region49: #{_forward.2} parent=39 // pred_check
        %p2178 = pneg %p178
      $region50: #{_forward.2} parent=39 // pred_check_branch
        %2180 = sbr.rel (%p2178) target = $region52
      $region51: #{_forward.2} parent=39 // pred_region
        _
      $region52: #{_forward.2} parent=39 // pred_fallthru
        _
    $region40: #{_forward.2} parent=5 // pred_fallthru
      _
    %p2181 = scmp.le.s32.totalorder 2, %s11
    // Predicated region
    $region53: #{_forward.2} parent=5 // pred_check
      %p2182 = pneg %p2181
    $region54: #{_forward.2} parent=5 // pred_check_branch
      %2184 = sbr.rel (%p2182) target = $region56
    $region55: #{_forward.2} parent=5 // pred_region
      %s2185 = ssub.s32 %s11, 2
      // Predicated region
      $region57: #{_forward.2} parent=55 // pred_check
        %p2186 = pneg %p184
      $region58: #{_forward.2} parent=55 // pred_check_branch
        %2188 = sbr.rel (%p2186) target = $region60
      $region59: #{_forward.2} parent=55 // pred_region
        %p2189 = scmp.lt.s32.totalorder %s22, 2
        %s2190 = scalar_select %p2189, %s22, 2
        %s2191 = smul.addr %s2190, 6
        %s2192 = smul.addr %s2191, 2
        %s2193 = scalar_lea.vmem %s5, %s2192
      $region60: #{_forward.2} parent=55 // pred_fallthru
        _
    $region56: #{_forward.2} parent=5 // pred_fallthru
      _
  $region6: #{_forward.2} parent=0 // loop_footer
    %s15 = sadd.s32 1, %s11
  $region7: #{_forward.2} parent=0 // loop_footer_branch
    %10 = sbr.rel target = $region3
  $region8: #{_forward.2} parent=0 // loop_exit
    _

// kernel: _forward.3
$region0: #{_forward.3}
  #allocation0 [shape = 'u32[]', space=smem, size = 0x4, offset = 0x4, fixed_abs, tag = 'smem constant byte address 0x4 - core index']
  #allocation1 [shape = 'u32[144,128]{1,0:T(1,128)}', space=vmem, size = 0x12000, scoped, tag = 'internal scratch']
  #allocation2 [shape = 'f32[1,1]{1,0:T(1,128)S(1)}', space=vmem, size = 0x200, scoped, tag = 'scoped memory for _forward.3']
  %s0 = inlined_call_operand.vmem [shape: f32[3,2,768], index: 0, kind: input, shape index: {}]
  %s1 = inlined_call_operand.vmem [shape: bf16[3,768,128], index: 1, kind: input, shape index: {}]
  %s2 = inlined_call_operand.vmem [shape: f32[1,128], index: 2, kind: input, shape index: {}]
  %s3 = inlined_call_operand.vmem [shape: f32[1,128], index: 3, kind: input, shape index: {}]
  %s4 = inlined_call_operand.<no memory space> [shape: f32[1,1], index: 4, kind: input, shape index: {}]
  %s5 = inlined_call_operand.vmem [shape: f32[2,1], index: 5, kind: output, shape index: {}]
  %s6 = sld [smem:[#allocation0]]
  $region30: #{_forward.3} parent=0
    _
  %s8 = ssub.s32 1, %s6
  %s9 = scalar_select 0, %s8, %s6
  %v10 = vstv %s4
  %11 = vst [vmem:[#allocation2] sm:$0x1] %v10
  // Predicated region
  $region2: #{_forward.3} parent=0 // pred_check
    _
  $region3: #{_forward.3} parent=0 // pred_check_branch
    %13 = sbr.rel (0) target = $region5
  $region4: #{_forward.3} parent=0 // pred_region
    _
  $region5: #{_forward.3} parent=0 // pred_fallthru
    _
  // Predicated region
  $region6: #{_forward.3} parent=0 // pred_check
    _
  $region7: #{_forward.3} parent=0 // pred_check_branch
    %15 = sbr.rel (0) target = $region9
  $region8: #{_forward.3} parent=0 // pred_region
    _
  $region9: #{_forward.3} parent=0 // pred_fallthru
    _
  // Predicated region
  $region10: #{_forward.3} parent=0 // pred_check
    _
  $region11: #{_forward.3} parent=0 // pred_check_branch
    %17 = sbr.rel (0) target = $region13
  $region12: #{_forward.3} parent=0 // pred_region
    _
  $region13: #{_forward.3} parent=0 // pred_fallthru
    _
  // Predicated region
  $region14: #{_forward.3} parent=0 // pred_check
    _
  $region15: #{_forward.3} parent=0 // pred_check_branch
    %19 = sbr.rel (0) target = $region17
  $region16: #{_forward.3} parent=0 // pred_region
    _
  $region17: #{_forward.3} parent=0 // pred_fallthru
    _
  // Predicated region
  $region18: #{_forward.3} parent=0 // pred_check
    _
  $region19: #{_forward.3} parent=0 // pred_check_branch
    %21 = sbr.rel (0) target = $region21
  $region20: #{_forward.3} parent=0 // pred_region
    _
  $region21: #{_forward.3} parent=0 // pred_fallthru
    _
  %v23 = vld [vmem:[%s0] sm:$0xff]
  %v24 = vld [vmem:[%s0 + $0x8] sm:$0xf]
  %v25 = vld [vmem:[%s0 + $0xc] sm:$0xff]
  %v26 = vld [vmem:[%s0 + $0x14] sm:$0xf]
  %v27 = vld [vmem:[%s0 + $0x18] sm:$0xff]
  %v28 = vld [vmem:[%s0 + $0x20] sm:$0xf]
  %v35 = vcombine.high %v23, %v23
  %v37 = vunpack.c.l.s4 1983009808
  %v38 = vunpack.c.0.s8 %v37
  %v39 = vlaneseq
  %v40 = vshrl.u32 %v39, 7
  %v41 = vsub.s32 %v38, %v40
  %v42 = vrot.slane %v23, %v41
  %v44 = vunpack.c.l.s4 1983009808
  %v45 = vunpack.c.0.s8 %v44
  %v46 = vlaneseq
  %v47 = vshrl.u32 %v46, 7
  %v48 = vsub.s32 %v45, %v47
  %v49 = vrot.slane %v35, %v48
  %v50 = vcombine.high %v42, %v42
  %v51 = vcombine.high %v49, %v49
  %v53 = vunpack.c.l.s4 1983009808
  %v54 = vunpack.c.0.s8 %v53
  %v55 = vlaneseq
  %v56 = vshrl.u32 %v55, 7
  %v57 = vsub.s32 %v54, %v56
  %v58 = vrot.slane %v24, %v57
  %v59 = vcombine.high %v58, %v58
  %v60 = vcombine.high %v25, %v25
  %v62 = vunpack.c.l.s4 1983009808
  %v63 = vunpack.c.0.s8 %v62
  %v64 = vlaneseq
  %v65 = vshrl.u32 %v64, 7
  %v66 = vsub.s32 %v63, %v65
  %v67 = vrot.slane %v25, %v66
  %v69 = vunpack.c.l.s4 1983009808
  %v70 = vunpack.c.0.s8 %v69
  %v71 = vlaneseq
  %v72 = vshrl.u32 %v71, 7
  %v73 = vsub.s32 %v70, %v72
  %v74 = vrot.slane %v60, %v73
  %v75 = vcombine.high %v67, %v67
  %v76 = vcombine.high %v74, %v74
  %v78 = vunpack.c.l.s4 1983009808
  %v79 = vunpack.c.0.s8 %v78
  %v80 = vlaneseq
  %v81 = vshrl.u32 %v80, 7
  %v82 = vsub.s32 %v79, %v81
  %v83 = vrot.slane %v26, %v82
  %v84 = vcombine.high %v83, %v83
  %v85 = vcombine.high %v27, %v27
  %v87 = vunpack.c.l.s4 1983009808
  %v88 = vunpack.c.0.s8 %v87
  %v89 = vlaneseq
  %v90 = vshrl.u32 %v89, 7
  %v91 = vsub.s32 %v88, %v90
  %v92 = vrot.slane %v27, %v91
  %v94 = vunpack.c.l.s4 1983009808
  %v95 = vunpack.c.0.s8 %v94
  %v96 = vlaneseq
  %v97 = vshrl.u32 %v96, 7
  %v98 = vsub.s32 %v95, %v97
  %v99 = vrot.slane %v85, %v98
  %v100 = vcombine.high %v92, %v92
  %v101 = vcombine.high %v99, %v99
  %v103 = vunpack.c.l.s4 1983009808
  %v104 = vunpack.c.0.s8 %v103
  %v105 = vlaneseq
  %v106 = vshrl.u32 %v105, 7
  %v107 = vsub.s32 %v104, %v106
  %v108 = vrot.slane %v28, %v107
  %v109 = vcombine.high %v108, %v108
  %v128 = vpack.c.bf16 %v42, %v42
  %v129 = vpack.c.bf16 %v50, %v50
  %v130 = vpack.c.bf16 %v49, %v49
  %v131 = vpack.c.bf16 %v51, %v51
  %v132 = vpack.c.bf16 %v58, %v58
  %v133 = vpack.c.bf16 %v59, %v59
  %v134 = vpack.c.bf16 %v67, %v67
  %v135 = vpack.c.bf16 %v75, %v75
  %v136 = vpack.c.bf16 %v74, %v74
  %v137 = vpack.c.bf16 %v76, %v76
  %v138 = vpack.c.bf16 %v83, %v83
  %v139 = vpack.c.bf16 %v84, %v84
  %v140 = vpack.c.bf16 %v92, %v92
  %v141 = vpack.c.bf16 %v100, %v100
  %v142 = vpack.c.bf16 %v99, %v99
  %v143 = vpack.c.bf16 %v101, %v101
  %v144 = vpack.c.bf16 %v108, %v108
  %v145 = vpack.c.bf16 %v109, %v109
  %v146 = vld [vmem:[%s1] sm:$0xf]
  %v147 = vld [vmem:[%s1 + $0x4] sm:$0xf]
  %v148 = vld [vmem:[%s1 + $0x8] sm:$0xf]
  %v149 = vld [vmem:[%s1 + $0xc] sm:$0xf]
  %v150 = vld [vmem:[%s1 + $0x10] sm:$0xf]
  %v151 = vld [vmem:[%s1 + $0x14] sm:$0xf]
  %v152 = vld [vmem:[%s1 + $0x18] sm:$0xf]
  %v153 = vld [vmem:[%s1 + $0x1c] sm:$0xf]
  %v154 = vld [vmem:[%s1 + $0x20] sm:$0xf]
  %v155 = vld [vmem:[%s1 + $0x24] sm:$0xf]
  %v156 = vld [vmem:[%s1 + $0x28] sm:$0xf]
  %v157 = vld [vmem:[%s1 + $0x2c] sm:$0xf]
  %v158 = vld [vmem:[%s1 + $0x30] sm:$0xf]
  %v159 = vld [vmem:[%s1 + $0x34] sm:$0xf]
  %v160 = vld [vmem:[%s1 + $0x38] sm:$0xf]
  %v161 = vld [vmem:[%s1 + $0x3c] sm:$0xf]
  %v162 = vld [vmem:[%s1 + $0x40] sm:$0xf]
  %v163 = vld [vmem:[%s1 + $0x44] sm:$0xf]
  %v164 = vld [vmem:[%s1 + $0x48] sm:$0xf]
  %v165 = vld [vmem:[%s1 + $0x4c] sm:$0xf]
  %v166 = vld [vmem:[%s1 + $0x50] sm:$0xf]
  %v167 = vld [vmem:[%s1 + $0x54] sm:$0xf]
  %v168 = vld [vmem:[%s1 + $0x58] sm:$0xf]
  %v169 = vld [vmem:[%s1 + $0x5c] sm:$0xf]
  %v170 = vld [vmem:[%s1 + $0x60] sm:$0xf]
  %v171 = vld [vmem:[%s1 + $0x64] sm:$0xf]
  %v172 = vld [vmem:[%s1 + $0x68] sm:$0xf]
  %v173 = vld [vmem:[%s1 + $0x6c] sm:$0xf]
  %v174 = vld [vmem:[%s1 + $0x70] sm:$0xf]
  %v175 = vld [vmem:[%s1 + $0x74] sm:$0xf]
  %v176 = vld [vmem:[%s1 + $0x78] sm:$0xf]
  %v177 = vld [vmem:[%s1 + $0x7c] sm:$0xf]
  %v178 = vld [vmem:[%s1 + $0x80] sm:$0xf]
  %v179 = vld [vmem:[%s1 + $0x84] sm:$0xf]
  %v180 = vld [vmem:[%s1 + $0x88] sm:$0xf]
  %v181 = vld [vmem:[%s1 + $0x8c] sm:$0xf]
  %v182 = vld [vmem:[%s1 + $0x90] sm:$0xf]
  %v183 = vld [vmem:[%s1 + $0x94] sm:$0xf]
  %v184 = vld [vmem:[%s1 + $0x98] sm:$0xf]
  %v185 = vld [vmem:[%s1 + $0x9c] sm:$0xf]
  %v186 = vld [vmem:[%s1 + $0xa0] sm:$0xf]
  %v187 = vld [vmem:[%s1 + $0xa4] sm:$0xf]
  %v188 = vld [vmem:[%s1 + $0xa8] sm:$0xf]
  %v189 = vld [vmem:[%s1 + $0xac] sm:$0xf]
  %v190 = vld [vmem:[%s1 + $0xb0] sm:$0xf]
  %v191 = vld [vmem:[%s1 + $0xb4] sm:$0xf]
  %v192 = vld [vmem:[%s1 + $0xb8] sm:$0xf]
  %v193 = vld [vmem:[%s1 + $0xbc] sm:$0xf]
  %v194 = vld [vmem:[%s1 + $0xc0] sm:$0xf]
  %v195 = vld [vmem:[%s1 + $0xc4] sm:$0xf]
  %v196 = vld [vmem:[%s1 + $0xc8] sm:$0xf]
  %v197 = vld [vmem:[%s1 + $0xcc] sm:$0xf]
  %v198 = vld [vmem:[%s1 + $0xd0] sm:$0xf]
  %v199 = vld [vmem:[%s1 + $0xd4] sm:$0xf]
  %v200 = vld [vmem:[%s1 + $0xd8] sm:$0xf]
  %v201 = vld [vmem:[%s1 + $0xdc] sm:$0xf]
  %v202 = vld [vmem:[%s1 + $0xe0] sm:$0xf]
  %v203 = vld [vmem:[%s1 + $0xe4] sm:$0xf]
  %v204 = vld [vmem:[%s1 + $0xe8] sm:$0xf]
  %v205 = vld [vmem:[%s1 + $0xec] sm:$0xf]
  %v206 = vld [vmem:[%s1 + $0xf0] sm:$0xf]
  %v207 = vld [vmem:[%s1 + $0xf4] sm:$0xf]
  %v208 = vld [vmem:[%s1 + $0xf8] sm:$0xf]
  %v209 = vld [vmem:[%s1 + $0xfc] sm:$0xf]
  %v210 = vld [vmem:[%s1 + $0x100] sm:$0xf]
  %v211 = vld [vmem:[%s1 + $0x104] sm:$0xf]
  %v212 = vld [vmem:[%s1 + $0x108] sm:$0xf]
  %v213 = vld [vmem:[%s1 + $0x10c] sm:$0xf]
  %v214 = vld [vmem:[%s1 + $0x110] sm:$0xf]
  %v215 = vld [vmem:[%s1 + $0x114] sm:$0xf]
  %v216 = vld [vmem:[%s1 + $0x118] sm:$0xf]
  %v217 = vld [vmem:[%s1 + $0x11c] sm:$0xf]
  %v218 = vld [vmem:[%s1 + $0x120] sm:$0xf]
  %v219 = vld [vmem:[%s1 + $0x124] sm:$0xf]
  %v220 = vld [vmem:[%s1 + $0x128] sm:$0xf]
  %v221 = vld [vmem:[%s1 + $0x12c] sm:$0xf]
  %v222 = vld [vmem:[%s1 + $0x130] sm:$0xf]
  %v223 = vld [vmem:[%s1 + $0x134] sm:$0xf]
  %v224 = vld [vmem:[%s1 + $0x138] sm:$0xf]
  %v225 = vld [vmem:[%s1 + $0x13c] sm:$0xf]
  %v226 = vld [vmem:[%s1 + $0x140] sm:$0xf]
  %v227 = vld [vmem:[%s1 + $0x144] sm:$0xf]
  %v228 = vld [vmem:[%s1 + $0x148] sm:$0xf]
  %v229 = vld [vmem:[%s1 + $0x14c] sm:$0xf]
  %v230 = vld [vmem:[%s1 + $0x150] sm:$0xf]
  %v231 = vld [vmem:[%s1 + $0x154] sm:$0xf]
  %v232 = vld [vmem:[%s1 + $0x158] sm:$0xf]
  %v233 = vld [vmem:[%s1 + $0x15c] sm:$0xf]
  %v234 = vld [vmem:[%s1 + $0x160] sm:$0xf]
  %v235 = vld [vmem:[%s1 + $0x164] sm:$0xf]
  %v236 = vld [vmem:[%s1 + $0x168] sm:$0xf]
  %v237 = vld [vmem:[%s1 + $0x16c] sm:$0xf]
  %v238 = vld [vmem:[%s1 + $0x170] sm:$0xf]
  %v239 = vld [vmem:[%s1 + $0x174] sm:$0xf]
  %v240 = vld [vmem:[%s1 + $0x178] sm:$0xf]
  %v241 = vld [vmem:[%s1 + $0x17c] sm:$0xf]
  %v242 = vld [vmem:[%s1 + $0x180] sm:$0xf]
  %v243 = vld [vmem:[%s1 + $0x184] sm:$0xf]
  %v244 = vld [vmem:[%s1 + $0x188] sm:$0xf]
  %v245 = vld [vmem:[%s1 + $0x18c] sm:$0xf]
  %v246 = vld [vmem:[%s1 + $0x190] sm:$0xf]
  %v247 = vld [vmem:[%s1 + $0x194] sm:$0xf]
  %v248 = vld [vmem:[%s1 + $0x198] sm:$0xf]
  %v249 = vld [vmem:[%s1 + $0x19c] sm:$0xf]
  %v250 = vld [vmem:[%s1 + $0x1a0] sm:$0xf]
  %v251 = vld [vmem:[%s1 + $0x1a4] sm:$0xf]
  %v252 = vld [vmem:[%s1 + $0x1a8] sm:$0xf]
  %v253 = vld [vmem:[%s1 + $0x1ac] sm:$0xf]
  %v254 = vld [vmem:[%s1 + $0x1b0] sm:$0xf]
  %v255 = vld [vmem:[%s1 + $0x1b4] sm:$0xf]
  %v256 = vld [vmem:[%s1 + $0x1b8] sm:$0xf]
  %v257 = vld [vmem:[%s1 + $0x1bc] sm:$0xf]
  %v258 = vld [vmem:[%s1 + $0x1c0] sm:$0xf]
  %v259 = vld [vmem:[%s1 + $0x1c4] sm:$0xf]
  %v260 = vld [vmem:[%s1 + $0x1c8] sm:$0xf]
  %v261 = vld [vmem:[%s1 + $0x1cc] sm:$0xf]
  %v262 = vld [vmem:[%s1 + $0x1d0] sm:$0xf]
  %v263 = vld [vmem:[%s1 + $0x1d4] sm:$0xf]
  %v264 = vld [vmem:[%s1 + $0x1d8] sm:$0xf]
  %v265 = vld [vmem:[%s1 + $0x1dc] sm:$0xf]
  %v266 = vld [vmem:[%s1 + $0x1e0] sm:$0xf]
  %v267 = vld [vmem:[%s1 + $0x1e4] sm:$0xf]
  %v268 = vld [vmem:[%s1 + $0x1e8] sm:$0xf]
  %v269 = vld [vmem:[%s1 + $0x1ec] sm:$0xf]
  %v270 = vld [vmem:[%s1 + $0x1f0] sm:$0xf]
  %v271 = vld [vmem:[%s1 + $0x1f4] sm:$0xf]
  %v272 = vld [vmem:[%s1 + $0x1f8] sm:$0xf]
  %v273 = vld [vmem:[%s1 + $0x1fc] sm:$0xf]
  %v274 = vld [vmem:[%s1 + $0x200] sm:$0xf]
  %v275 = vld [vmem:[%s1 + $0x204] sm:$0xf]
  %v276 = vld [vmem:[%s1 + $0x208] sm:$0xf]
  %v277 = vld [vmem:[%s1 + $0x20c] sm:$0xf]
  %v278 = vld [vmem:[%s1 + $0x210] sm:$0xf]
  %v279 = vld [vmem:[%s1 + $0x214] sm:$0xf]
  %v280 = vld [vmem:[%s1 + $0x218] sm:$0xf]
  %v281 = vld [vmem:[%s1 + $0x21c] sm:$0xf]
  %v282 = vld [vmem:[%s1 + $0x220] sm:$0xf]
  %v283 = vld [vmem:[%s1 + $0x224] sm:$0xf]
  %v284 = vld [vmem:[%s1 + $0x228] sm:$0xf]
  %v285 = vld [vmem:[%s1 + $0x22c] sm:$0xf]
  %v286 = vld [vmem:[%s1 + $0x230] sm:$0xf]
  %v287 = vld [vmem:[%s1 + $0x234] sm:$0xf]
  %v288 = vld [vmem:[%s1 + $0x238] sm:$0xf]
  %v289 = vld [vmem:[%s1 + $0x23c] sm:$0xf]
  %v290 = vld [vmem:[%s1 + $0x240] sm:$0xf]
  %v291 = vld [vmem:[%s1 + $0x244] sm:$0xf]
  %v292 = vld [vmem:[%s1 + $0x248] sm:$0xf]
  %v293 = vld [vmem:[%s1 + $0x24c] sm:$0xf]
  %v294 = vld [vmem:[%s1 + $0x250] sm:$0xf]
  %v295 = vld [vmem:[%s1 + $0x254] sm:$0xf]
  %v296 = vld [vmem:[%s1 + $0x258] sm:$0xf]
  %v297 = vld [vmem:[%s1 + $0x25c] sm:$0xf]
  %v298 = vld [vmem:[%s1 + $0x260] sm:$0xf]
  %v299 = vld [vmem:[%s1 + $0x264] sm:$0xf]
  %v300 = vld [vmem:[%s1 + $0x268] sm:$0xf]
  %v301 = vld [vmem:[%s1 + $0x26c] sm:$0xf]
  %v302 = vld [vmem:[%s1 + $0x270] sm:$0xf]
  %v303 = vld [vmem:[%s1 + $0x274] sm:$0xf]
  %v304 = vld [vmem:[%s1 + $0x278] sm:$0xf]
  %v305 = vld [vmem:[%s1 + $0x27c] sm:$0xf]
  %v306 = vld [vmem:[%s1 + $0x280] sm:$0xf]
  %v307 = vld [vmem:[%s1 + $0x284] sm:$0xf]
  %v308 = vld [vmem:[%s1 + $0x288] sm:$0xf]
  %v309 = vld [vmem:[%s1 + $0x28c] sm:$0xf]
  %v310 = vld [vmem:[%s1 + $0x290] sm:$0xf]
  %v311 = vld [vmem:[%s1 + $0x294] sm:$0xf]
  %v312 = vld [vmem:[%s1 + $0x298] sm:$0xf]
  %v313 = vld [vmem:[%s1 + $0x29c] sm:$0xf]
  %v314 = vld [vmem:[%s1 + $0x2a0] sm:$0xf]
  %v315 = vld [vmem:[%s1 + $0x2a4] sm:$0xf]
  %v316 = vld [vmem:[%s1 + $0x2a8] sm:$0xf]
  %v317 = vld [vmem:[%s1 + $0x2ac] sm:$0xf]
  %v318 = vld [vmem:[%s1 + $0x2b0] sm:$0xf]
  %v319 = vld [vmem:[%s1 + $0x2b4] sm:$0xf]
  %v320 = vld [vmem:[%s1 + $0x2b8] sm:$0xf]
  %v321 = vld [vmem:[%s1 + $0x2bc] sm:$0xf]
  %v322 = vld [vmem:[%s1 + $0x2c0] sm:$0xf]
  %v323 = vld [vmem:[%s1 + $0x2c4] sm:$0xf]
  %v324 = vld [vmem:[%s1 + $0x2c8] sm:$0xf]
  %v325 = vld [vmem:[%s1 + $0x2cc] sm:$0xf]
  %v326 = vld [vmem:[%s1 + $0x2d0] sm:$0xf]
  %v327 = vld [vmem:[%s1 + $0x2d4] sm:$0xf]
  %v328 = vld [vmem:[%s1 + $0x2d8] sm:$0xf]
  %v329 = vld [vmem:[%s1 + $0x2dc] sm:$0xf]
  %v330 = vld [vmem:[%s1 + $0x2e0] sm:$0xf]
  %v331 = vld [vmem:[%s1 + $0x2e4] sm:$0xf]
  %v332 = vld [vmem:[%s1 + $0x2e8] sm:$0xf]
  %v333 = vld [vmem:[%s1 + $0x2ec] sm:$0xf]
  %v334 = vld [vmem:[%s1 + $0x2f0] sm:$0xf]
  %v335 = vld [vmem:[%s1 + $0x2f4] sm:$0xf]
  %v336 = vld [vmem:[%s1 + $0x2f8] sm:$0xf]
  %v337 = vld [vmem:[%s1 + $0x2fc] sm:$0xf]
  %v338 = vld [vmem:[%s1 + $0x300] sm:$0xf]
  %v339 = vld [vmem:[%s1 + $0x304] sm:$0xf]
  %v340 = vld [vmem:[%s1 + $0x308] sm:$0xf]
  %v341 = vld [vmem:[%s1 + $0x30c] sm:$0xf]
  %v342 = vld [vmem:[%s1 + $0x310] sm:$0xf]
  %v343 = vld [vmem:[%s1 + $0x314] sm:$0xf]
  %v344 = vld [vmem:[%s1 + $0x318] sm:$0xf]
  %v345 = vld [vmem:[%s1 + $0x31c] sm:$0xf]
  %v346 = vld [vmem:[%s1 + $0x320] sm:$0xf]
  %v347 = vld [vmem:[%s1 + $0x324] sm:$0xf]
  %v348 = vld [vmem:[%s1 + $0x328] sm:$0xf]
  %v349 = vld [vmem:[%s1 + $0x32c] sm:$0xf]
  %v350 = vld [vmem:[%s1 + $0x330] sm:$0xf]
  %v351 = vld [vmem:[%s1 + $0x334] sm:$0xf]
  %v352 = vld [vmem:[%s1 + $0x338] sm:$0xf]
  %v353 = vld [vmem:[%s1 + $0x33c] sm:$0xf]
  %v354 = vld [vmem:[%s1 + $0x340] sm:$0xf]
  %v355 = vld [vmem:[%s1 + $0x344] sm:$0xf]
  %v356 = vld [vmem:[%s1 + $0x348] sm:$0xf]
  %v357 = vld [vmem:[%s1 + $0x34c] sm:$0xf]
  %v358 = vld [vmem:[%s1 + $0x350] sm:$0xf]
  %v359 = vld [vmem:[%s1 + $0x354] sm:$0xf]
  %v360 = vld [vmem:[%s1 + $0x358] sm:$0xf]
  %v361 = vld [vmem:[%s1 + $0x35c] sm:$0xf]
  %v362 = vld [vmem:[%s1 + $0x360] sm:$0xf]
  %v363 = vld [vmem:[%s1 + $0x364] sm:$0xf]
  %v364 = vld [vmem:[%s1 + $0x368] sm:$0xf]
  %v365 = vld [vmem:[%s1 + $0x36c] sm:$0xf]
  %v366 = vld [vmem:[%s1 + $0x370] sm:$0xf]
  %v367 = vld [vmem:[%s1 + $0x374] sm:$0xf]
  %v368 = vld [vmem:[%s1 + $0x378] sm:$0xf]
  %v369 = vld [vmem:[%s1 + $0x37c] sm:$0xf]
  %v370 = vld [vmem:[%s1 + $0x380] sm:$0xf]
  %v371 = vld [vmem:[%s1 + $0x384] sm:$0xf]
  %v372 = vld [vmem:[%s1 + $0x388] sm:$0xf]
  %v373 = vld [vmem:[%s1 + $0x38c] sm:$0xf]
  %v374 = vld [vmem:[%s1 + $0x390] sm:$0xf]
  %v375 = vld [vmem:[%s1 + $0x394] sm:$0xf]
  %v376 = vld [vmem:[%s1 + $0x398] sm:$0xf]
  %v377 = vld [vmem:[%s1 + $0x39c] sm:$0xf]
  %v378 = vld [vmem:[%s1 + $0x3a0] sm:$0xf]
  %v379 = vld [vmem:[%s1 + $0x3a4] sm:$0xf]
  %v380 = vld [vmem:[%s1 + $0x3a8] sm:$0xf]
  %v381 = vld [vmem:[%s1 + $0x3ac] sm:$0xf]
  %v382 = vld [vmem:[%s1 + $0x3b0] sm:$0xf]
  %v383 = vld [vmem:[%s1 + $0x3b4] sm:$0xf]
  %v384 = vld [vmem:[%s1 + $0x3b8] sm:$0xf]
  %v385 = vld [vmem:[%s1 + $0x3bc] sm:$0xf]
  %v386 = vld [vmem:[%s1 + $0x3c0] sm:$0xf]
  %v387 = vld [vmem:[%s1 + $0x3c4] sm:$0xf]
  %v388 = vld [vmem:[%s1 + $0x3c8] sm:$0xf]
  %v389 = vld [vmem:[%s1 + $0x3cc] sm:$0xf]
  %v390 = vld [vmem:[%s1 + $0x3d0] sm:$0xf]
  %v391 = vld [vmem:[%s1 + $0x3d4] sm:$0xf]
  %v392 = vld [vmem:[%s1 + $0x3d8] sm:$0xf]
  %v393 = vld [vmem:[%s1 + $0x3dc] sm:$0xf]
  %v394 = vld [vmem:[%s1 + $0x3e0] sm:$0xf]
  %v395 = vld [vmem:[%s1 + $0x3e4] sm:$0xf]
  %v396 = vld [vmem:[%s1 + $0x3e8] sm:$0xf]
  %v397 = vld [vmem:[%s1 + $0x3ec] sm:$0xf]
  %v398 = vld [vmem:[%s1 + $0x3f0] sm:$0xf]
  %v399 = vld [vmem:[%s1 + $0x3f4] sm:$0xf]
  %v400 = vld [vmem:[%s1 + $0x3f8] sm:$0xf]
  %v401 = vld [vmem:[%s1 + $0x3fc] sm:$0xf]
  %v402 = vld [vmem:[%s1 + $0x400] sm:$0xf]
  %v403 = vld [vmem:[%s1 + $0x404] sm:$0xf]
  %v404 = vld [vmem:[%s1 + $0x408] sm:$0xf]
  %v405 = vld [vmem:[%s1 + $0x40c] sm:$0xf]
  %v406 = vld [vmem:[%s1 + $0x410] sm:$0xf]
  %v407 = vld [vmem:[%s1 + $0x414] sm:$0xf]
  %v408 = vld [vmem:[%s1 + $0x418] sm:$0xf]
  %v409 = vld [vmem:[%s1 + $0x41c] sm:$0xf]
  %v410 = vld [vmem:[%s1 + $0x420] sm:$0xf]
  %v411 = vld [vmem:[%s1 + $0x424] sm:$0xf]
  %v412 = vld [vmem:[%s1 + $0x428] sm:$0xf]
  %v413 = vld [vmem:[%s1 + $0x42c] sm:$0xf]
  %v414 = vld [vmem:[%s1 + $0x430] sm:$0xf]
  %v415 = vld [vmem:[%s1 + $0x434] sm:$0xf]
  %v416 = vld [vmem:[%s1 + $0x438] sm:$0xf]
  %v417 = vld [vmem:[%s1 + $0x43c] sm:$0xf]
  %v418 = vld [vmem:[%s1 + $0x440] sm:$0xf]
  %v419 = vld [vmem:[%s1 + $0x444] sm:$0xf]
  %v420 = vld [vmem:[%s1 + $0x448] sm:$0xf]
  %v421 = vld [vmem:[%s1 + $0x44c] sm:$0xf]
  %v422 = vld [vmem:[%s1 + $0x450] sm:$0xf]
  %v423 = vld [vmem:[%s1 + $0x454] sm:$0xf]
  %v424 = vld [vmem:[%s1 + $0x458] sm:$0xf]
  %v425 = vld [vmem:[%s1 + $0x45c] sm:$0xf]
  %v426 = vld [vmem:[%s1 + $0x460] sm:$0xf]
  %v427 = vld [vmem:[%s1 + $0x464] sm:$0xf]
  %v428 = vld [vmem:[%s1 + $0x468] sm:$0xf]
  %v429 = vld [vmem:[%s1 + $0x46c] sm:$0xf]
  %v430 = vld [vmem:[%s1 + $0x470] sm:$0xf]
  %v431 = vld [vmem:[%s1 + $0x474] sm:$0xf]
  %v432 = vld [vmem:[%s1 + $0x478] sm:$0xf]
  %v433 = vld [vmem:[%s1 + $0x47c] sm:$0xf]
  %v530 = vunpack.c.l.b16 %v242
  %v531 = vunpack.c.l.b16 %v243
  %v532 = vunpack.c.l.b16 %v244
  %v533 = vunpack.c.l.b16 %v245
  %v534 = vunpack.c.l.b16 %v246
  %v535 = vunpack.c.l.b16 %v247
  %v536 = vunpack.c.l.b16 %v248
  %v537 = vunpack.c.l.b16 %v249
  %v538 = vunpack.c.l.b16 %v250
  %v539 = vunpack.c.l.b16 %v251
  %v540 = vunpack.c.l.b16 %v252
  %v541 = vunpack.c.l.b16 %v253
  %v542 = vunpack.c.l.b16 %v254
  %v543 = vunpack.c.l.b16 %v255
  %v544 = vunpack.c.l.b16 %v256
  %v545 = vunpack.c.l.b16 %v257
  %v546 = vunpack.c.l.b16 %v258
  %v547 = vunpack.c.l.b16 %v259
  %v548 = vunpack.c.l.b16 %v260
  %v549 = vunpack.c.l.b16 %v261
  %v550 = vunpack.c.l.b16 %v262
  %v551 = vunpack.c.l.b16 %v263
  %v552 = vunpack.c.l.b16 %v264
  %v553 = vunpack.c.l.b16 %v265
  %v554 = vunpack.c.l.b16 %v266
  %v555 = vunpack.c.l.b16 %v267
  %v556 = vunpack.c.l.b16 %v268
  %v557 = vunpack.c.l.b16 %v269
  %v558 = vunpack.c.l.b16 %v270
  %v559 = vunpack.c.l.b16 %v271
  %v560 = vunpack.c.l.b16 %v272
  %v561 = vunpack.c.l.b16 %v273
  %v562 = vunpack.c.l.b16 %v274
  %v563 = vunpack.c.l.b16 %v275
  %v564 = vunpack.c.l.b16 %v276
  %v565 = vunpack.c.l.b16 %v277
  %v566 = vunpack.c.l.b16 %v278
  %v567 = vunpack.c.l.b16 %v279
  %v568 = vunpack.c.l.b16 %v280
  %v569 = vunpack.c.l.b16 %v281
  %v570 = vunpack.c.l.b16 %v282
  %v571 = vunpack.c.l.b16 %v283
  %v572 = vunpack.c.l.b16 %v284
  %v573 = vunpack.c.l.b16 %v285
  %v574 = vunpack.c.l.b16 %v286
  %v575 = vunpack.c.l.b16 %v287
  %v576 = vunpack.c.l.b16 %v288
  %v577 = vunpack.c.l.b16 %v289
  %v578 = vunpack.c.l.b16 %v290
  %v579 = vunpack.c.l.b16 %v291
  %v580 = vunpack.c.l.b16 %v292
  %v581 = vunpack.c.l.b16 %v293
  %v582 = vunpack.c.l.b16 %v294
  %v583 = vunpack.c.l.b16 %v295
  %v584 = vunpack.c.l.b16 %v296
  %v585 = vunpack.c.l.b16 %v297
  %v586 = vunpack.c.l.b16 %v298
  %v587 = vunpack.c.l.b16 %v299
  %v588 = vunpack.c.l.b16 %v300
  %v589 = vunpack.c.l.b16 %v301
  %v590 = vunpack.c.l.b16 %v302
  %v591 = vunpack.c.l.b16 %v303
  %v592 = vunpack.c.l.b16 %v304
  %v593 = vunpack.c.l.b16 %v305
  %v594 = vunpack.c.l.b16 %v306
  %v595 = vunpack.c.l.b16 %v307
  %v596 = vunpack.c.l.b16 %v308
  %v597 = vunpack.c.l.b16 %v309
  %v598 = vunpack.c.l.b16 %v310
  %v599 = vunpack.c.l.b16 %v311
  %v600 = vunpack.c.l.b16 %v312
  %v601 = vunpack.c.l.b16 %v313
  %v602 = vunpack.c.l.b16 %v314
  %v603 = vunpack.c.l.b16 %v315
  %v604 = vunpack.c.l.b16 %v316
  %v605 = vunpack.c.l.b16 %v317
  %v606 = vunpack.c.l.b16 %v318
  %v607 = vunpack.c.l.b16 %v319
  %v608 = vunpack.c.l.b16 %v320
  %v609 = vunpack.c.l.b16 %v321
  %v610 = vunpack.c.l.b16 %v322
  %v611 = vunpack.c.l.b16 %v323
  %v612 = vunpack.c.l.b16 %v324
  %v613 = vunpack.c.l.b16 %v325
  %v614 = vunpack.c.l.b16 %v326
  %v615 = vunpack.c.l.b16 %v327
  %v616 = vunpack.c.l.b16 %v328
  %v617 = vunpack.c.l.b16 %v329
  %v618 = vunpack.c.l.b16 %v330
  %v619 = vunpack.c.l.b16 %v331
  %v620 = vunpack.c.l.b16 %v332
  %v621 = vunpack.c.l.b16 %v333
  %v622 = vunpack.c.l.b16 %v334
  %v623 = vunpack.c.l.b16 %v335
  %v624 = vunpack.c.l.b16 %v336
  %v625 = vunpack.c.l.b16 %v337
  %v626 = vpack.c.b16 %v531, %v530
  %v627 = vpack.c.b16 %v533, %v532
  %v628 = vpack.c.b16 %v535, %v534
  %v629 = vpack.c.b16 %v537, %v536
  %v630 = vpack.c.b16 %v539, %v538
  %v631 = vpack.c.b16 %v541, %v540
  %v632 = vpack.c.b16 %v543, %v542
  %v633 = vpack.c.b16 %v545, %v544
  %v634 = vpack.c.b16 %v547, %v546
  %v635 = vpack.c.b16 %v549, %v548
  %v636 = vpack.c.b16 %v551, %v550
  %v637 = vpack.c.b16 %v553, %v552
  %v638 = vpack.c.b16 %v555, %v554
  %v639 = vpack.c.b16 %v557, %v556
  %v640 = vpack.c.b16 %v559, %v558
  %v641 = vpack.c.b16 %v561, %v560
  %v642 = vpack.c.b16 %v563, %v562
  %v643 = vpack.c.b16 %v565, %v564
  %v644 = vpack.c.b16 %v567, %v566
  %v645 = vpack.c.b16 %v569, %v568
  %v646 = vpack.c.b16 %v571, %v570
  %v647 = vpack.c.b16 %v573, %v572
  %v648 = vpack.c.b16 %v575, %v574
  %v649 = vpack.c.b16 %v577, %v576
  %v650 = vpack.c.b16 %v579, %v578
  %v651 = vpack.c.b16 %v581, %v580
  %v652 = vpack.c.b16 %v583, %v582
  %v653 = vpack.c.b16 %v585, %v584
  %v654 = vpack.c.b16 %v587, %v586
  %v655 = vpack.c.b16 %v589, %v588
  %v656 = vpack.c.b16 %v591, %v590
  %v657 = vpack.c.b16 %v593, %v592
  %v658 = vpack.c.b16 %v595, %v594
  %v659 = vpack.c.b16 %v597, %v596
  %v660 = vpack.c.b16 %v599, %v598
  %v661 = vpack.c.b16 %v601, %v600
  %v662 = vpack.c.b16 %v603, %v602
  %v663 = vpack.c.b16 %v605, %v604
  %v664 = vpack.c.b16 %v607, %v606
  %v665 = vpack.c.b16 %v609, %v608
  %v666 = vpack.c.b16 %v611, %v610
  %v667 = vpack.c.b16 %v613, %v612
  %v668 = vpack.c.b16 %v615, %v614
  %v669 = vpack.c.b16 %v617, %v616
  %v670 = vpack.c.b16 %v619, %v618
  %v671 = vpack.c.b16 %v621, %v620
  %v672 = vpack.c.b16 %v623, %v622
  %v673 = vpack.c.b16 %v625, %v624
  %722 = vmatprep.subr.bf16.mxu0 0
  %723 = vmatpush1.bf16.msra.mxu0 %v633
  %724 = vmatprep.subr.bf16.mxu0 0
  %725 = vmatpush1.bf16.msra.mxu0 %v632
  %726 = vmatprep.subr.bf16.mxu0 0
  %727 = vmatpush1.bf16.msra.mxu0 %v631
  %728 = vmatprep.subr.bf16.mxu0 0
  %729 = vmatpush1.bf16.msra.mxu0 %v630
  %730 = vmatprep.subr.bf16.mxu0 0
  %731 = vmatpush1.bf16.msra.mxu0 %v629
  %732 = vmatprep.subr.bf16.mxu0 0
  %733 = vmatpush1.bf16.msra.mxu0 %v628
  %734 = vmatprep.subr.bf16.mxu0 0
  %735 = vmatpush1.bf16.msra.mxu0 %v627
  %736 = vmatprep.subr.bf16.mxu0 0
  %737 = vmatpush1.bf16.msra.mxu0 %v626
  %738 = vmatprep.subr.bf16.mxu0 0
  %739 = vmatpush2.bf16.msra.mxu0 %v641
  %740 = vmatprep.subr.bf16.mxu0 0
  %741 = vmatpush2.bf16.msra.mxu0 %v640
  %742 = vmatprep.subr.bf16.mxu0 0
  %743 = vmatpush2.bf16.msra.mxu0 %v639
  %744 = vmatprep.subr.bf16.mxu0 0
  %745 = vmatpush2.bf16.msra.mxu0 %v638
  %746 = vmatprep.subr.bf16.mxu0 0
  %747 = vmatpush2.bf16.msra.mxu0 %v637
  %748 = vmatprep.subr.bf16.mxu0 0
  %749 = vmatpush2.bf16.msra.mxu0 %v636
  %750 = vmatprep.subr.bf16.mxu0 0
  %751 = vmatpush2.bf16.msra.mxu0 %v635
  %752 = vmatprep.subr.bf16.mxu0 0
  %753 = vmatpush2.bf16.msra.mxu0 %v634
  %754 = vmatprep.mubr.bf16.mxu0 %v135
  %755 = vmatmul.mubr.bf16.gmra.mxu0 %v134
  %v756 = vpop.f32.mrf.mxu0
  %v757 = vadd.f32 0.0, %v756
  %v758 = vpop.f32.mrf.mxu0
  %v759 = vpop.f32.mrf.mxu0
  %v760 = vpop.f32.mrf.mxu0
  %761 = vdwg.mxu0
  %762 = vmatprep.subr.bf16.mxu0 0
  %763 = vmatpush1.bf16.msra.mxu0 %v649
  %764 = vmatprep.subr.bf16.mxu0 0
  %765 = vmatpush1.bf16.msra.mxu0 %v648
  %766 = vmatprep.subr.bf16.mxu0 0
  %767 = vmatpush1.bf16.msra.mxu0 %v647
  %768 = vmatprep.subr.bf16.mxu0 0
  %769 = vmatpush1.bf16.msra.mxu0 %v646
  %770 = vmatprep.subr.bf16.mxu0 0
  %771 = vmatpush1.bf16.msra.mxu0 %v645
  %772 = vmatprep.subr.bf16.mxu0 0
  %773 = vmatpush1.bf16.msra.mxu0 %v644
  %774 = vmatprep.subr.bf16.mxu0 0
  %775 = vmatpush1.bf16.msra.mxu0 %v643
  %776 = vmatprep.subr.bf16.mxu0 0
  %777 = vmatpush1.bf16.msra.mxu0 %v642
  %778 = vmatprep.subr.bf16.mxu0 0
  %779 = vmatpush2.bf16.msra.mxu0 %v657
  %780 = vmatprep.subr.bf16.mxu0 0
  %781 = vmatpush2.bf16.msra.mxu0 %v656
  %782 = vmatprep.subr.bf16.mxu0 0
  %783 = vmatpush2.bf16.msra.mxu0 %v655
  %784 = vmatprep.subr.bf16.mxu0 0
  %785 = vmatpush2.bf16.msra.mxu0 %v654
  %786 = vmatprep.subr.bf16.mxu0 0
  %787 = vmatpush2.bf16.msra.mxu0 %v653
  %788 = vmatprep.subr.bf16.mxu0 0
  %789 = vmatpush2.bf16.msra.mxu0 %v652
  %790 = vmatprep.subr.bf16.mxu0 0
  %791 = vmatpush2.bf16.msra.mxu0 %v651
  %792 = vmatprep.subr.bf16.mxu0 0
  %793 = vmatpush2.bf16.msra.mxu0 %v650
  %794 = vmatprep.mubr.bf16.mxu0 %v137
  %795 = vmatmul.mubr.bf16.gmra.mxu0 %v136
  %v796 = vpop.f32.mrf.mxu0
  %v797 = vadd.f32 %v757, %v796
  %v798 = vpop.f32.mrf.mxu0
  %v799 = vpop.f32.mrf.mxu0
  %v800 = vpop.f32.mrf.mxu0
  %801 = vdwg.mxu0
  %802 = vmatprep.subr.bf16.mxu0 0
  %803 = vmatpush1.bf16.msra.mxu0 %v665
  %804 = vmatprep.subr.bf16.mxu0 0
  %805 = vmatpush1.bf16.msra.mxu0 %v664
  %806 = vmatprep.subr.bf16.mxu0 0
  %807 = vmatpush1.bf16.msra.mxu0 %v663
  %808 = vmatprep.subr.bf16.mxu0 0
  %809 = vmatpush1.bf16.msra.mxu0 %v662
  %810 = vmatprep.subr.bf16.mxu0 0
  %811 = vmatpush1.bf16.msra.mxu0 %v661
  %812 = vmatprep.subr.bf16.mxu0 0
  %813 = vmatpush1.bf16.msra.mxu0 %v660
  %814 = vmatprep.subr.bf16.mxu0 0
  %815 = vmatpush1.bf16.msra.mxu0 %v659
  %816 = vmatprep.subr.bf16.mxu0 0
  %817 = vmatpush1.bf16.msra.mxu0 %v658
  %818 = vmatprep.subr.bf16.mxu0 0
  %819 = vmatpush2.bf16.msra.mxu0 %v673
  %820 = vmatprep.subr.bf16.mxu0 0
  %821 = vmatpush2.bf16.msra.mxu0 %v672
  %822 = vmatprep.subr.bf16.mxu0 0
  %823 = vmatpush2.bf16.msra.mxu0 %v671
  %824 = vmatprep.subr.bf16.mxu0 0
  %825 = vmatpush2.bf16.msra.mxu0 %v670
  %826 = vmatprep.subr.bf16.mxu0 0
  %827 = vmatpush2.bf16.msra.mxu0 %v669
  %828 = vmatprep.subr.bf16.mxu0 0
  %829 = vmatpush2.bf16.msra.mxu0 %v668
  %830 = vmatprep.subr.bf16.mxu0 0
  %831 = vmatpush2.bf16.msra.mxu0 %v667
  %832 = vmatprep.subr.bf16.mxu0 0
  %833 = vmatpush2.bf16.msra.mxu0 %v666
  %834 = vmatprep.mubr.bf16.mxu0 %v139
  %835 = vmatmul.mubr.bf16.gmra.mxu0 %v138
  %v836 = vpop.f32.mrf.mxu0
  %v837 = vadd.f32 %v797, %v836
  %v838 = vpop.f32.mrf.mxu0
  %v839 = vpop.f32.mrf.mxu0
  %v840 = vpop.f32.mrf.mxu0
  %841 = vdwg.mxu0
  %v938 = vunpack.c.l.b16 %v146
  %v939 = vunpack.c.l.b16 %v147
  %v940 = vunpack.c.l.b16 %v148
  %v941 = vunpack.c.l.b16 %v149
  %v942 = vunpack.c.l.b16 %v150
  %v943 = vunpack.c.l.b16 %v151
  %v944 = vunpack.c.l.b16 %v152
  %v945 = vunpack.c.l.b16 %v153
  %v946 = vunpack.c.l.b16 %v154
  %v947 = vunpack.c.l.b16 %v155
  %v948 = vunpack.c.l.b16 %v156
  %v949 = vunpack.c.l.b16 %v157
  %v950 = vunpack.c.l.b16 %v158
  %v951 = vunpack.c.l.b16 %v159
  %v952 = vunpack.c.l.b16 %v160
  %v953 = vunpack.c.l.b16 %v161
  %v954 = vunpack.c.l.b16 %v162
  %v955 = vunpack.c.l.b16 %v163
  %v956 = vunpack.c.l.b16 %v164
  %v957 = vunpack.c.l.b16 %v165
  %v958 = vunpack.c.l.b16 %v166
  %v959 = vunpack.c.l.b16 %v167
  %v960 = vunpack.c.l.b16 %v168
  %v961 = vunpack.c.l.b16 %v169
  %v962 = vunpack.c.l.b16 %v170
  %v963 = vunpack.c.l.b16 %v171
  %v964 = vunpack.c.l.b16 %v172
  %v965 = vunpack.c.l.b16 %v173
  %v966 = vunpack.c.l.b16 %v174
  %v967 = vunpack.c.l.b16 %v175
  %v968 = vunpack.c.l.b16 %v176
  %v969 = vunpack.c.l.b16 %v177
  %v970 = vunpack.c.l.b16 %v178
  %v971 = vunpack.c.l.b16 %v179
  %v972 = vunpack.c.l.b16 %v180
  %v973 = vunpack.c.l.b16 %v181
  %v974 = vunpack.c.l.b16 %v182
  %v975 = vunpack.c.l.b16 %v183
  %v976 = vunpack.c.l.b16 %v184
  %v977 = vunpack.c.l.b16 %v185
  %v978 = vunpack.c.l.b16 %v186
  %v979 = vunpack.c.l.b16 %v187
  %v980 = vunpack.c.l.b16 %v188
  %v981 = vunpack.c.l.b16 %v189
  %v982 = vunpack.c.l.b16 %v190
  %v983 = vunpack.c.l.b16 %v191
  %v984 = vunpack.c.l.b16 %v192
  %v985 = vunpack.c.l.b16 %v193
  %v986 = vunpack.c.l.b16 %v194
  %v987 = vunpack.c.l.b16 %v195
  %v988 = vunpack.c.l.b16 %v196
  %v989 = vunpack.c.l.b16 %v197
  %v990 = vunpack.c.l.b16 %v198
  %v991 = vunpack.c.l.b16 %v199
  %v992 = vunpack.c.l.b16 %v200
  %v993 = vunpack.c.l.b16 %v201
  %v994 = vunpack.c.l.b16 %v202
  %v995 = vunpack.c.l.b16 %v203
  %v996 = vunpack.c.l.b16 %v204
  %v997 = vunpack.c.l.b16 %v205
  %v998 = vunpack.c.l.b16 %v206
  %v999 = vunpack.c.l.b16 %v207
  %v1000 = vunpack.c.l.b16 %v208
  %v1001 = vunpack.c.l.b16 %v209
  %v1002 = vunpack.c.l.b16 %v210
  %v1003 = vunpack.c.l.b16 %v211
  %v1004 = vunpack.c.l.b16 %v212
  %v1005 = vunpack.c.l.b16 %v213
  %v1006 = vunpack.c.l.b16 %v214
  %v1007 = vunpack.c.l.b16 %v215
  %v1008 = vunpack.c.l.b16 %v216
  %v1009 = vunpack.c.l.b16 %v217
  %v1010 = vunpack.c.l.b16 %v218
  %v1011 = vunpack.c.l.b16 %v219
  %v1012 = vunpack.c.l.b16 %v220
  %v1013 = vunpack.c.l.b16 %v221
  %v1014 = vunpack.c.l.b16 %v222
  %v1015 = vunpack.c.l.b16 %v223
  %v1016 = vunpack.c.l.b16 %v224
  %v1017 = vunpack.c.l.b16 %v225
  %v1018 = vunpack.c.l.b16 %v226
  %v1019 = vunpack.c.l.b16 %v227
  %v1020 = vunpack.c.l.b16 %v228
  %v1021 = vunpack.c.l.b16 %v229
  %v1022 = vunpack.c.l.b16 %v230
  %v1023 = vunpack.c.l.b16 %v231
  %v1024 = vunpack.c.l.b16 %v232
  %v1025 = vunpack.c.l.b16 %v233
  %v1026 = vunpack.c.l.b16 %v234
  %v1027 = vunpack.c.l.b16 %v235
  %v1028 = vunpack.c.l.b16 %v236
  %v1029 = vunpack.c.l.b16 %v237
  %v1030 = vunpack.c.l.b16 %v238
  %v1031 = vunpack.c.l.b16 %v239
  %v1032 = vunpack.c.l.b16 %v240
  %v1033 = vunpack.c.l.b16 %v241
  %v1034 = vpack.c.b16 %v939, %v938
  %v1035 = vpack.c.b16 %v941, %v940
  %v1036 = vpack.c.b16 %v943, %v942
  %v1037 = vpack.c.b16 %v945, %v944
  %v1038 = vpack.c.b16 %v947, %v946
  %v1039 = vpack.c.b16 %v949, %v948
  %v1040 = vpack.c.b16 %v951, %v950
  %v1041 = vpack.c.b16 %v953, %v952
  %v1042 = vpack.c.b16 %v955, %v954
  %v1043 = vpack.c.b16 %v957, %v956
  %v1044 = vpack.c.b16 %v959, %v958
  %v1045 = vpack.c.b16 %v961, %v960
  %v1046 = vpack.c.b16 %v963, %v962
  %v1047 = vpack.c.b16 %v965, %v964
  %v1048 = vpack.c.b16 %v967, %v966
  %v1049 = vpack.c.b16 %v969, %v968
  %v1050 = vpack.c.b16 %v971, %v970
  %v1051 = vpack.c.b16 %v973, %v972
  %v1052 = vpack.c.b16 %v975, %v974
  %v1053 = vpack.c.b16 %v977, %v976
  %v1054 = vpack.c.b16 %v979, %v978
  %v1055 = vpack.c.b16 %v981, %v980
  %v1056 = vpack.c.b16 %v983, %v982
  %v1057 = vpack.c.b16 %v985, %v984
  %v1058 = vpack.c.b16 %v987, %v986
  %v1059 = vpack.c.b16 %v989, %v988
  %v1060 = vpack.c.b16 %v991, %v990
  %v1061 = vpack.c.b16 %v993, %v992
  %v1062 = vpack.c.b16 %v995, %v994
  %v1063 = vpack.c.b16 %v997, %v996
  %v1064 = vpack.c.b16 %v999, %v998
  %v1065 = vpack.c.b16 %v1001, %v1000
  %v1066 = vpack.c.b16 %v1003, %v1002
  %v1067 = vpack.c.b16 %v1005, %v1004
  %v1068 = vpack.c.b16 %v1007, %v1006
  %v1069 = vpack.c.b16 %v1009, %v1008
  %v1070 = vpack.c.b16 %v1011, %v1010
  %v1071 = vpack.c.b16 %v1013, %v1012
  %v1072 = vpack.c.b16 %v1015, %v1014
  %v1073 = vpack.c.b16 %v1017, %v1016
  %v1074 = vpack.c.b16 %v1019, %v1018
  %v1075 = vpack.c.b16 %v1021, %v1020
  %v1076 = vpack.c.b16 %v1023, %v1022
  %v1077 = vpack.c.b16 %v1025, %v1024
  %v1078 = vpack.c.b16 %v1027, %v1026
  %v1079 = vpack.c.b16 %v1029, %v1028
  %v1080 = vpack.c.b16 %v1031, %v1030
  %v1081 = vpack.c.b16 %v1033, %v1032
  %1130 = vmatprep.subr.bf16.mxu0 0
  %1131 = vmatpush1.bf16.msra.mxu0 %v1041
  %1132 = vmatprep.subr.bf16.mxu0 0
  %1133 = vmatpush1.bf16.msra.mxu0 %v1040
  %1134 = vmatprep.subr.bf16.mxu0 0
  %1135 = vmatpush1.bf16.msra.mxu0 %v1039
  %1136 = vmatprep.subr.bf16.mxu0 0
  %1137 = vmatpush1.bf16.msra.mxu0 %v1038
  %1138 = vmatprep.subr.bf16.mxu0 0
  %1139 = vmatpush1.bf16.msra.mxu0 %v1037
  %1140 = vmatprep.subr.bf16.mxu0 0
  %1141 = vmatpush1.bf16.msra.mxu0 %v1036
  %1142 = vmatprep.subr.bf16.mxu0 0
  %1143 = vmatpush1.bf16.msra.mxu0 %v1035
  %1144 = vmatprep.subr.bf16.mxu0 0
  %1145 = vmatpush1.bf16.msra.mxu0 %v1034
  %1146 = vmatprep.subr.bf16.mxu0 0
  %1147 = vmatpush2.bf16.msra.mxu0 %v1049
  %1148 = vmatprep.subr.bf16.mxu0 0
  %1149 = vmatpush2.bf16.msra.mxu0 %v1048
  %1150 = vmatprep.subr.bf16.mxu0 0
  %1151 = vmatpush2.bf16.msra.mxu0 %v1047
  %1152 = vmatprep.subr.bf16.mxu0 0
  %1153 = vmatpush2.bf16.msra.mxu0 %v1046
  %1154 = vmatprep.subr.bf16.mxu0 0
  %1155 = vmatpush2.bf16.msra.mxu0 %v1045
  %1156 = vmatprep.subr.bf16.mxu0 0
  %1157 = vmatpush2.bf16.msra.mxu0 %v1044
  %1158 = vmatprep.subr.bf16.mxu0 0
  %1159 = vmatpush2.bf16.msra.mxu0 %v1043
  %1160 = vmatprep.subr.bf16.mxu0 0
  %1161 = vmatpush2.bf16.msra.mxu0 %v1042
  %1162 = vmatprep.mubr.bf16.mxu0 %v129
  %1163 = vmatmul.mubr.bf16.gmra.mxu0 %v128
  %v1164 = vpop.f32.mrf.mxu0
  %v1165 = vadd.f32 %v837, %v1164
  %v1166 = vpop.f32.mrf.mxu0
  %v1167 = vpop.f32.mrf.mxu0
  %v1168 = vpop.f32.mrf.mxu0
  %1169 = vdwg.mxu0
  %1170 = vmatprep.subr.bf16.mxu0 0
  %1171 = vmatpush1.bf16.msra.mxu0 %v1057
  %1172 = vmatprep.subr.bf16.mxu0 0
  %1173 = vmatpush1.bf16.msra.mxu0 %v1056
  %1174 = vmatprep.subr.bf16.mxu0 0
  %1175 = vmatpush1.bf16.msra.mxu0 %v1055
  %1176 = vmatprep.subr.bf16.mxu0 0
  %1177 = vmatpush1.bf16.msra.mxu0 %v1054
  %1178 = vmatprep.subr.bf16.mxu0 0
  %1179 = vmatpush1.bf16.msra.mxu0 %v1053
  %1180 = vmatprep.subr.bf16.mxu0 0
  %1181 = vmatpush1.bf16.msra.mxu0 %v1052
  %1182 = vmatprep.subr.bf16.mxu0 0
  %1183 = vmatpush1.bf16.msra.mxu0 %v1051
  %1184 = vmatprep.subr.bf16.mxu0 0
  %1185 = vmatpush1.bf16.msra.mxu0 %v1050
  %1186 = vmatprep.subr.bf16.mxu0 0
  %1187 = vmatpush2.bf16.msra.mxu0 %v1065
  %1188 = vmatprep.subr.bf16.mxu0 0
  %1189 = vmatpush2.bf16.msra.mxu0 %v1064
  %1190 = vmatprep.subr.bf16.mxu0 0
  %1191 = vmatpush2.bf16.msra.mxu0 %v1063
  %1192 = vmatprep.subr.bf16.mxu0 0
  %1193 = vmatpush2.bf16.msra.mxu0 %v1062
  %1194 = vmatprep.subr.bf16.mxu0 0
  %1195 = vmatpush2.bf16.msra.mxu0 %v1061
  %1196 = vmatprep.subr.bf16.mxu0 0
  %1197 = vmatpush2.bf16.msra.mxu0 %v1060
  %1198 = vmatprep.subr.bf16.mxu0 0
  %1199 = vmatpush2.bf16.msra.mxu0 %v1059
  %1200 = vmatprep.subr.bf16.mxu0 0
  %1201 = vmatpush2.bf16.msra.mxu0 %v1058
  %1202 = vmatprep.mubr.bf16.mxu0 %v131
  %1203 = vmatmul.mubr.bf16.gmra.mxu0 %v130
  %v1204 = vpop.f32.mrf.mxu0
  %v1205 = vadd.f32 %v1165, %v1204
  %v1206 = vpop.f32.mrf.mxu0
  %v1207 = vpop.f32.mrf.mxu0
  %v1208 = vpop.f32.mrf.mxu0
  %1209 = vdwg.mxu0
  %1210 = vmatprep.subr.bf16.mxu0 0
  %1211 = vmatpush1.bf16.msra.mxu0 %v1073
  %1212 = vmatprep.subr.bf16.mxu0 0
  %1213 = vmatpush1.bf16.msra.mxu0 %v1072
  %1214 = vmatprep.subr.bf16.mxu0 0
  %1215 = vmatpush1.bf16.msra.mxu0 %v1071
  %1216 = vmatprep.subr.bf16.mxu0 0
  %1217 = vmatpush1.bf16.msra.mxu0 %v1070
  %1218 = vmatprep.subr.bf16.mxu0 0
  %1219 = vmatpush1.bf16.msra.mxu0 %v1069
  %1220 = vmatprep.subr.bf16.mxu0 0
  %1221 = vmatpush1.bf16.msra.mxu0 %v1068
  %1222 = vmatprep.subr.bf16.mxu0 0
  %1223 = vmatpush1.bf16.msra.mxu0 %v1067
  %1224 = vmatprep.subr.bf16.mxu0 0
  %1225 = vmatpush1.bf16.msra.mxu0 %v1066
  %1226 = vmatprep.subr.bf16.mxu0 0
  %1227 = vmatpush2.bf16.msra.mxu0 %v1081
  %1228 = vmatprep.subr.bf16.mxu0 0
  %1229 = vmatpush2.bf16.msra.mxu0 %v1080
  %1230 = vmatprep.subr.bf16.mxu0 0
  %1231 = vmatpush2.bf16.msra.mxu0 %v1079
  %1232 = vmatprep.subr.bf16.mxu0 0
  %1233 = vmatpush2.bf16.msra.mxu0 %v1078
  %1234 = vmatprep.subr.bf16.mxu0 0
  %1235 = vmatpush2.bf16.msra.mxu0 %v1077
  %1236 = vmatprep.subr.bf16.mxu0 0
  %1237 = vmatpush2.bf16.msra.mxu0 %v1076
  %1238 = vmatprep.subr.bf16.mxu0 0
  %1239 = vmatpush2.bf16.msra.mxu0 %v1075
  %1240 = vmatprep.subr.bf16.mxu0 0
  %1241 = vmatpush2.bf16.msra.mxu0 %v1074
  %1242 = vmatprep.mubr.bf16.mxu0 %v133
  %1243 = vmatmul.mubr.bf16.gmra.mxu0 %v132
  %v1244 = vpop.f32.mrf.mxu0
  %v1245 = vadd.f32 %v1205, %v1244
  %v1246 = vpop.f32.mrf.mxu0
  %v1247 = vpop.f32.mrf.mxu0
  %v1248 = vpop.f32.mrf.mxu0
  %1249 = vdwg.mxu0
  %v1346 = vunpack.c.l.b16 %v338
  %v1347 = vunpack.c.l.b16 %v339
  %v1348 = vunpack.c.l.b16 %v340
  %v1349 = vunpack.c.l.b16 %v341
  %v1350 = vunpack.c.l.b16 %v342
  %v1351 = vunpack.c.l.b16 %v343
  %v1352 = vunpack.c.l.b16 %v344
  %v1353 = vunpack.c.l.b16 %v345
  %v1354 = vunpack.c.l.b16 %v346
  %v1355 = vunpack.c.l.b16 %v347
  %v1356 = vunpack.c.l.b16 %v348
  %v1357 = vunpack.c.l.b16 %v349
  %v1358 = vunpack.c.l.b16 %v350
  %v1359 = vunpack.c.l.b16 %v351
  %v1360 = vunpack.c.l.b16 %v352
  %v1361 = vunpack.c.l.b16 %v353
  %v1362 = vunpack.c.l.b16 %v354
  %v1363 = vunpack.c.l.b16 %v355
  %v1364 = vunpack.c.l.b16 %v356
  %v1365 = vunpack.c.l.b16 %v357
  %v1366 = vunpack.c.l.b16 %v358
  %v1367 = vunpack.c.l.b16 %v359
  %v1368 = vunpack.c.l.b16 %v360
  %v1369 = vunpack.c.l.b16 %v361
  %v1370 = vunpack.c.l.b16 %v362
  %v1371 = vunpack.c.l.b16 %v363
  %v1372 = vunpack.c.l.b16 %v364
  %v1373 = vunpack.c.l.b16 %v365
  %v1374 = vunpack.c.l.b16 %v366
  %v1375 = vunpack.c.l.b16 %v367
  %v1376 = vunpack.c.l.b16 %v368
  %v1377 = vunpack.c.l.b16 %v369
  %v1378 = vunpack.c.l.b16 %v370
  %v1379 = vunpack.c.l.b16 %v371
  %v1380 = vunpack.c.l.b16 %v372
  %v1381 = vunpack.c.l.b16 %v373
  %v1382 = vunpack.c.l.b16 %v374
  %v1383 = vunpack.c.l.b16 %v375
  %v1384 = vunpack.c.l.b16 %v376
  %v1385 = vunpack.c.l.b16 %v377
  %v1386 = vunpack.c.l.b16 %v378
  %v1387 = vunpack.c.l.b16 %v379
  %v1388 = vunpack.c.l.b16 %v380
  %v1389 = vunpack.c.l.b16 %v381
  %v1390 = vunpack.c.l.b16 %v382
  %v1391 = vunpack.c.l.b16 %v383
  %v1392 = vunpack.c.l.b16 %v384
  %v1393 = vunpack.c.l.b16 %v385
  %v1394 = vunpack.c.l.b16 %v386
  %v1395 = vunpack.c.l.b16 %v387
  %v1396 = vunpack.c.l.b16 %v388
  %v1397 = vunpack.c.l.b16 %v389
  %v1398 = vunpack.c.l.b16 %v390
  %v1399 = vunpack.c.l.b16 %v391
  %v1400 = vunpack.c.l.b16 %v392
  %v1401 = vunpack.c.l.b16 %v393
  %v1402 = vunpack.c.l.b16 %v394
  %v1403 = vunpack.c.l.b16 %v395
  %v1404 = vunpack.c.l.b16 %v396
  %v1405 = vunpack.c.l.b16 %v397
  %v1406 = vunpack.c.l.b16 %v398
  %v1407 = vunpack.c.l.b16 %v399
  %v1408 = vunpack.c.l.b16 %v400
  %v1409 = vunpack.c.l.b16 %v401
  %v1410 = vunpack.c.l.b16 %v402
  %v1411 = vunpack.c.l.b16 %v403
  %v1412 = vunpack.c.l.b16 %v404
  %v1413 = vunpack.c.l.b16 %v405
  %v1414 = vunpack.c.l.b16 %v406
  %v1415 = vunpack.c.l.b16 %v407
  %v1416 = vunpack.c.l.b16 %v408
  %v1417 = vunpack.c.l.b16 %v409
  %v1418 = vunpack.c.l.b16 %v410
  %v1419 = vunpack.c.l.b16 %v411
  %v1420 = vunpack.c.l.b16 %v412
  %v1421 = vunpack.c.l.b16 %v413
  %v1422 = vunpack.c.l.b16 %v414
  %v1423 = vunpack.c.l.b16 %v415
  %v1424 = vunpack.c.l.b16 %v416
  %v1425 = vunpack.c.l.b16 %v417
  %v1426 = vunpack.c.l.b16 %v418
  %v1427 = vunpack.c.l.b16 %v419
  %v1428 = vunpack.c.l.b16 %v420
  %v1429 = vunpack.c.l.b16 %v421
  %v1430 = vunpack.c.l.b16 %v422
  %v1431 = vunpack.c.l.b16 %v423
  %v1432 = vunpack.c.l.b16 %v424
  %v1433 = vunpack.c.l.b16 %v425
  %v1434 = vunpack.c.l.b16 %v426
  %v1435 = vunpack.c.l.b16 %v427
  %v1436 = vunpack.c.l.b16 %v428
  %v1437 = vunpack.c.l.b16 %v429
  %v1438 = vunpack.c.l.b16 %v430
  %v1439 = vunpack.c.l.b16 %v431
  %v1440 = vunpack.c.l.b16 %v432
  %v1441 = vunpack.c.l.b16 %v433
  %v1442 = vpack.c.b16 %v1347, %v1346
  %v1443 = vpack.c.b16 %v1349, %v1348
  %v1444 = vpack.c.b16 %v1351, %v1350
  %v1445 = vpack.c.b16 %v1353, %v1352
  %v1446 = vpack.c.b16 %v1355, %v1354
  %v1447 = vpack.c.b16 %v1357, %v1356
  %v1448 = vpack.c.b16 %v1359, %v1358
  %v1449 = vpack.c.b16 %v1361, %v1360
  %v1450 = vpack.c.b16 %v1363, %v1362
  %v1451 = vpack.c.b16 %v1365, %v1364
  %v1452 = vpack.c.b16 %v1367, %v1366
  %v1453 = vpack.c.b16 %v1369, %v1368
  %v1454 = vpack.c.b16 %v1371, %v1370
  %v1455 = vpack.c.b16 %v1373, %v1372
  %v1456 = vpack.c.b16 %v1375, %v1374
  %v1457 = vpack.c.b16 %v1377, %v1376
  %v1458 = vpack.c.b16 %v1379, %v1378
  %v1459 = vpack.c.b16 %v1381, %v1380
  %v1460 = vpack.c.b16 %v1383, %v1382
  %v1461 = vpack.c.b16 %v1385, %v1384
  %v1462 = vpack.c.b16 %v1387, %v1386
  %v1463 = vpack.c.b16 %v1389, %v1388
  %v1464 = vpack.c.b16 %v1391, %v1390
  %v1465 = vpack.c.b16 %v1393, %v1392
  %v1466 = vpack.c.b16 %v1395, %v1394
  %v1467 = vpack.c.b16 %v1397, %v1396
  %v1468 = vpack.c.b16 %v1399, %v1398
  %v1469 = vpack.c.b16 %v1401, %v1400
  %v1470 = vpack.c.b16 %v1403, %v1402
  %v1471 = vpack.c.b16 %v1405, %v1404
  %v1472 = vpack.c.b16 %v1407, %v1406
  %v1473 = vpack.c.b16 %v1409, %v1408
  %v1474 = vpack.c.b16 %v1411, %v1410
  %v1475 = vpack.c.b16 %v1413, %v1412
  %v1476 = vpack.c.b16 %v1415, %v1414
  %v1477 = vpack.c.b16 %v1417, %v1416
  %v1478 = vpack.c.b16 %v1419, %v1418
  %v1479 = vpack.c.b16 %v1421, %v1420
  %v1480 = vpack.c.b16 %v1423, %v1422
  %v1481 = vpack.c.b16 %v1425, %v1424
  %v1482 = vpack.c.b16 %v1427, %v1426
  %v1483 = vpack.c.b16 %v1429, %v1428
  %v1484 = vpack.c.b16 %v1431, %v1430
  %v1485 = vpack.c.b16 %v1433, %v1432
  %v1486 = vpack.c.b16 %v1435, %v1434
  %v1487 = vpack.c.b16 %v1437, %v1436
  %v1488 = vpack.c.b16 %v1439, %v1438
  %v1489 = vpack.c.b16 %v1441, %v1440
  %1538 = vmatprep.subr.bf16.mxu0 0
  %1539 = vmatpush1.bf16.msra.mxu0 %v1449
  %1540 = vmatprep.subr.bf16.mxu0 0
  %1541 = vmatpush1.bf16.msra.mxu0 %v1448
  %1542 = vmatprep.subr.bf16.mxu0 0
  %1543 = vmatpush1.bf16.msra.mxu0 %v1447
  %1544 = vmatprep.subr.bf16.mxu0 0
  %1545 = vmatpush1.bf16.msra.mxu0 %v1446
  %1546 = vmatprep.subr.bf16.mxu0 0
  %1547 = vmatpush1.bf16.msra.mxu0 %v1445
  %1548 = vmatprep.subr.bf16.mxu0 0
  %1549 = vmatpush1.bf16.msra.mxu0 %v1444
  %1550 = vmatprep.subr.bf16.mxu0 0
  %1551 = vmatpush1.bf16.msra.mxu0 %v1443
  %1552 = vmatprep.subr.bf16.mxu0 0
  %1553 = vmatpush1.bf16.msra.mxu0 %v1442
  %1554 = vmatprep.subr.bf16.mxu0 0
  %1555 = vmatpush2.bf16.msra.mxu0 %v1457
  %1556 = vmatprep.subr.bf16.mxu0 0
  %1557 = vmatpush2.bf16.msra.mxu0 %v1456
  %1558 = vmatprep.subr.bf16.mxu0 0
  %1559 = vmatpush2.bf16.msra.mxu0 %v1455
  %1560 = vmatprep.subr.bf16.mxu0 0
  %1561 = vmatpush2.bf16.msra.mxu0 %v1454
  %1562 = vmatprep.subr.bf16.mxu0 0
  %1563 = vmatpush2.bf16.msra.mxu0 %v1453
  %1564 = vmatprep.subr.bf16.mxu0 0
  %1565 = vmatpush2.bf16.msra.mxu0 %v1452
  %1566 = vmatprep.subr.bf16.mxu0 0
  %1567 = vmatpush2.bf16.msra.mxu0 %v1451
  %1568 = vmatprep.subr.bf16.mxu0 0
  %1569 = vmatpush2.bf16.msra.mxu0 %v1450
  %1570 = vmatprep.mubr.bf16.mxu0 %v141
  %1571 = vmatmul.mubr.bf16.gmra.mxu0 %v140
  %v1572 = vpop.f32.mrf.mxu0
  %v1573 = vadd.f32 0.0, %v1572
  %v1574 = vpop.f32.mrf.mxu0
  %v1575 = vpop.f32.mrf.mxu0
  %v1576 = vpop.f32.mrf.mxu0
  %1577 = vdwg.mxu0
  %1578 = vmatprep.subr.bf16.mxu0 0
  %1579 = vmatpush1.bf16.msra.mxu0 %v1465
  %1580 = vmatprep.subr.bf16.mxu0 0
  %1581 = vmatpush1.bf16.msra.mxu0 %v1464
  %1582 = vmatprep.subr.bf16.mxu0 0
  %1583 = vmatpush1.bf16.msra.mxu0 %v1463
  %1584 = vmatprep.subr.bf16.mxu0 0
  %1585 = vmatpush1.bf16.msra.mxu0 %v1462
  %1586 = vmatprep.subr.bf16.mxu0 0
  %1587 = vmatpush1.bf16.msra.mxu0 %v1461
  %1588 = vmatprep.subr.bf16.mxu0 0
  %1589 = vmatpush1.bf16.msra.mxu0 %v1460
  %1590 = vmatprep.subr.bf16.mxu0 0
  %1591 = vmatpush1.bf16.msra.mxu0 %v1459
  %1592 = vmatprep.subr.bf16.mxu0 0
  %1593 = vmatpush1.bf16.msra.mxu0 %v1458
  %1594 = vmatprep.subr.bf16.mxu0 0
  %1595 = vmatpush2.bf16.msra.mxu0 %v1473
  %1596 = vmatprep.subr.bf16.mxu0 0
  %1597 = vmatpush2.bf16.msra.mxu0 %v1472
  %1598 = vmatprep.subr.bf16.mxu0 0
  %1599 = vmatpush2.bf16.msra.mxu0 %v1471
  %1600 = vmatprep.subr.bf16.mxu0 0
  %1601 = vmatpush2.bf16.msra.mxu0 %v1470
  %1602 = vmatprep.subr.bf16.mxu0 0
  %1603 = vmatpush2.bf16.msra.mxu0 %v1469
  %1604 = vmatprep.subr.bf16.mxu0 0
  %1605 = vmatpush2.bf16.msra.mxu0 %v1468
  %1606 = vmatprep.subr.bf16.mxu0 0
  %1607 = vmatpush2.bf16.msra.mxu0 %v1467
  %1608 = vmatprep.subr.bf16.mxu0 0
  %1609 = vmatpush2.bf16.msra.mxu0 %v1466
  %1610 = vmatprep.mubr.bf16.mxu0 %v143
  %1611 = vmatmul.mubr.bf16.gmra.mxu0 %v142
  %v1612 = vpop.f32.mrf.mxu0
  %v1613 = vadd.f32 %v1573, %v1612
  %v1614 = vpop.f32.mrf.mxu0
  %v1615 = vpop.f32.mrf.mxu0
  %v1616 = vpop.f32.mrf.mxu0
  %1617 = vdwg.mxu0
  %1618 = vmatprep.subr.bf16.mxu0 0
  %1619 = vmatpush1.bf16.msra.mxu0 %v1481
  %1620 = vmatprep.subr.bf16.mxu0 0
  %1621 = vmatpush1.bf16.msra.mxu0 %v1480
  %1622 = vmatprep.subr.bf16.mxu0 0
  %1623 = vmatpush1.bf16.msra.mxu0 %v1479
  %1624 = vmatprep.subr.bf16.mxu0 0
  %1625 = vmatpush1.bf16.msra.mxu0 %v1478
  %1626 = vmatprep.subr.bf16.mxu0 0
  %1627 = vmatpush1.bf16.msra.mxu0 %v1477
  %1628 = vmatprep.subr.bf16.mxu0 0
  %1629 = vmatpush1.bf16.msra.mxu0 %v1476
  %1630 = vmatprep.subr.bf16.mxu0 0
  %1631 = vmatpush1.bf16.msra.mxu0 %v1475
  %1632 = vmatprep.subr.bf16.mxu0 0
  %1633 = vmatpush1.bf16.msra.mxu0 %v1474
  %1634 = vmatprep.subr.bf16.mxu0 0
  %1635 = vmatpush2.bf16.msra.mxu0 %v1489
  %1636 = vmatprep.subr.bf16.mxu0 0
  %1637 = vmatpush2.bf16.msra.mxu0 %v1488
  %1638 = vmatprep.subr.bf16.mxu0 0
  %1639 = vmatpush2.bf16.msra.mxu0 %v1487
  %1640 = vmatprep.subr.bf16.mxu0 0
  %1641 = vmatpush2.bf16.msra.mxu0 %v1486
  %1642 = vmatprep.subr.bf16.mxu0 0
  %1643 = vmatpush2.bf16.msra.mxu0 %v1485
  %1644 = vmatprep.subr.bf16.mxu0 0
  %1645 = vmatpush2.bf16.msra.mxu0 %v1484
  %1646 = vmatprep.subr.bf16.mxu0 0
  %1647 = vmatpush2.bf16.msra.mxu0 %v1483
  %1648 = vmatprep.subr.bf16.mxu0 0
  %1649 = vmatpush2.bf16.msra.mxu0 %v1482
  %1650 = vmatprep.mubr.bf16.mxu0 %v145
  %1651 = vmatmul.mubr.bf16.gmra.mxu0 %v144
  %v1652 = vpop.f32.mrf.mxu0
  %v1653 = vadd.f32 %v1613, %v1652
  %v1654 = vpop.f32.mrf.mxu0
  %v1655 = vpop.f32.mrf.mxu0
  %v1656 = vpop.f32.mrf.mxu0
  %1657 = vdwg.mxu0
  %v1658 = vadd.f32 %v1245, %v1653
  %v1659 = vld [vmem:[%s2] sm:$0x1]
  %v1661 = vlaneseq
  %v1662 = vshrl.u32 %v1661, 7
  %v1663 = vsub.s32 0, %v1662
  %v1664 = vrot.slane %v1659, %v1663
  %v1666 = vadd.f32 %v1658, %v1664
  %v1667 = vld [vmem:[%s3] sm:$0x1]
  %v1669 = vlaneseq
  %v1670 = vshrl.u32 %v1669, 7
  %v1671 = vsub.s32 0, %v1670
  %v1672 = vrot.slane %v1667, %v1671
  %v1674 = vmul.f32 %v1666, %v1672
  %vm1675 = vcmask 1041408
  %v1676 = vsel %vm1675, %v1674, 0.0
  %1677 = vadd.xlane.f32.xlu0 %v1676
  %v1678 = vpop.xlane.xlu0 %1677
  %v1679 = vld [vmem:[#allocation2] sm:$0x1]
  %v1681 = vlaneseq
  %v1682 = vshrl.u32 %v1681, 7
  %v1683 = vsub.s32 0, %v1682
  %v1684 = vrot.slane %v1679, %v1683
  %v1686 = vadd.f32 %v1678, %v1684
  %vm1687 = vcmask 1024
  %1688 = vst.msk [vmem:[%s5] sm:$0x3] %vm1687, %v1686
  // Predicated region
  $region22: #{_forward.3} parent=0 // pred_check
    _
  $region23: #{_forward.3} parent=0 // pred_check_branch
    %1690 = sbr.rel (0) target = $region25
  $region24: #{_forward.3} parent=0 // pred_region
    _
  $region25: #{_forward.3} parent=0 // pred_fallthru
    _
  // Predicated region
  $region26: #{_forward.3} parent=0 // pred_check
    _
  $region27: #{_forward.3} parent=0 // pred_check_branch
    %1692 = sbr.rel (0) target = $region29
  $region28: #{_forward.3} parent=0 // pred_region
    _
  $region29: #{_forward.3} parent=0 // pred_fallthru
    _

</llo_original>
